<compile_context>
chip_gen: v6e
topology: v6e:2x2x1
jax: 0.10.0
libtpu: 0.0.40
codegen_flags: <defaults>
</compile_context>

<pallas_src>
import numpy as np
import jax
import jax.numpy as jnp
from jax.experimental import pallas as pl
from jax.experimental.pallas import tpu as pltpu


def _round_up(x, m):
    return (x + m - 1) // m * m


def _cdiv(a, b):
    return (a + b - 1) // b


def _leaky(x, slope=0.2):
    return jnp.where(x >= 0, x, slope * x)


def _bn_leaky(z, gamma, beta, eps=0.8, slope=0.2):
    """Training-mode BatchNorm1d(eps=0.8) + LeakyReLU(0.2).

    Two-pass, biased variance E[(z-mean)^2] exactly like PyTorch train mode.
    All statistics / elementwise math in f32; rsqrt rides the EUP slot."""
    mean = jnp.mean(z, axis=0, keepdims=True)
    zc = z - mean
    var = jnp.mean(zc * zc, axis=0, keepdims=True)
    h = zc * (gamma * jax.lax.rsqrt(var + eps)) + beta
    return jnp.where(h >= 0, h, slope * h)


# ----------------------------------------------------------------------------- 
# Kernel A: embedding + layers 1..4 (+BN) -> (B, 1024) bf16 hidden activations.
# -----------------------------------------------------------------------------
def hidden_stack_kernel(
    labels_ref, noise_ref, emb_ref,          # (B,1) i32, (B,L) f32, (C,C) f32
    w1a_ref, w1b_ref, b1_ref,                # split Linear -> 128   (bf16 weights)
    w2_ref, b2_ref, g2_ref, be2_ref,         # Linear -> 256  + BN(256)
    w3_ref, b3_ref, g3_ref, be3_ref,         # Linear -> 512  + BN(512)
    w4_ref, b4_ref, g4_ref, be4_ref,         # Linear -> 1024 + BN(1024)
    h_ref,                                   # (B, 1024) bf16 output
):
    # --- label embedding as a one-hot matmul (0/1 select of the tiny table) ---
    labels = labels_ref[...]                                   # (B, 1) int32
    B = labels.shape[0]
    n_classes = emb_ref.shape[0]
    classes = jax.lax.broadcasted_iota(jnp.int32, (B, n_classes), 1)
    one_hot = (labels == classes).astype(jnp.float32)          # (B, C)
    emb = jnp.dot(one_hot, emb_ref[...],
                  preferred_element_type=jnp.float32)          # (B, C) f32

    # --- layer 1: Linear(L+C, 128); the concat is folded into a split weight ---
    z = (jnp.dot(emb.astype(jnp.bfloat16), w1a_ref[...],
                 preferred_element_type=jnp.float32)
         + jnp.dot(noise_ref[...].astype(jnp.bfloat16), w1b_ref[...],
                   preferred_element_type=jnp.float32)
         + b1_ref[...])
    h = _leaky(z)

    # --- layers 2..4: Linear + BatchNorm1d(eps=0.8, train) + LeakyReLU ---
    z = jnp.dot(h.astype(jnp.bfloat16), w2_ref[...],
                preferred_element_type=jnp.float32) + b2_ref[...]
    h = _bn_leaky(z, g2_ref[...], be2_ref[...])

    z = jnp.dot(h.astype(jnp.bfloat16), w3_ref[...],
                preferred_element_type=jnp.float32) + b3_ref[...]
    h = _bn_leaky(z, g3_ref[...], be3_ref[...])

    z = jnp.dot(h.astype(jnp.bfloat16), w4_ref[...],
                preferred_element_type=jnp.float32) + b4_ref[...]
    h = _bn_leaky(z, g4_ref[...], be4_ref[...])

    h_ref[...] = h.astype(jnp.bfloat16)


# -----------------------------------------------------------------------------
# Kernel B: streamed final Linear(1024, out_pad) over lane-dense N tiles.
# -----------------------------------------------------------------------------
def final_linear_kernel(h_ref, w5_ref, b5_ref, out_ref):
    out_ref[...] = (
        jnp.dot(h_ref[...], w5_ref[...], preferred_element_type=jnp.float32)
        + b5_ref[...]
    ).astype(out_ref.dtype)


# -----------------------------------------------------------------------------
# Parameters + one-time packing of the final layer.
# -----------------------------------------------------------------------------
def init_params(key, latent_dim, n_classes, img_shape):
    """Parameter init mirroring the PyTorch module's shapes.
    Linear weights in bf16 (MXU-native); biases / BN params in f32."""
    out_dim = int(np.prod(img_shape))
    dims = [latent_dim + n_classes, 128, 256, 512, 1024, out_dim]
    keys = jax.random.split(key, 11)
    params = {
        # nn.Embedding(n_classes, n_classes): N(0,1) init (tiny; kept f32)
        "label_emb": jax.random.normal(keys[0], (n_classes, n_classes), jnp.float32)
    }

    def linear_init(kw, kb, fan_in, fan_out):
        bound = 1.0 / np.sqrt(fan_in)
        w = jax.random.uniform(kw, (fan_in, fan_out), jnp.float32, -bound, bound)
        b = jax.random.uniform(kb, (1, fan_out), jnp.float32, -bound, bound)
        return w.astype(jnp.bfloat16), b

    for i in range(5):
        w, b = linear_init(keys[1 + 2 * i], keys[2 + 2 * i], dims[i], dims[i + 1])
        params[f"w{i+1}"] = w
        params[f"b{i+1}"] = b

    # BatchNorm1d default affine init: gamma=1, beta=0 (layers 2..4 have BN)
    for i, d in zip((2, 3, 4), (256, 512, 1024)):
        params[f"g{i}"] = jnp.ones((1, d), jnp.float32)
        params[f"be{i}"] = jnp.zeros((1, d), jnp.float32)
    return params


def _vmem_capacity_bytes():
    try:
        return int(pltpu.get_tpu_info().vmem_capacity_bytes)
    except Exception:
        return 64 * 1024 * 1024   # conservative: v7x per-TensorCore VMEM


def _choose_tiling(out_dim, hidden, tile_n=None):
    """Pick a lane-dense output tile. Single step if the padded output fits one
    tile; otherwise balanced multiples of 128 that minimize padding overshoot."""
    vmem_cap = _vmem_capacity_bytes()
    # One streamed w5 buffer capped to ~1/8 of VMEM (<= 3 buffers in flight).
    tile_max = max(128, ((vmem_cap // 8) // (hidden * 2)) // 128 * 128)
    target = _round_up(int(tile_n), 128) if tile_n else 2048
    target = min(max(target, 128), tile_max)
    out_pad128 = _round_up(out_dim, 128)
    if out_pad128 <= target:
        return out_pad128, 1, out_pad128, vmem_cap         # grid collapses to 1 step
    num_tiles = _cdiv(out_pad128, target)
    tile = _round_up(_cdiv(out_pad128, num_tiles), 128)
    return tile, num_tiles, num_tiles * tile, vmem_cap


def prepare_params(params, img_shape, *, tile_n=None):
    """One-time packing (call once, outside the per-step forward):
      * split w1 so the (emb, noise) concat never materializes in-kernel,
      * pad the final layer to the tile grid and pre-tile w5 to a contiguous
        (num_tiles, 1024, tile_n) bf16 layout -> no per-forward jnp.pad copy and
        each streamed tile is one contiguous HBM region."""
    out_dim = int(np.prod(img_shape))
    n_classes = params["label_emb"].shape[0]
    hidden = params["w5"].shape[0]                # 1024
    tile, num_tiles, out_pad, vmem_cap = _choose_tiling(out_dim, hidden, tile_n)

    w5, b5 = params["w5"], params["b5"]
    if out_pad != out_dim:
        w5 = jnp.pad(w5, ((0, 0), (0, out_pad - out_dim)))
        b5 = jnp.pad(b5, ((0, 0), (0, out_pad - out_dim)))
    w5_tiles = jnp.transpose(w5.reshape(hidden, num_tiles, tile), (1, 0, 2))

    prepared = dict(params)
    prepared["w1a"] = params["w1"][:n_classes]
    prepared["w1b"] = params["w1"][n_classes:]
    prepared["w5_tiles"] = w5_tiles               # (num_tiles, 1024, tile) bf16
    prepared["b5_pad"] = b5                       # (1, out_pad) f32
    prepared["_meta"] = dict(out_dim=out_dim, out_pad=out_pad, tile_n=tile,
                             num_tiles=num_tiles, hidden=hidden,
                             n_classes=n_classes, vmem_cap=vmem_cap)
    return prepared


def _stream_spec(block_shape, index_map, buffers):
    """Streamed-operand BlockSpec with deeper multi-buffering when useful."""
    if buffers != 2 and hasattr(pl, "Buffered"):
        try:
            return pl.BlockSpec(block_shape, index_map,
                                pipeline_mode=pl.Buffered(buffers))
        except TypeError:
            pass
    return pl.BlockSpec(block_shape, index_map)


# -----------------------------------------------------------------------------
# Forward.
# -----------------------------------------------------------------------------
def generator_forward(noise, labels, prepared, img_shape):
    """noise: (B, latent) f32, labels: (B,) int. Returns (B, *img_shape) f32."""
    meta = prepared["_meta"]
    B, latent_dim = noise.shape
    hidden, n_classes = meta["hidden"], meta["n_classes"]
    tile_n, num_tiles = meta["tile_n"], meta["num_tiles"]
    out_pad, out_dim, vmem_cap = meta["out_pad"], meta["out_dim"], meta["vmem_cap"]

    labels2d = labels.reshape(B, 1).astype(jnp.int32)

    def nbytes(a):
        return int(np.prod(a.shape)) * a.dtype.itemsize

    # ---------------- call A: hidden stack (grid of 1, everything resident) ---
    hidden_inputs = (
        labels2d, noise, prepared["label_emb"],
        prepared["w1a"], prepared["w1b"], prepared["b1"],
        prepared["w2"], prepared["b2"], prepared["g2"], prepared["be2"],
        prepared["w3"], prepared["b3"], prepared["g3"], prepared["be3"],
        prepared["w4"], prepared["b4"], prepared["g4"], prepared["be4"],
    )

    def resident_spec(arr):
        n = arr.ndim
        return pl.BlockSpec(arr.shape, lambda j, _n=n: (0,) * _n)

    resident_a = sum(nbytes(a) for a in hidden_inputs)
    vmem_a = int(min(vmem_cap * 7 // 8,
                     2 * resident_a + 2 * B * hidden * 2 + (8 << 20)))
    flops_a = 2 * B * (n_classes * n_classes
                       + (n_classes + latent_dim) * 128
                       + 128 * 256 + 256 * 512 + 512 * 1024)
    cost_a = pl.CostEstimate(flops=flops_a,
                             transcendentals=256 + 512 + 1024,   # rsqrt per BN feature
                             bytes_accessed=resident_a + B * hidden * 2)

    h = pl.pallas_call(
        hidden_stack_kernel,
        out_shape=jax.ShapeDtypeStruct((B, hidden), jnp.bfloat16),
        grid=(1,),
        in_specs=[resident_spec(a) for a in hidden_inputs],
        out_specs=pl.BlockSpec((B, hidden), lambda j: (0, 0)),
        compiler_params=pltpu.CompilerParams(
            dimension_semantics=("arbitrary",), vmem_limit_bytes=vmem_a),
        cost_estimate=cost_a,
    )(*hidden_inputs)

    # ---------------- call B: streamed final Linear, parallel over N tiles ----
    # TODO(synk): if B grows beyond toy sizes, also tile B (multiple of 16 for
    # the bf16 hidden) as an extra "parallel" grid axis and consider bf16 output.
    buffers = 3 if num_tiles >= 3 else 2
    w5_spec = _stream_spec((None, hidden, tile_n), lambda j: (j, 0, 0), buffers)
    b5_spec = _stream_spec((1, tile_n), lambda j: (0, j), buffers)

    stream_bytes = buffers * (hidden * tile_n * 2 + tile_n * 4)
    vmem_b = int(min(vmem_cap * 7 // 8,
                     stream_bytes + 2 * B * tile_n * 4
                     + 2 * B * hidden * 2 + (8 << 20)))
    cost_b = pl.CostEstimate(
        flops=2 * B * hidden * out_pad,
        transcendentals=0,
        bytes_accessed=hidden * out_pad * 2 + out_pad * 4
                       + B * out_pad * 4 + B * hidden * 2)

    flat = pl.pallas_call(
        final_linear_kernel,
        out_shape=jax.ShapeDtypeStruct((B, out_pad), jnp.float32),
        grid=(num_tiles,),
        in_specs=[
            pl.BlockSpec((B, hidden), lambda j: (0, 0)),   # h: resident
            w5_spec,                                       # w5 tile: contiguous stream
            b5_spec,                                       # b5 tile
        ],
        out_specs=pl.BlockSpec((B, tile_n), lambda j: (0, j)),
        compiler_params=pltpu.CompilerParams(
            dimension_semantics=("parallel",), vmem_limit_bytes=vmem_b),
        cost_estimate=cost_b,
    )(h, prepared["w5_tiles"], prepared["b5_pad"])

    return flat[:, :out_dim].reshape(B, *img_shape)


# -----------------------------------------------------------------------------
# Pure-JAX reference (PyTorch-shaped math, same bf16-in / f32-acc matmuls).
# -----------------------------------------------------------------------------
def _reference_forward(noise, labels, params, img_shape):
    def mm(h, w):
        return jnp.dot(h.astype(jnp.bfloat16), w.astype(jnp.bfloat16),
                       preferred_element_type=jnp.float32)

    emb = jnp.take(params["label_emb"], labels, axis=0)
    x = jnp.concatenate([emb, noise], axis=-1)
    h = _leaky(mm(x, params["w1"]) + params["b1"])
    for i in (2, 3, 4):
        z = mm(h, params[f"w{i}"]) + params[f"b{i}"]
        mean = jnp.mean(z, axis=0, keepdims=True)
        var = jnp.mean((z - mean) ** 2, axis=0, keepdims=True)   # biased, train mode
        zn = (z - mean) * jax.lax.rsqrt(var + 0.8)
        h = _leaky(zn * params[f"g{i}"] + params[f"be{i}"])
    out = mm(h, params["w5"]) + params["b5"]
    return out.reshape(noise.shape[0], *img_shape)


if __name__ == "__main__":
    latent_dim = 16
    n_classes = 8
    img_shape = (1, 32, 32)   # (channels, img_size, img_size) -> out_dim = 1024
    batch = 8

    key = jax.random.PRNGKey(0)
    k_params, k_noise, k_labels = jax.random.split(key, 3)

    params = init_params(k_params, latent_dim, n_classes, img_shape)
    # tile_n=512 -> 2 streamed w5 tiles even at toy size (exercises the streaming
    # path); at real out_dims the default (2048) picks VMEM-safe lane-dense tiles.
    prepared = prepare_params(params, img_shape, tile_n=512)

    noise = jax.random.normal(k_noise, (batch, latent_dim), jnp.float32)
    labels = jax.random.randint(k_labels, (batch,), 0, n_classes, jnp.int32)

    img = jax.block_until_ready(generator_forward(noise, labels, prepared, img_shape))
    ref = jax.block_until_ready(_reference_forward(noise, labels, params, img_shape))

    assert img.shape == (batch, *img_shape), img.shape
    np.testing.assert_allclose(np.asarray(img), np.asarray(ref), rtol=2e-3, atol=2e-3)
    print("KERNEL_OK")
</pallas_src>

<mosaic_0001>
module attributes {stable_mosaic.version = 11 : i64} {
  func.func @hidden_stack_kernel(%arg0: i32, %arg1: memref<8x1xi32, #tpu.memory_space<vmem>>, %arg2: memref<8x16xf32, #tpu.memory_space<vmem>>, %arg3: memref<8x8xf32, #tpu.memory_space<vmem>>, %arg4: memref<8x128xbf16, #tpu.memory_space<vmem>>, %arg5: memref<16x128xbf16, #tpu.memory_space<vmem>>, %arg6: memref<1x128xf32, #tpu.memory_space<vmem>>, %arg7: memref<128x256xbf16, #tpu.memory_space<vmem>>, %arg8: memref<1x256xf32, #tpu.memory_space<vmem>>, %arg9: memref<1x256xf32, #tpu.memory_space<vmem>>, %arg10: memref<1x256xf32, #tpu.memory_space<vmem>>, %arg11: memref<256x512xbf16, #tpu.memory_space<vmem>>, %arg12: memref<1x512xf32, #tpu.memory_space<vmem>>, %arg13: memref<1x512xf32, #tpu.memory_space<vmem>>, %arg14: memref<1x512xf32, #tpu.memory_space<vmem>>, %arg15: memref<512x1024xbf16, #tpu.memory_space<vmem>>, %arg16: memref<1x1024xf32, #tpu.memory_space<vmem>>, %arg17: memref<1x1024xf32, #tpu.memory_space<vmem>>, %arg18: memref<1x1024xf32, #tpu.memory_space<vmem>>, %arg19: memref<8x1024xbf16, #tpu.memory_space<vmem>>) attributes {dimension_semantics = [#tpu.dimension_semantics<arbitrary>], iteration_bounds = array<i64: 1>, scalar_prefetch = 0 : i64, scratch_operands = 0 : i64, tpu.core_type = #tpu.core_type<tc>, window_params = [{pipeline_mode = #tpu.pipeline_mode<synchronous>, transform_indices = @transform_0, window_bounds = array<i64: 8, 1>}, {pipeline_mode = #tpu.pipeline_mode<synchronous>, transform_indices = @transform_1, window_bounds = array<i64: 8, 16>}, {pipeline_mode = #tpu.pipeline_mode<synchronous>, transform_indices = @transform_2, window_bounds = array<i64: 8, 8>}, {pipeline_mode = #tpu.pipeline_mode<synchronous>, transform_indices = @transform_3, window_bounds = array<i64: 8, 128>}, {pipeline_mode = #tpu.pipeline_mode<synchronous>, transform_indices = @transform_4, window_bounds = array<i64: 16, 128>}, {pipeline_mode = #tpu.pipeline_mode<synchronous>, transform_indices = @transform_5, window_bounds = array<i64: 1, 128>}, {pipeline_mode = #tpu.pipeline_mode<synchronous>, transform_indices = @transform_6, window_bounds = array<i64: 128, 256>}, {pipeline_mode = #tpu.pipeline_mode<synchronous>, transform_indices = @transform_7, window_bounds = array<i64: 1, 256>}, {pipeline_mode = #tpu.pipeline_mode<synchronous>, transform_indices = @transform_8, window_bounds = array<i64: 1, 256>}, {pipeline_mode = #tpu.pipeline_mode<synchronous>, transform_indices = @transform_9, window_bounds = array<i64: 1, 256>}, {pipeline_mode = #tpu.pipeline_mode<synchronous>, transform_indices = @transform_10, window_bounds = array<i64: 256, 512>}, {pipeline_mode = #tpu.pipeline_mode<synchronous>, transform_indices = @transform_11, window_bounds = array<i64: 1, 512>}, {pipeline_mode = #tpu.pipeline_mode<synchronous>, transform_indices = @transform_12, window_bounds = array<i64: 1, 512>}, {pipeline_mode = #tpu.pipeline_mode<synchronous>, transform_indices = @transform_13, window_bounds = array<i64: 1, 512>}, {pipeline_mode = #tpu.pipeline_mode<synchronous>, transform_indices = @transform_14, window_bounds = array<i64: 512, 1024>}, {pipeline_mode = #tpu.pipeline_mode<synchronous>, transform_indices = @transform_15, window_bounds = array<i64: 1, 1024>}, {pipeline_mode = #tpu.pipeline_mode<synchronous>, transform_indices = @transform_16, window_bounds = array<i64: 1, 1024>}, {pipeline_mode = #tpu.pipeline_mode<synchronous>, transform_indices = @transform_17, window_bounds = array<i64: 1, 1024>}, {pipeline_mode = #tpu.pipeline_mode<synchronous>, transform_indices = @transform_18, window_bounds = array<i64: 8, 1024>}]} {
    %c0 = arith.constant 0 : index
    %c0_0 = arith.constant 0 : index
    %0 = vector.load %arg1[%c0, %c0_0] : memref<8x1xi32, #tpu.memory_space<vmem>>, vector<8x1xi32>
    %1 = tpu.iota {dimensions = array<i32: 1>} : vector<8x8xi32>
    %2 = vector.broadcast %0 : vector<8x1xi32> to vector<8x8xi32>
    %3 = arith.cmpi eq, %2, %1 : vector<8x8xi32>
    %4 = arith.extui %3 : vector<8x8xi1> to vector<8x8xi32>
    %5 = arith.sitofp %4 : vector<8x8xi32> to vector<8x8xf32>
    %c0_1 = arith.constant 0 : index
    %c0_2 = arith.constant 0 : index
    %6 = vector.load %arg3[%c0_1, %c0_2] : memref<8x8xf32, #tpu.memory_space<vmem>>, vector<8x8xf32>
    %cst = arith.constant dense<0.000000e+00> : vector<8x8xf32>
    %7 = tpu.matmul %5, %6, %cst {dimension_numbers = #tpu.dot_dimension_numbers<[1], [0], [0], [1], [0, 0, 1, 1], [], []>} : vector<8x8xf32>, vector<8x8xf32>, vector<8x8xf32> -> vector<8x8xf32>
    %8 = arith.truncf %7 : vector<8x8xf32> to vector<8x8xbf16>
    %c0_3 = arith.constant 0 : index
    %c0_4 = arith.constant 0 : index
    %9 = vector.load %arg4[%c0_3, %c0_4] : memref<8x128xbf16, #tpu.memory_space<vmem>>, vector<8x128xbf16>
    %cst_5 = arith.constant dense<0.000000e+00> : vector<8x128xf32>
    %10 = tpu.matmul %8, %9, %cst_5 {dimension_numbers = #tpu.dot_dimension_numbers<[1], [0], [0], [1], [0, 0, 1, 1], [], []>} : vector<8x8xbf16>, vector<8x128xbf16>, vector<8x128xf32> -> vector<8x128xf32>
    %c0_6 = arith.constant 0 : index
    %c0_7 = arith.constant 0 : index
    %11 = vector.load %arg2[%c0_6, %c0_7] : memref<8x16xf32, #tpu.memory_space<vmem>>, vector<8x16xf32>
    %12 = arith.truncf %11 : vector<8x16xf32> to vector<8x16xbf16>
    %c0_8 = arith.constant 0 : index
    %c0_9 = arith.constant 0 : index
    %13 = vector.load %arg5[%c0_8, %c0_9] : memref<16x128xbf16, #tpu.memory_space<vmem>>, vector<16x128xbf16>
    %cst_10 = arith.constant dense<0.000000e+00> : vector<8x128xf32>
    %14 = tpu.matmul %12, %13, %cst_10 {dimension_numbers = #tpu.dot_dimension_numbers<[1], [0], [0], [1], [0, 0, 1, 1], [], []>} : vector<8x16xbf16>, vector<16x128xbf16>, vector<8x128xf32> -> vector<8x128xf32>
    %15 = arith.addf %10, %14 : vector<8x128xf32>
    %c0_11 = arith.constant 0 : index
    %c0_12 = arith.constant 0 : index
    %16 = vector.load %arg6[%c0_11, %c0_12] : memref<1x128xf32, #tpu.memory_space<vmem>>, vector<1x128xf32>
    %17 = vector.broadcast %16 : vector<1x128xf32> to vector<8x128xf32>
    %18 = arith.addf %15, %17 : vector<8x128xf32>
    %cst_13 = arith.constant 0.000000e+00 : f32
    %19 = vector.broadcast %cst_13 : f32 to vector<8x128xf32>
    %20 = arith.cmpf oge, %18, %19 : vector<8x128xf32>
    %cst_14 = arith.constant 2.000000e-01 : f32
    %21 = vector.broadcast %cst_14 : f32 to vector<8x128xf32>
    %22 = arith.mulf %21, %18 : vector<8x128xf32>
    %23 = arith.select %20, %18, %22 : vector<8x128xi1>, vector<8x128xf32>
    %24 = arith.truncf %23 : vector<8x128xf32> to vector<8x128xbf16>
    %c0_15 = arith.constant 0 : index
    %c0_16 = arith.constant 0 : index
    %25 = vector.load %arg7[%c0_15, %c0_16] : memref<128x256xbf16, #tpu.memory_space<vmem>>, vector<128x256xbf16>
    %cst_17 = arith.constant dense<0.000000e+00> : vector<8x256xf32>
    %26 = tpu.matmul %24, %25, %cst_17 {dimension_numbers = #tpu.dot_dimension_numbers<[1], [0], [0], [1], [0, 0, 1, 1], [], []>} : vector<8x128xbf16>, vector<128x256xbf16>, vector<8x256xf32> -> vector<8x256xf32>
    %c0_18 = arith.constant 0 : index
    %c0_19 = arith.constant 0 : index
    %27 = vector.load %arg8[%c0_18, %c0_19] : memref<1x256xf32, #tpu.memory_space<vmem>>, vector<1x256xf32>
    %28 = vector.broadcast %27 : vector<1x256xf32> to vector<8x256xf32>
    %29 = arith.addf %26, %28 : vector<8x256xf32>
    %c0_20 = arith.constant 0 : index
    %c0_21 = arith.constant 0 : index
    %30 = vector.load %arg9[%c0_20, %c0_21] : memref<1x256xf32, #tpu.memory_space<vmem>>, vector<1x256xf32>
    %c0_22 = arith.constant 0 : index
    %c0_23 = arith.constant 0 : index
    %31 = vector.load %arg10[%c0_22, %c0_23] : memref<1x256xf32, #tpu.memory_space<vmem>>, vector<1x256xf32>
    %cst_24 = arith.constant dense<0.000000e+00> : vector<256xf32>
    %32 = vector.multi_reduction <add>, %29, %cst_24 [0] : vector<8x256xf32> to vector<256xf32>
    %33 = vector.shape_cast %32 : vector<256xf32> to vector<1x256xf32>
    %cst_25 = arith.constant 8.000000e+00 : f32
    %34 = vector.broadcast %cst_25 : f32 to vector<1x256xf32>
    %35 = arith.divf %33, %34 : vector<1x256xf32>
    %36 = vector.broadcast %35 : vector<1x256xf32> to vector<8x256xf32>
    %37 = arith.subf %29, %36 : vector<8x256xf32>
    %38 = arith.mulf %37, %37 : vector<8x256xf32>
    %cst_26 = arith.constant dense<0.000000e+00> : vector<256xf32>
    %39 = vector.multi_reduction <add>, %38, %cst_26 [0] : vector<8x256xf32> to vector<256xf32>
    %40 = vector.shape_cast %39 : vector<256xf32> to vector<1x256xf32>
    %cst_27 = arith.constant 8.000000e+00 : f32
    %41 = vector.broadcast %cst_27 : f32 to vector<1x256xf32>
    %42 = arith.divf %40, %41 : vector<1x256xf32>
    %cst_28 = arith.constant 8.000000e-01 : f32
    %43 = vector.broadcast %cst_28 : f32 to vector<1x256xf32>
    %44 = arith.addf %42, %43 : vector<1x256xf32>
    %45 = math.rsqrt %44 : vector<1x256xf32>
    %46 = arith.mulf %30, %45 : vector<1x256xf32>
    %47 = vector.broadcast %46 : vector<1x256xf32> to vector<8x256xf32>
    %48 = arith.mulf %37, %47 : vector<8x256xf32>
    %49 = vector.broadcast %31 : vector<1x256xf32> to vector<8x256xf32>
    %50 = arith.addf %48, %49 : vector<8x256xf32>
    %cst_29 = arith.constant 0.000000e+00 : f32
    %51 = vector.broadcast %cst_29 : f32 to vector<8x256xf32>
    %52 = arith.cmpf oge, %50, %51 : vector<8x256xf32>
    %cst_30 = arith.constant 2.000000e-01 : f32
    %53 = vector.broadcast %cst_30 : f32 to vector<8x256xf32>
    %54 = arith.mulf %53, %50 : vector<8x256xf32>
    %55 = arith.select %52, %50, %54 : vector<8x256xi1>, vector<8x256xf32>
    %56 = arith.truncf %55 : vector<8x256xf32> to vector<8x256xbf16>
    %c0_31 = arith.constant 0 : index
    %c0_32 = arith.constant 0 : index
    %57 = vector.load %arg11[%c0_31, %c0_32] : memref<256x512xbf16, #tpu.memory_space<vmem>>, vector<256x512xbf16>
    %cst_33 = arith.constant dense<0.000000e+00> : vector<8x512xf32>
    %58 = tpu.matmul %56, %57, %cst_33 {dimension_numbers = #tpu.dot_dimension_numbers<[1], [0], [0], [1], [0, 0, 1, 1], [], []>} : vector<8x256xbf16>, vector<256x512xbf16>, vector<8x512xf32> -> vector<8x512xf32>
    %c0_34 = arith.constant 0 : index
    %c0_35 = arith.constant 0 : index
    %59 = vector.load %arg12[%c0_34, %c0_35] : memref<1x512xf32, #tpu.memory_space<vmem>>, vector<1x512xf32>
    %60 = vector.broadcast %59 : vector<1x512xf32> to vector<8x512xf32>
    %61 = arith.addf %58, %60 : vector<8x512xf32>
    %c0_36 = arith.constant 0 : index
    %c0_37 = arith.constant 0 : index
    %62 = vector.load %arg13[%c0_36, %c0_37] : memref<1x512xf32, #tpu.memory_space<vmem>>, vector<1x512xf32>
    %c0_38 = arith.constant 0 : index
    %c0_39 = arith.constant 0 : index
    %63 = vector.load %arg14[%c0_38, %c0_39] : memref<1x512xf32, #tpu.memory_space<vmem>>, vector<1x512xf32>
    %cst_40 = arith.constant dense<0.000000e+00> : vector<512xf32>
    %64 = vector.multi_reduction <add>, %61, %cst_40 [0] : vector<8x512xf32> to vector<512xf32>
    %65 = vector.shape_cast %64 : vector<512xf32> to vector<1x512xf32>
    %cst_41 = arith.constant 8.000000e+00 : f32
    %66 = vector.broadcast %cst_41 : f32 to vector<1x512xf32>
    %67 = arith.divf %65, %66 : vector<1x512xf32>
    %68 = vector.broadcast %67 : vector<1x512xf32> to vector<8x512xf32>
    %69 = arith.subf %61, %68 : vector<8x512xf32>
    %70 = arith.mulf %69, %69 : vector<8x512xf32>
    %cst_42 = arith.constant dense<0.000000e+00> : vector<512xf32>
    %71 = vector.multi_reduction <add>, %70, %cst_42 [0] : vector<8x512xf32> to vector<512xf32>
    %72 = vector.shape_cast %71 : vector<512xf32> to vector<1x512xf32>
    %cst_43 = arith.constant 8.000000e+00 : f32
    %73 = vector.broadcast %cst_43 : f32 to vector<1x512xf32>
    %74 = arith.divf %72, %73 : vector<1x512xf32>
    %cst_44 = arith.constant 8.000000e-01 : f32
    %75 = vector.broadcast %cst_44 : f32 to vector<1x512xf32>
    %76 = arith.addf %74, %75 : vector<1x512xf32>
    %77 = math.rsqrt %76 : vector<1x512xf32>
    %78 = arith.mulf %62, %77 : vector<1x512xf32>
    %79 = vector.broadcast %78 : vector<1x512xf32> to vector<8x512xf32>
    %80 = arith.mulf %69, %79 : vector<8x512xf32>
    %81 = vector.broadcast %63 : vector<1x512xf32> to vector<8x512xf32>
    %82 = arith.addf %80, %81 : vector<8x512xf32>
    %cst_45 = arith.constant 0.000000e+00 : f32
    %83 = vector.broadcast %cst_45 : f32 to vector<8x512xf32>
    %84 = arith.cmpf oge, %82, %83 : vector<8x512xf32>
    %cst_46 = arith.constant 2.000000e-01 : f32
    %85 = vector.broadcast %cst_46 : f32 to vector<8x512xf32>
    %86 = arith.mulf %85, %82 : vector<8x512xf32>
    %87 = arith.select %84, %82, %86 : vector<8x512xi1>, vector<8x512xf32>
    %88 = arith.truncf %87 : vector<8x512xf32> to vector<8x512xbf16>
    %c0_47 = arith.constant 0 : index
    %c0_48 = arith.constant 0 : index
    %89 = vector.load %arg15[%c0_47, %c0_48] : memref<512x1024xbf16, #tpu.memory_space<vmem>>, vector<512x1024xbf16>
    %cst_49 = arith.constant dense<0.000000e+00> : vector<8x1024xf32>
    %90 = tpu.matmul %88, %89, %cst_49 {dimension_numbers = #tpu.dot_dimension_numbers<[1], [0], [0], [1], [0, 0, 1, 1], [], []>} : vector<8x512xbf16>, vector<512x1024xbf16>, vector<8x1024xf32> -> vector<8x1024xf32>
    %c0_50 = arith.constant 0 : index
    %c0_51 = arith.constant 0 : index
    %91 = vector.load %arg16[%c0_50, %c0_51] : memref<1x1024xf32, #tpu.memory_space<vmem>>, vector<1x1024xf32>
    %92 = vector.broadcast %91 : vector<1x1024xf32> to vector<8x1024xf32>
    %93 = arith.addf %90, %92 : vector<8x1024xf32>
    %c0_52 = arith.constant 0 : index
    %c0_53 = arith.constant 0 : index
    %94 = vector.load %arg17[%c0_52, %c0_53] : memref<1x1024xf32, #tpu.memory_space<vmem>>, vector<1x1024xf32>
    %c0_54 = arith.constant 0 : index
    %c0_55 = arith.constant 0 : index
    %95 = vector.load %arg18[%c0_54, %c0_55] : memref<1x1024xf32, #tpu.memory_space<vmem>>, vector<1x1024xf32>
    %cst_56 = arith.constant dense<0.000000e+00> : vector<1024xf32>
    %96 = vector.multi_reduction <add>, %93, %cst_56 [0] : vector<8x1024xf32> to vector<1024xf32>
    %97 = vector.shape_cast %96 : vector<1024xf32> to vector<1x1024xf32>
    %cst_57 = arith.constant 8.000000e+00 : f32
    %98 = vector.broadcast %cst_57 : f32 to vector<1x1024xf32>
    %99 = arith.divf %97, %98 : vector<1x1024xf32>
    %100 = vector.broadcast %99 : vector<1x1024xf32> to vector<8x1024xf32>
    %101 = arith.subf %93, %100 : vector<8x1024xf32>
    %102 = arith.mulf %101, %101 : vector<8x1024xf32>
    %cst_58 = arith.constant dense<0.000000e+00> : vector<1024xf32>
    %103 = vector.multi_reduction <add>, %102, %cst_58 [0] : vector<8x1024xf32> to vector<1024xf32>
    %104 = vector.shape_cast %103 : vector<1024xf32> to vector<1x1024xf32>
    %cst_59 = arith.constant 8.000000e+00 : f32
    %105 = vector.broadcast %cst_59 : f32 to vector<1x1024xf32>
    %106 = arith.divf %104, %105 : vector<1x1024xf32>
    %cst_60 = arith.constant 8.000000e-01 : f32
    %107 = vector.broadcast %cst_60 : f32 to vector<1x1024xf32>
    %108 = arith.addf %106, %107 : vector<1x1024xf32>
    %109 = math.rsqrt %108 : vector<1x1024xf32>
    %110 = arith.mulf %94, %109 : vector<1x1024xf32>
    %111 = vector.broadcast %110 : vector<1x1024xf32> to vector<8x1024xf32>
    %112 = arith.mulf %101, %111 : vector<8x1024xf32>
    %113 = vector.broadcast %95 : vector<1x1024xf32> to vector<8x1024xf32>
    %114 = arith.addf %112, %113 : vector<8x1024xf32>
    %cst_61 = arith.constant 0.000000e+00 : f32
    %115 = vector.broadcast %cst_61 : f32 to vector<8x1024xf32>
    %116 = arith.cmpf oge, %114, %115 : vector<8x1024xf32>
    %cst_62 = arith.constant 2.000000e-01 : f32
    %117 = vector.broadcast %cst_62 : f32 to vector<8x1024xf32>
    %118 = arith.mulf %117, %114 : vector<8x1024xf32>
    %119 = arith.select %116, %114, %118 : vector<8x1024xi1>, vector<8x1024xf32>
    %120 = arith.truncf %119 : vector<8x1024xf32> to vector<8x1024xbf16>
    %c0_63 = arith.constant 0 : index
    %c0_64 = arith.constant 0 : index
    %121 = vector.load %arg19[%c0_63, %c0_64] : memref<8x1024xbf16, #tpu.memory_space<vmem>>, vector<8x1024xbf16>
    tpu.vector_store %arg19[%c0_63, %c0_64], %120 {strides = array<i32>} : memref<8x1024xbf16, #tpu.memory_space<vmem>>, vector<8x1024xbf16>,
    return
  }
  func.func @transform_0(%arg0: i32) -> (i32, i32) {
    %c0_i32 = arith.constant 0 : i32
    %c0_i32_0 = arith.constant 0 : i32
    %c0_i32_1 = arith.constant 0 : i32
    return %c0_i32, %c0_i32_0 : i32, i32
  }
  func.func @transform_1(%arg0: i32) -> (i32, i32) {
    %c0_i32 = arith.constant 0 : i32
    %c0_i32_0 = arith.constant 0 : i32
    %c0_i32_1 = arith.constant 0 : i32
    return %c0_i32, %c0_i32_0 : i32, i32
  }
  func.func @transform_2(%arg0: i32) -> (i32, i32) {
    %c0_i32 = arith.constant 0 : i32
    %c0_i32_0 = arith.constant 0 : i32
    %c0_i32_1 = arith.constant 0 : i32
    return %c0_i32, %c0_i32_0 : i32, i32
  }
  func.func @transform_3(%arg0: i32) -> (i32, i32) {
    %c0_i32 = arith.constant 0 : i32
    %c0_i32_0 = arith.constant 0 : i32
    %c0_i32_1 = arith.constant 0 : i32
    return %c0_i32, %c0_i32_0 : i32, i32
  }
  func.func @transform_4(%arg0: i32) -> (i32, i32) {
    %c0_i32 = arith.constant 0 : i32
    %c0_i32_0 = arith.constant 0 : i32
    %c0_i32_1 = arith.constant 0 : i32
    return %c0_i32, %c0_i32_0 : i32, i32
  }
  func.func @transform_5(%arg0: i32) -> (i32, i32) {
    %c0_i32 = arith.constant 0 : i32
    %c0_i32_0 = arith.constant 0 : i32
    %c0_i32_1 = arith.constant 0 : i32
    return %c0_i32, %c0_i32_0 : i32, i32
  }
  func.func @transform_6(%arg0: i32) -> (i32, i32) {
    %c0_i32 = arith.constant 0 : i32
    %c0_i32_0 = arith.constant 0 : i32
    %c0_i32_1 = arith.constant 0 : i32
    return %c0_i32, %c0_i32_0 : i32, i32
  }
  func.func @transform_7(%arg0: i32) -> (i32, i32) {
    %c0_i32 = arith.constant 0 : i32
    %c0_i32_0 = arith.constant 0 : i32
    %c0_i32_1 = arith.constant 0 : i32
    return %c0_i32, %c0_i32_0 : i32, i32
  }
  func.func @transform_8(%arg0: i32) -> (i32, i32) {
    %c0_i32 = arith.constant 0 : i32
    %c0_i32_0 = arith.constant 0 : i32
    %c0_i32_1 = arith.constant 0 : i32
    return %c0_i32, %c0_i32_0 : i32, i32
  }
  func.func @transform_9(%arg0: i32) -> (i32, i32) {
    %c0_i32 = arith.constant 0 : i32
    %c0_i32_0 = arith.constant 0 : i32
    %c0_i32_1 = arith.constant 0 : i32
    return %c0_i32, %c0_i32_0 : i32, i32
  }
  func.func @transform_10(%arg0: i32) -> (i32, i32) {
    %c0_i32 = arith.constant 0 : i32
    %c0_i32_0 = arith.constant 0 : i32
    %c0_i32_1 = arith.constant 0 : i32
    return %c0_i32, %c0_i32_0 : i32, i32
  }
  func.func @transform_11(%arg0: i32) -> (i32, i32) {
    %c0_i32 = arith.constant 0 : i32
    %c0_i32_0 = arith.constant 0 : i32
    %c0_i32_1 = arith.constant 0 : i32
    return %c0_i32, %c0_i32_0 : i32, i32
  }
  func.func @transform_12(%arg0: i32) -> (i32, i32) {
    %c0_i32 = arith.constant 0 : i32
    %c0_i32_0 = arith.constant 0 : i32
    %c0_i32_1 = arith.constant 0 : i32
    return %c0_i32, %c0_i32_0 : i32, i32
  }
  func.func @transform_13(%arg0: i32) -> (i32, i32) {
    %c0_i32 = arith.constant 0 : i32
    %c0_i32_0 = arith.constant 0 : i32
    %c0_i32_1 = arith.constant 0 : i32
    return %c0_i32, %c0_i32_0 : i32, i32
  }
  func.func @transform_14(%arg0: i32) -> (i32, i32) {
    %c0_i32 = arith.constant 0 : i32
    %c0_i32_0 = arith.constant 0 : i32
    %c0_i32_1 = arith.constant 0 : i32
    return %c0_i32, %c0_i32_0 : i32, i32
  }
  func.func @transform_15(%arg0: i32) -> (i32, i32) {
    %c0_i32 = arith.constant 0 : i32
    %c0_i32_0 = arith.constant 0 : i32
    %c0_i32_1 = arith.constant 0 : i32
    return %c0_i32, %c0_i32_0 : i32, i32
  }
  func.func @transform_16(%arg0: i32) -> (i32, i32) {
    %c0_i32 = arith.constant 0 : i32
    %c0_i32_0 = arith.constant 0 : i32
    %c0_i32_1 = arith.constant 0 : i32
    return %c0_i32, %c0_i32_0 : i32, i32
  }
  func.func @transform_17(%arg0: i32) -> (i32, i32) {
    %c0_i32 = arith.constant 0 : i32
    %c0_i32_0 = arith.constant 0 : i32
    %c0_i32_1 = arith.constant 0 : i32
    return %c0_i32, %c0_i32_0 : i32, i32
  }
  func.func @transform_18(%arg0: i32) -> (i32, i32) {
    %c0_i32 = arith.constant 0 : i32
    %c0_i32_0 = arith.constant 0 : i32
    %c0_i32_1 = arith.constant 0 : i32
    return %c0_i32, %c0_i32_0 : i32, i32
  }
}

</mosaic_0001>

<llo_original>
// kernel: tpu_custom_call.1
$region0: #{tpu_custom_call.1}
  #allocation0 [shape = 'u32[]', space=smem, size = 0x4, offset = 0x4, fixed_abs, tag = 'smem constant byte address 0x4 - core index']
  #allocation1 [shape = 'u32[144,128]{1,0:T(1,128)}', space=vmem, size = 0x12000, scoped, tag = 'internal scratch']
  %s0 = inlined_call_operand.vmem [shape: s32[8,1], index: 0, kind: input, shape index: {}]
  %s1 = inlined_call_operand.vmem [shape: f32[8,16], index: 1, kind: input, shape index: {}]
  %s2 = inlined_call_operand.hbm [shape: f32[8,8], index: 2, kind: input, shape index: {}]
  %s3 = inlined_call_operand.hbm [shape: bf16[8,128], index: 3, kind: input, shape index: {}]
  %s4 = inlined_call_operand.vmem [shape: bf16[16,128], index: 4, kind: input, shape index: {}]
  %s5 = inlined_call_operand.hbm [shape: f32[1,128], index: 5, kind: input, shape index: {}]
  %s6 = inlined_call_operand.hbm [shape: bf16[128,256], index: 6, kind: input, shape index: {}]
  %s7 = inlined_call_operand.hbm [shape: f32[1,256], index: 7, kind: input, shape index: {}]
  %s8 = inlined_call_operand.hbm [shape: f32[1,256], index: 8, kind: input, shape index: {}]
  %s9 = inlined_call_operand.hbm [shape: f32[1,256], index: 9, kind: input, shape index: {}]
  %s10 = inlined_call_operand.hbm [shape: bf16[256,512], index: 10, kind: input, shape index: {}]
  %s11 = inlined_call_operand.hbm [shape: f32[1,512], index: 11, kind: input, shape index: {}]
  %s12 = inlined_call_operand.hbm [shape: f32[1,512], index: 12, kind: input, shape index: {}]
  %s13 = inlined_call_operand.hbm [shape: f32[1,512], index: 13, kind: input, shape index: {}]
  %s14 = inlined_call_operand.hbm [shape: bf16[512,1024], index: 14, kind: input, shape index: {}]
  %s15 = inlined_call_operand.vmem [shape: f32[1,1024], index: 15, kind: input, shape index: {}]
  %s16 = inlined_call_operand.vmem [shape: f32[1,1024], index: 16, kind: input, shape index: {}]
  %s17 = inlined_call_operand.vmem [shape: f32[1,1024], index: 17, kind: input, shape index: {}]
  %s18 = inlined_call_operand.hbm [shape: bf16[8,1024], index: 18, kind: output, shape index: {}]
  %s19 = sld [smem:[#allocation0]]
  $region130: #{tpu_custom_call.1} parent=0
    _
  %s21 = ssub.s32 1, %s19
  %s22 = scalar_select 0, %s21, %s19
  $region1: #{tpu_custom_call.1} parent=0
    #allocation2 [shape = 'u8[4096]{0}', space=vmem, size = 0x1000, scoped, tag = 'input window, operand 2, single buffered']
    #allocation3 [shape = 's32[1]{0}', space=sflag, size = 0x4, scoped, tag = 'scoped memory for tpu_custom_call.1']
    #allocation4 [shape = 's32[1]{0}', space=sflag, size = 0x4, scoped, tag = 'scoped memory for tpu_custom_call.1']
    #allocation5 [shape = 'u8[2048]{0}', space=vmem, size = 0x800, scoped, tag = 'input window, operand 3, single buffered']
    #allocation6 [shape = 's32[1]{0}', space=sflag, size = 0x4, scoped, tag = 'scoped memory for tpu_custom_call.1']
    #allocation7 [shape = 'u8[512]{0}', space=vmem, size = 0x400, scoped, tag = 'input window, operand 5, single buffered']
    #allocation8 [shape = 'u8[65536]{0}', space=vmem, size = 0x10000, scoped, tag = 'input window, operand 6, single buffered']
    #allocation9 [shape = 's32[1]{0}', space=sflag, size = 0x4, scoped, tag = 'scoped memory for tpu_custom_call.1']
    #allocation10 [shape = 'u8[1024]{0}', space=vmem, size = 0x400, scoped, tag = 'input window, operand 7, single buffered']
    #allocation11 [shape = 'u8[1024]{0}', space=vmem, size = 0x400, scoped, tag = 'input window, operand 8, single buffered']
    #allocation12 [shape = 's32[1]{0}', space=sflag, size = 0x4, scoped, tag = 'scoped memory for tpu_custom_call.1']
    #allocation13 [shape = 'u8[1024]{0}', space=vmem, size = 0x400, scoped, tag = 'input window, operand 9, single buffered']
    #allocation14 [shape = 'u8[262144]{0}', space=vmem, size = 0x40000, scoped, tag = 'input window, operand 10, single buffered']
    #allocation15 [shape = 's32[1]{0}', space=sflag, size = 0x4, scoped, tag = 'scoped memory for tpu_custom_call.1']
    #allocation16 [shape = 'u8[2048]{0}', space=vmem, size = 0x800, scoped, tag = 'input window, operand 11, single buffered']
    #allocation17 [shape = 'u8[2048]{0}', space=vmem, size = 0x800, scoped, tag = 'input window, operand 12, single buffered']
    #allocation18 [shape = 's32[1]{0}', space=sflag, size = 0x4, scoped, tag = 'scoped memory for tpu_custom_call.1']
    #allocation19 [shape = 'u8[2048]{0}', space=vmem, size = 0x800, scoped, tag = 'input window, operand 13, single buffered']
    #allocation20 [shape = 'u8[1048576]{0}', space=vmem, size = 0x100000, scoped, tag = 'input window, operand 14, single buffered']
    #allocation21 [shape = 's32[1]{0}', space=sflag, size = 0x4, scoped, tag = 'scoped memory for tpu_custom_call.1']
    #allocation22 [shape = 'u8[16384]{0}', space=vmem, size = 0x4000, scoped, tag = 'output window, operand 0, single buffered']
    %23 = vsyncpa [#allocation3], 0
    %24 = vsyncpa [#allocation6], 0
    %25 = vsyncpa [#allocation9], 0
    %26 = vsyncpa [#allocation12], 0
    %27 = vsyncpa [#allocation15], 0
    %28 = vsyncpa [#allocation18], 0
    %29 = vsyncpa [#allocation21], 0
    %30 = vsyncpa [#allocation4], 0
    // Predicated region
    $region2: #{tpu_custom_call.1} parent=1 // pred_check
      _
    $region3: #{tpu_custom_call.1} parent=1 // pred_check_branch
      %32 = sbr.rel (0) target = $region5
    $region4: #{tpu_custom_call.1} parent=1 // pred_region
      _
    $region5: #{tpu_custom_call.1} parent=1 // pred_fallthru
      _
    // Predicated region
    $region6: #{tpu_custom_call.1} parent=1 // pred_check
      _
    $region7: #{tpu_custom_call.1} parent=1 // pred_check_branch
      %34 = sbr.rel (0) target = $region9
    $region8: #{tpu_custom_call.1} parent=1 // pred_region
      _
    $region9: #{tpu_custom_call.1} parent=1 // pred_fallthru
      _
    // Predicated region
    $region10: #{tpu_custom_call.1} parent=1 // pred_check
      _
    $region11: #{tpu_custom_call.1} parent=1 // pred_check_branch
      %36 = sbr.rel (0) target = $region13
    $region12: #{tpu_custom_call.1} parent=1 // pred_region
      %s38 = ssub.s32 128, 128
      %39 = vsyncadd [#allocation3], %s38
      %s41 = sshll.u32 [#allocation2], 4
      %s42 = int_to_ptr.vmem [resolvable:$true] %s41
      %44 = dma.hbm_to_vmem [thread:$0]  %s2, 128, %s42, [#allocation3]
    $region13: #{tpu_custom_call.1} parent=1 // pred_fallthru
      _
    // Predicated region
    $region14: #{tpu_custom_call.1} parent=1 // pred_check
      _
    $region15: #{tpu_custom_call.1} parent=1 // pred_check_branch
      %46 = sbr.rel (0) target = $region17
    $region16: #{tpu_custom_call.1} parent=1 // pred_region
      %s48 = ssub.s32 64, 64
      %49 = vsyncadd [#allocation6], %s48
      %s51 = sshll.u32 [#allocation5], 4
      %s52 = int_to_ptr.vmem [resolvable:$true] %s51
      %54 = dma.hbm_to_vmem [thread:$0]  %s3, 64, %s52, [#allocation6]
    $region17: #{tpu_custom_call.1} parent=1 // pred_fallthru
      _
    // Predicated region
    $region18: #{tpu_custom_call.1} parent=1 // pred_check
      _
    $region19: #{tpu_custom_call.1} parent=1 // pred_check_branch
      %56 = sbr.rel (0) target = $region21
    $region20: #{tpu_custom_call.1} parent=1 // pred_region
      _
    $region21: #{tpu_custom_call.1} parent=1 // pred_fallthru
      _
    // Predicated region
    $region22: #{tpu_custom_call.1} parent=1 // pred_check
      _
    $region23: #{tpu_custom_call.1} parent=1 // pred_check_branch
      %58 = sbr.rel (0) target = $region25
    $region24: #{tpu_custom_call.1} parent=1 // pred_region
      %s60 = ssub.s32 16, 16
      %61 = vsyncadd [#allocation6], %s60
      %s63 = sshll.u32 [#allocation7], 4
      %s64 = int_to_ptr.vmem [resolvable:$true] %s63
      %66 = dma.hbm_to_vmem [thread:$0]  %s5, 16, %s64, [#allocation6]
    $region25: #{tpu_custom_call.1} parent=1 // pred_fallthru
      _
    // Predicated region
    $region26: #{tpu_custom_call.1} parent=1 // pred_check
      _
    $region27: #{tpu_custom_call.1} parent=1 // pred_check_branch
      %68 = sbr.rel (0) target = $region29
    $region28: #{tpu_custom_call.1} parent=1 // pred_region
      %s70 = ssub.s32 2048, 2048
      %71 = vsyncadd [#allocation9], %s70
      %s72 = sshll.u32 [#allocation8], 4
      %s73 = int_to_ptr.vmem [resolvable:$true] %s72
      %78 = dma.hbm_to_vmem [thread:$0]  %s6, 2048, %s73, [#allocation9], 128, 128, 8
    $region29: #{tpu_custom_call.1} parent=1 // pred_fallthru
      _
    // Predicated region
    $region30: #{tpu_custom_call.1} parent=1 // pred_check
      _
    $region31: #{tpu_custom_call.1} parent=1 // pred_check_branch
      %80 = sbr.rel (0) target = $region33
    $region32: #{tpu_custom_call.1} parent=1 // pred_region
      %s82 = ssub.s32 32, 32
      %83 = vsyncadd [#allocation9], %s82
      %s85 = sshll.u32 [#allocation10], 4
      %s86 = int_to_ptr.vmem [resolvable:$true] %s85
      %88 = dma.hbm_to_vmem [thread:$0]  %s7, 32, %s86, [#allocation9]
    $region33: #{tpu_custom_call.1} parent=1 // pred_fallthru
      _
    // Predicated region
    $region34: #{tpu_custom_call.1} parent=1 // pred_check
      _
    $region35: #{tpu_custom_call.1} parent=1 // pred_check_branch
      %90 = sbr.rel (0) target = $region37
    $region36: #{tpu_custom_call.1} parent=1 // pred_region
      %s92 = ssub.s32 32, 32
      %93 = vsyncadd [#allocation12], %s92
      %s95 = sshll.u32 [#allocation11], 4
      %s96 = int_to_ptr.vmem [resolvable:$true] %s95
      %98 = dma.hbm_to_vmem [thread:$0]  %s8, 32, %s96, [#allocation12]
    $region37: #{tpu_custom_call.1} parent=1 // pred_fallthru
      _
    // Predicated region
    $region38: #{tpu_custom_call.1} parent=1 // pred_check
      _
    $region39: #{tpu_custom_call.1} parent=1 // pred_check_branch
      %100 = sbr.rel (0) target = $region41
    $region40: #{tpu_custom_call.1} parent=1 // pred_region
      %s102 = ssub.s32 32, 32
      %103 = vsyncadd [#allocation12], %s102
      %s105 = sshll.u32 [#allocation13], 4
      %s106 = int_to_ptr.vmem [resolvable:$true] %s105
      %108 = dma.hbm_to_vmem [thread:$0]  %s9, 32, %s106, [#allocation12]
    $region41: #{tpu_custom_call.1} parent=1 // pred_fallthru
      _
    // Predicated region
    $region42: #{tpu_custom_call.1} parent=1 // pred_check
      _
    $region43: #{tpu_custom_call.1} parent=1 // pred_check_branch
      %110 = sbr.rel (0) target = $region45
    $region44: #{tpu_custom_call.1} parent=1 // pred_region
      %s112 = ssub.s32 8192, 8192
      %113 = vsyncadd [#allocation15], %s112
      %s114 = sshll.u32 [#allocation14], 4
      %s115 = int_to_ptr.vmem [resolvable:$true] %s114
      %120 = dma.hbm_to_vmem [thread:$0]  %s10, 8192, %s115, [#allocation15], 256, 256, 16
    $region45: #{tpu_custom_call.1} parent=1 // pred_fallthru
      _
    // Predicated region
    $region46: #{tpu_custom_call.1} parent=1 // pred_check
      _
    $region47: #{tpu_custom_call.1} parent=1 // pred_check_branch
      %122 = sbr.rel (0) target = $region49
    $region48: #{tpu_custom_call.1} parent=1 // pred_region
      %s124 = ssub.s32 64, 64
      %125 = vsyncadd [#allocation15], %s124
      %s127 = sshll.u32 [#allocation16], 4
      %s128 = int_to_ptr.vmem [resolvable:$true] %s127
      %130 = dma.hbm_to_vmem [thread:$0]  %s11, 64, %s128, [#allocation15]
    $region49: #{tpu_custom_call.1} parent=1 // pred_fallthru
      _
    // Predicated region
    $region50: #{tpu_custom_call.1} parent=1 // pred_check
      _
    $region51: #{tpu_custom_call.1} parent=1 // pred_check_branch
      %132 = sbr.rel (0) target = $region53
    $region52: #{tpu_custom_call.1} parent=1 // pred_region
      %s134 = ssub.s32 64, 64
      %135 = vsyncadd [#allocation18], %s134
      %s137 = sshll.u32 [#allocation17], 4
      %s138 = int_to_ptr.vmem [resolvable:$true] %s137
      %140 = dma.hbm_to_vmem [thread:$0]  %s12, 64, %s138, [#allocation18]
    $region53: #{tpu_custom_call.1} parent=1 // pred_fallthru
      _
    // Predicated region
    $region54: #{tpu_custom_call.1} parent=1 // pred_check
      _
    $region55: #{tpu_custom_call.1} parent=1 // pred_check_branch
      %142 = sbr.rel (0) target = $region57
    $region56: #{tpu_custom_call.1} parent=1 // pred_region
      %s144 = ssub.s32 64, 64
      %145 = vsyncadd [#allocation18], %s144
      %s147 = sshll.u32 [#allocation19], 4
      %s148 = int_to_ptr.vmem [resolvable:$true] %s147
      %150 = dma.hbm_to_vmem [thread:$0]  %s13, 64, %s148, [#allocation18]
    $region57: #{tpu_custom_call.1} parent=1 // pred_fallthru
      _
    // Predicated region
    $region58: #{tpu_custom_call.1} parent=1 // pred_check
      _
    $region59: #{tpu_custom_call.1} parent=1 // pred_check_branch
      %152 = sbr.rel (0) target = $region61
    $region60: #{tpu_custom_call.1} parent=1 // pred_region
      %s154 = ssub.s32 32768, 32768
      %155 = vsyncadd [#allocation21], %s154
      %s156 = sshll.u32 [#allocation20], 4
      %s157 = int_to_ptr.vmem [resolvable:$true] %s156
      %162 = dma.hbm_to_vmem [thread:$0]  %s14, 32768, %s157, [#allocation21], 512, 512, 32
    $region61: #{tpu_custom_call.1} parent=1 // pred_fallthru
      _
    // Predicated region
    $region62: #{tpu_custom_call.1} parent=1 // pred_check
      _
    $region63: #{tpu_custom_call.1} parent=1 // pred_check_branch
      %164 = sbr.rel (0) target = $region65
    $region64: #{tpu_custom_call.1} parent=1 // pred_region
      _
    $region65: #{tpu_custom_call.1} parent=1 // pred_fallthru
      _
    // Predicated region
    $region66: #{tpu_custom_call.1} parent=1 // pred_check
      _
    $region67: #{tpu_custom_call.1} parent=1 // pred_check_branch
      %166 = sbr.rel (0) target = $region69
    $region68: #{tpu_custom_call.1} parent=1 // pred_region
      _
    $region69: #{tpu_custom_call.1} parent=1 // pred_fallthru
      _
    // Predicated region
    $region70: #{tpu_custom_call.1} parent=1 // pred_check
      _
    $region71: #{tpu_custom_call.1} parent=1 // pred_check_branch
      %168 = sbr.rel (0) target = $region73
    $region72: #{tpu_custom_call.1} parent=1 // pred_region
      _
    $region73: #{tpu_custom_call.1} parent=1 // pred_fallthru
      _
    // Predicated region
    $region74: #{tpu_custom_call.1} parent=1 // pred_check
      _
    $region75: #{tpu_custom_call.1} parent=1 // pred_check_branch
      %170 = sbr.rel (0) target = $region77
    $region76: #{tpu_custom_call.1} parent=1 // pred_region
      %171 = dma.done [#allocation3], 128
    $region77: #{tpu_custom_call.1} parent=1 // pred_fallthru
      _
    // Predicated region
    $region78: #{tpu_custom_call.1} parent=1 // pred_check
      _
    $region79: #{tpu_custom_call.1} parent=1 // pred_check_branch
      %173 = sbr.rel (0) target = $region81
    $region80: #{tpu_custom_call.1} parent=1 // pred_region
      %174 = dma.done [#allocation6], 64
    $region81: #{tpu_custom_call.1} parent=1 // pred_fallthru
      _
    // Predicated region
    $region82: #{tpu_custom_call.1} parent=1 // pred_check
      _
    $region83: #{tpu_custom_call.1} parent=1 // pred_check_branch
      %176 = sbr.rel (0) target = $region85
    $region84: #{tpu_custom_call.1} parent=1 // pred_region
      %177 = dma.done [#allocation6], 16
    $region85: #{tpu_custom_call.1} parent=1 // pred_fallthru
      _
    // Predicated region
    $region86: #{tpu_custom_call.1} parent=1 // pred_check
      _
    $region87: #{tpu_custom_call.1} parent=1 // pred_check_branch
      %179 = sbr.rel (0) target = $region89
    $region88: #{tpu_custom_call.1} parent=1 // pred_region
      %180 = dma.done [#allocation9], 2048
    $region89: #{tpu_custom_call.1} parent=1 // pred_fallthru
      _
    // Predicated region
    $region90: #{tpu_custom_call.1} parent=1 // pred_check
      _
    $region91: #{tpu_custom_call.1} parent=1 // pred_check_branch
      %182 = sbr.rel (0) target = $region93
    $region92: #{tpu_custom_call.1} parent=1 // pred_region
      %183 = dma.done [#allocation9], 32
    $region93: #{tpu_custom_call.1} parent=1 // pred_fallthru
      _
    // Predicated region
    $region94: #{tpu_custom_call.1} parent=1 // pred_check
      _
    $region95: #{tpu_custom_call.1} parent=1 // pred_check_branch
      %185 = sbr.rel (0) target = $region97
    $region96: #{tpu_custom_call.1} parent=1 // pred_region
      %186 = dma.done [#allocation12], 32
    $region97: #{tpu_custom_call.1} parent=1 // pred_fallthru
      _
    // Predicated region
    $region98: #{tpu_custom_call.1} parent=1 // pred_check
      _
    $region99: #{tpu_custom_call.1} parent=1 // pred_check_branch
      %188 = sbr.rel (0) target = $region101
    $region100: #{tpu_custom_call.1} parent=1 // pred_region
      %189 = dma.done [#allocation12], 32
    $region101: #{tpu_custom_call.1} parent=1 // pred_fallthru
      _
    // Predicated region
    $region102: #{tpu_custom_call.1} parent=1 // pred_check
      _
    $region103: #{tpu_custom_call.1} parent=1 // pred_check_branch
      %191 = sbr.rel (0) target = $region105
    $region104: #{tpu_custom_call.1} parent=1 // pred_region
      %192 = dma.done [#allocation15], 8192
    $region105: #{tpu_custom_call.1} parent=1 // pred_fallthru
      _
    // Predicated region
    $region106: #{tpu_custom_call.1} parent=1 // pred_check
      _
    $region107: #{tpu_custom_call.1} parent=1 // pred_check_branch
      %194 = sbr.rel (0) target = $region109
    $region108: #{tpu_custom_call.1} parent=1 // pred_region
      %195 = dma.done [#allocation15], 64
    $region109: #{tpu_custom_call.1} parent=1 // pred_fallthru
      _
    // Predicated region
    $region110: #{tpu_custom_call.1} parent=1 // pred_check
      _
    $region111: #{tpu_custom_call.1} parent=1 // pred_check_branch
      %197 = sbr.rel (0) target = $region113
    $region112: #{tpu_custom_call.1} parent=1 // pred_region
      %198 = dma.done [#allocation18], 64
    $region113: #{tpu_custom_call.1} parent=1 // pred_fallthru
      _
    // Predicated region
    $region114: #{tpu_custom_call.1} parent=1 // pred_check
      _
    $region115: #{tpu_custom_call.1} parent=1 // pred_check_branch
      %200 = sbr.rel (0) target = $region117
    $region116: #{tpu_custom_call.1} parent=1 // pred_region
      %201 = dma.done [#allocation18], 64
    $region117: #{tpu_custom_call.1} parent=1 // pred_fallthru
      _
    // Predicated region
    $region118: #{tpu_custom_call.1} parent=1 // pred_check
      _
    $region119: #{tpu_custom_call.1} parent=1 // pred_check_branch
      %203 = sbr.rel (0) target = $region121
    $region120: #{tpu_custom_call.1} parent=1 // pred_region
      %204 = dma.done [#allocation21], 32768
    $region121: #{tpu_custom_call.1} parent=1 // pred_fallthru
      _
    %v206 = vld [vmem:[%s0] sm:$0xff]
    %v207 = vlaneseq
    %v208 = vand.u32 %v207, 127
    %209 = vset.pattern.permute.xlu0 0
    %210 = vperm.xlu0 %209, %v206
    %v211 = vpop.permute.xlu0 %210
    %vm212 = vcmp.eq.s32.totalorder %v211, %v208
    %v213 = vsel %vm212, 1, 0
    %v214 = vcvt.s32.f32 %v213
    %v215 = vld [vmem:[#allocation2] sm:$0xff]
    %vm216 = vcmask 64512
    %v218 = vsel %vm216, %v214, 0
    %220 = vmatprep.subr.mxu0 0.0
    %221 = vmatpush1.msra.mxu0 0.0
    %222 = vmatprep.subr.mxu0 0.0
    %223 = vmatpush1.msra.mxu0 0.0
    %224 = vmatprep.subr.mxu0 0.0
    %225 = vmatpush1.msra.mxu0 0.0
    %226 = vmatprep.subr.mxu0 0.0
    %227 = vmatpush1.msra.mxu0 0.0
    %228 = vmatprep.subr.mxu0 0.0
    %229 = vmatpush1.msra.mxu0 0.0
    %230 = vmatprep.subr.mxu0 0.0
    %231 = vmatpush1.msra.mxu0 0.0
    %232 = vmatprep.subr.mxu0 0.0
    %233 = vmatpush1.msra.mxu0 0.0
    %234 = vmatprep.subr.mxu0 0.0
    %235 = vmatpush1.msra.mxu0 0.0
    %236 = vmatprep.subr.mxu0 0.0
    %237 = vmatpush1.msra.mxu0 0.0
    %238 = vmatprep.subr.mxu0 0.0
    %239 = vmatpush1.msra.mxu0 0.0
    %240 = vmatprep.subr.mxu0 0.0
    %241 = vmatpush1.msra.mxu0 0.0
    %242 = vmatprep.subr.mxu0 0.0
    %243 = vmatpush1.msra.mxu0 0.0
    %244 = vmatprep.subr.mxu0 0.0
    %245 = vmatpush1.msra.mxu0 0.0
    %246 = vmatprep.subr.mxu0 0.0
    %247 = vmatpush1.msra.mxu0 0.0
    %248 = vmatprep.subr.mxu0 0.0
    %249 = vmatpush1.msra.mxu0 0.0
    %250 = vmatprep.subr.mxu0 0.0
    %251 = vmatpush1.msra.mxu0 %v215
    %252 = vmatprep.subr.mxu0 0.0
    %253 = vmatpush2.msra.mxu0 0.0
    %254 = vmatprep.subr.mxu0 0.0
    %255 = vmatpush2.msra.mxu0 0.0
    %256 = vmatprep.subr.mxu0 0.0
    %257 = vmatpush2.msra.mxu0 0.0
    %258 = vmatprep.subr.mxu0 0.0
    %259 = vmatpush2.msra.mxu0 0.0
    %260 = vmatprep.subr.mxu0 0.0
    %261 = vmatpush2.msra.mxu0 0.0
    %262 = vmatprep.subr.mxu0 0.0
    %263 = vmatpush2.msra.mxu0 0.0
    %264 = vmatprep.subr.mxu0 0.0
    %265 = vmatpush2.msra.mxu0 0.0
    %266 = vmatprep.subr.mxu0 0.0
    %267 = vmatpush2.msra.mxu0 0.0
    %268 = vmatprep.subr.mxu0 0.0
    %269 = vmatpush2.msra.mxu0 0.0
    %270 = vmatprep.subr.mxu0 0.0
    %271 = vmatpush2.msra.mxu0 0.0
    %272 = vmatprep.subr.mxu0 0.0
    %273 = vmatpush2.msra.mxu0 0.0
    %274 = vmatprep.subr.mxu0 0.0
    %275 = vmatpush2.msra.mxu0 0.0
    %276 = vmatprep.subr.mxu0 0.0
    %277 = vmatpush2.msra.mxu0 0.0
    %278 = vmatprep.subr.mxu0 0.0
    %279 = vmatpush2.msra.mxu0 0.0
    %280 = vmatprep.subr.mxu0 0.0
    %281 = vmatpush2.msra.mxu0 0.0
    %282 = vmatprep.subr.mxu0 0.0
    %283 = vmatpush2.msra.mxu0 0.0
    %284 = vmatprep.mubr.f32.mxu0 0.0
    %285 = vmatmul.mubr.f32.gmra.mxu0 %v218
    %v286 = vpop.f32.mrf.mxu0
    %v287 = vadd.f32 0.0, %v286
    %v288 = vpop.f32.mrf.mxu0
    %289 = vdwg.mxu0
    %v290 = vpack.c.bf16 %v287, %v287
    %v291 = vld [vmem:[#allocation5] sm:$0xf]
    %v292 = vld [vmem:[%s1] sm:$0xff]
    %v293 = vpack.c.bf16 %v292, %v292
    %v294 = vld [vmem:[%s4] sm:$0xf]
    %v295 = vld [vmem:[%s4 + $0x4] sm:$0xf]
    %v298 = vunpack.c.l.b16 %v294
    %v299 = vunpack.c.l.b16 %v295
    %v300 = vpack.c.b16 %v299, %v298
    %vm302 = vcmask 130048
    %v304 = vsel %vm302, %v293, 0
    %306 = vmatprep.subr.bf16.mxu0 0
    %307 = vmatpush1.bf16.msra.mxu0 0
    %308 = vmatprep.subr.bf16.mxu0 0
    %309 = vmatpush1.bf16.msra.mxu0 0
    %310 = vmatprep.subr.bf16.mxu0 0
    %311 = vmatpush1.bf16.msra.mxu0 0
    %312 = vmatprep.subr.bf16.mxu0 0
    %313 = vmatpush1.bf16.msra.mxu0 0
    %314 = vmatprep.subr.bf16.mxu0 0
    %315 = vmatpush1.bf16.msra.mxu0 0
    %316 = vmatprep.subr.bf16.mxu0 0
    %317 = vmatpush1.bf16.msra.mxu0 0
    %318 = vmatprep.subr.bf16.mxu0 0
    %319 = vmatpush1.bf16.msra.mxu0 0
    %320 = vmatprep.subr.bf16.mxu0 0
    %321 = vmatpush1.bf16.msra.mxu0 %v300
    %322 = vmatprep.subr.bf16.mxu0 0
    %323 = vmatpush2.bf16.msra.mxu0 0
    %324 = vmatprep.subr.bf16.mxu0 0
    %325 = vmatpush2.bf16.msra.mxu0 0
    %326 = vmatprep.subr.bf16.mxu0 0
    %327 = vmatpush2.bf16.msra.mxu0 0
    %328 = vmatprep.subr.bf16.mxu0 0
    %329 = vmatpush2.bf16.msra.mxu0 0
    %330 = vmatprep.subr.bf16.mxu0 0
    %331 = vmatpush2.bf16.msra.mxu0 0
    %332 = vmatprep.subr.bf16.mxu0 0
    %333 = vmatpush2.bf16.msra.mxu0 0
    %334 = vmatprep.subr.bf16.mxu0 0
    %335 = vmatpush2.bf16.msra.mxu0 0
    %336 = vmatprep.subr.bf16.mxu0 0
    %337 = vmatpush2.bf16.msra.mxu0 0
    %338 = vmatprep.mubr.bf16.mxu0 0
    %339 = vmatmul.mubr.bf16.gmra.mxu0 %v304
    %v340 = vpop.f32.mrf.mxu0
    %v341 = vadd.f32 0.0, %v340
    %v342 = vpop.f32.mrf.mxu0
    %v343 = vpop.f32.mrf.mxu0
    %v344 = vpop.f32.mrf.mxu0
    %345 = vdwg.mxu0
    %v347 = vsel %vm216, %v290, 0
    %vm349 = vcmask 1043456
    %v351 = vsel %vm349, %v291, 0
    %353 = vmatprep.subr.bf16.mxu0 0
    %354 = vmatpush1.bf16.msra.mxu0 0
    %355 = vmatprep.subr.bf16.mxu0 0
    %356 = vmatpush1.bf16.msra.mxu0 0
    %357 = vmatprep.subr.bf16.mxu0 0
    %358 = vmatpush1.bf16.msra.mxu0 0
    %359 = vmatprep.subr.bf16.mxu0 0
    %360 = vmatpush1.bf16.msra.mxu0 0
    %361 = vmatprep.subr.bf16.mxu0 0
    %362 = vmatpush1.bf16.msra.mxu0 0
    %363 = vmatprep.subr.bf16.mxu0 0
    %364 = vmatpush1.bf16.msra.mxu0 0
    %365 = vmatprep.subr.bf16.mxu0 0
    %366 = vmatpush1.bf16.msra.mxu0 0
    %367 = vmatprep.subr.bf16.mxu0 0
    %368 = vmatpush1.bf16.msra.mxu0 %v351
    %369 = vmatprep.subr.bf16.mxu0 0
    %370 = vmatpush2.bf16.msra.mxu0 0
    %371 = vmatprep.subr.bf16.mxu0 0
    %372 = vmatpush2.bf16.msra.mxu0 0
    %373 = vmatprep.subr.bf16.mxu0 0
    %374 = vmatpush2.bf16.msra.mxu0 0
    %375 = vmatprep.subr.bf16.mxu0 0
    %376 = vmatpush2.bf16.msra.mxu0 0
    %377 = vmatprep.subr.bf16.mxu0 0
    %378 = vmatpush2.bf16.msra.mxu0 0
    %379 = vmatprep.subr.bf16.mxu0 0
    %380 = vmatpush2.bf16.msra.mxu0 0
    %381 = vmatprep.subr.bf16.mxu0 0
    %382 = vmatpush2.bf16.msra.mxu0 0
    %383 = vmatprep.subr.bf16.mxu0 0
    %384 = vmatpush2.bf16.msra.mxu0 0
    %385 = vmatprep.mubr.bf16.mxu0 0
    %386 = vmatmul.mubr.bf16.gmra.mxu0 %v347
    %v387 = vpop.f32.mrf.mxu0
    %v388 = vadd.f32 %v341, %v387
    %v389 = vpop.f32.mrf.mxu0
    %v390 = vpop.f32.mrf.mxu0
    %v391 = vpop.f32.mrf.mxu0
    %392 = vdwg.mxu0
    %v393 = vld [vmem:[#allocation7] sm:$0x1]
    %v395 = vlaneseq
    %v396 = vshrl.u32 %v395, 7
    %v397 = vsub.s32 0, %v396
    %v398 = vrot.slane %v393, %v397
    %v400 = vadd.f32 %v388, %v398
    %vm401 = vcmp.ge.f32.partialorder %v400, 0.0
    %v402 = vmul.f32 %v400, 0.2
    %v403 = vsel %vm401, %v400, %v402
    %v404 = vpack.c.bf16 %v403, %v403
    %v405 = vld [vmem:[#allocation8] sm:$0xff]
    %v406 = vld [vmem:[#allocation8 + $0x8] sm:$0xff]
    %v407 = vld [vmem:[#allocation8 + $0x10] sm:$0xff]
    %v408 = vld [vmem:[#allocation8 + $0x18] sm:$0xff]
    %v409 = vld [vmem:[#allocation8 + $0x20] sm:$0xff]
    %v410 = vld [vmem:[#allocation8 + $0x28] sm:$0xff]
    %v411 = vld [vmem:[#allocation8 + $0x30] sm:$0xff]
    %v412 = vld [vmem:[#allocation8 + $0x38] sm:$0xff]
    %v413 = vld [vmem:[#allocation8 + $0x40] sm:$0xff]
    %v414 = vld [vmem:[#allocation8 + $0x48] sm:$0xff]
    %v415 = vld [vmem:[#allocation8 + $0x50] sm:$0xff]
    %v416 = vld [vmem:[#allocation8 + $0x58] sm:$0xff]
    %v417 = vld [vmem:[#allocation8 + $0x60] sm:$0xff]
    %v418 = vld [vmem:[#allocation8 + $0x68] sm:$0xff]
    %v419 = vld [vmem:[#allocation8 + $0x70] sm:$0xff]
    %v420 = vld [vmem:[#allocation8 + $0x78] sm:$0xff]
    %v421 = vld [vmem:[#allocation10] sm:$0x3]
    %v423 = vlaneseq
    %v424 = vshrl.u32 %v423, 7
    %v425 = vsub.s32 0, %v424
    %v426 = vrot.slane %v421, %v425
    %v427 = vlaneseq
    %v428 = vshrl.u32 %v427, 7
    %v429 = vsub.s32 1, %v428
    %v430 = vrot.slane %v421, %v429
    %v449 = vunpack.c.l.b16 %v405
    %v450 = vunpack.c.h.b16 %v405
    %v451 = vunpack.c.l.b16 %v406
    %v452 = vunpack.c.h.b16 %v406
    %v453 = vunpack.c.l.b16 %v407
    %v454 = vunpack.c.h.b16 %v407
    %v455 = vunpack.c.l.b16 %v408
    %v456 = vunpack.c.h.b16 %v408
    %v457 = vunpack.c.l.b16 %v409
    %v458 = vunpack.c.h.b16 %v409
    %v459 = vunpack.c.l.b16 %v410
    %v460 = vunpack.c.h.b16 %v410
    %v461 = vunpack.c.l.b16 %v411
    %v462 = vunpack.c.h.b16 %v411
    %v463 = vunpack.c.l.b16 %v412
    %v464 = vunpack.c.h.b16 %v412
    %v465 = vunpack.c.l.b16 %v413
    %v466 = vunpack.c.h.b16 %v413
    %v467 = vunpack.c.l.b16 %v414
    %v468 = vunpack.c.h.b16 %v414
    %v469 = vunpack.c.l.b16 %v415
    %v470 = vunpack.c.h.b16 %v415
    %v471 = vunpack.c.l.b16 %v416
    %v472 = vunpack.c.h.b16 %v416
    %v473 = vunpack.c.l.b16 %v417
    %v474 = vunpack.c.h.b16 %v417
    %v475 = vunpack.c.l.b16 %v418
    %v476 = vunpack.c.h.b16 %v418
    %v477 = vunpack.c.l.b16 %v419
    %v478 = vunpack.c.h.b16 %v419
    %v479 = vunpack.c.l.b16 %v420
    %v480 = vunpack.c.h.b16 %v420
    %v481 = vpack.c.b16 %v451, %v449
    %v482 = vpack.c.b16 %v452, %v450
    %v483 = vpack.c.b16 %v455, %v453
    %v484 = vpack.c.b16 %v456, %v454
    %v485 = vpack.c.b16 %v459, %v457
    %v486 = vpack.c.b16 %v460, %v458
    %v487 = vpack.c.b16 %v463, %v461
    %v488 = vpack.c.b16 %v464, %v462
    %v489 = vpack.c.b16 %v467, %v465
    %v490 = vpack.c.b16 %v468, %v466
    %v491 = vpack.c.b16 %v471, %v469
    %v492 = vpack.c.b16 %v472, %v470
    %v493 = vpack.c.b16 %v475, %v473
    %v494 = vpack.c.b16 %v476, %v474
    %v495 = vpack.c.b16 %v479, %v477
    %v496 = vpack.c.b16 %v480, %v478
    %513 = vmatprep.subr.bf16.mxu0 %v496
    %514 = vmatpush1.bf16.msra.mxu0 %v495
    %515 = vmatprep.subr.bf16.mxu0 %v494
    %516 = vmatpush1.bf16.msra.mxu0 %v493
    %517 = vmatprep.subr.bf16.mxu0 %v492
    %518 = vmatpush1.bf16.msra.mxu0 %v491
    %519 = vmatprep.subr.bf16.mxu0 %v490
    %520 = vmatpush1.bf16.msra.mxu0 %v489
    %521 = vmatprep.subr.bf16.mxu0 %v488
    %522 = vmatpush1.bf16.msra.mxu0 %v487
    %523 = vmatprep.subr.bf16.mxu0 %v486
    %524 = vmatpush1.bf16.msra.mxu0 %v485
    %525 = vmatprep.subr.bf16.mxu0 %v484
    %526 = vmatpush1.bf16.msra.mxu0 %v483
    %527 = vmatprep.subr.bf16.mxu0 %v482
    %528 = vmatpush1.bf16.msra.mxu0 %v481
    %529 = vmatprep.subr.bf16.mxu0 0
    %530 = vmatpush2.bf16.msra.mxu0 0
    %531 = vmatprep.subr.bf16.mxu0 0
    %532 = vmatpush2.bf16.msra.mxu0 0
    %533 = vmatprep.subr.bf16.mxu0 0
    %534 = vmatpush2.bf16.msra.mxu0 0
    %535 = vmatprep.subr.bf16.mxu0 0
    %536 = vmatpush2.bf16.msra.mxu0 0
    %537 = vmatprep.subr.bf16.mxu0 0
    %538 = vmatpush2.bf16.msra.mxu0 0
    %539 = vmatprep.subr.bf16.mxu0 0
    %540 = vmatpush2.bf16.msra.mxu0 0
    %541 = vmatprep.subr.bf16.mxu0 0
    %542 = vmatpush2.bf16.msra.mxu0 0
    %543 = vmatprep.subr.bf16.mxu0 0
    %544 = vmatpush2.bf16.msra.mxu0 0
    %545 = vmatprep.mubr.bf16.mxu0 0
    %546 = vmatmul.mubr.bf16.gmra.mxu0 %v404
    %v547 = vpop.f32.mrf.mxu0
    %v548 = vadd.f32 %v426, %v547
    %v549 = vpop.f32.mrf.mxu0
    %v550 = vadd.f32 %v430, %v549
    %v551 = vpop.f32.mrf.mxu0
    %v552 = vpop.f32.mrf.mxu0
    %553 = vdwg.mxu0
    %v554 = vld [vmem:[#allocation11] sm:$0x3]
    %v555 = vld [vmem:[#allocation13] sm:$0x3]
    %v556 = vrot.slane %v548, 4
    %v557 = vadd.f32 %v548, %v556
    %v558 = vrot.slane %v557, 2
    %v559 = vadd.f32 %v557, %v558
    %v560 = vrot.slane %v559, 1
    %v561 = vadd.f32 %v559, %v560
    %v562 = vrot.slane %v550, 4
    %v563 = vadd.f32 %v550, %v562
    %v564 = vrot.slane %v563, 2
    %v565 = vadd.f32 %v563, %v564
    %v566 = vrot.slane %v565, 1
    %v567 = vadd.f32 %v565, %v566
    %v568 = vrcp.pop 8.0
    %v569 = vmul.f32 %v561, %v568
    %v570 = vmul.f32 %v567, %v568
    %v571 = vsub.f32 %v548, %v569
    %v572 = vsub.f32 %v550, %v570
    %v573 = vmul.f32 %v571, %v571
    %v574 = vmul.f32 %v572, %v572
    %v575 = vrot.slane %v573, 4
    %v576 = vadd.f32 %v573, %v575
    %v577 = vrot.slane %v576, 2
    %v578 = vadd.f32 %v576, %v577
    %v579 = vrot.slane %v578, 1
    %v580 = vadd.f32 %v578, %v579
    %v581 = vrot.slane %v574, 4
    %v582 = vadd.f32 %v574, %v581
    %v583 = vrot.slane %v582, 2
    %v584 = vadd.f32 %v582, %v583
    %v585 = vrot.slane %v584, 1
    %v586 = vadd.f32 %v584, %v585
    %v587 = vmul.f32 %v580, %v568
    %v588 = vmul.f32 %v586, %v568
    %v589 = vadd.f32 %v587, 0.8
    %v590 = vadd.f32 %v588, 0.8
    %v591 = vrsqrt.pop %v589
    %v592 = vrsqrt.pop %v590
    %v595 = vcombine.low %v591, %v592
    %v597 = vunpack.c.l.s4 1966171168
    %v598 = vunpack.c.0.s8 %v597
    %v599 = vlaneseq
    %v600 = vshrl.u32 %v599, 7
    %v601 = vsub.s32 %v598, %v600
    %v602 = vrot.slane %v595, %v601
    %v604 = vunpack.c.l.s4 1966171168
    %v605 = vunpack.c.0.s8 %v604
    %v606 = vlaneseq
    %v607 = vshrl.u32 %v606, 7
    %v608 = vsub.s32 %v605, %v607
    %v609 = vrot.slane %v602, %v608
    %v611 = vmul.f32 %v554, %v609
    %v613 = vlaneseq
    %v614 = vshrl.u32 %v613, 7
    %v615 = vsub.s32 0, %v614
    %v616 = vrot.slane %v611, %v615
    %v617 = vlaneseq
    %v618 = vshrl.u32 %v617, 7
    %v619 = vsub.s32 1, %v618
    %v620 = vrot.slane %v611, %v619
    %v623 = vmul.f32 %v571, %v616
    %v624 = vmul.f32 %v572, %v620
    %v626 = vlaneseq
    %v627 = vshrl.u32 %v626, 7
    %v628 = vsub.s32 0, %v627
    %v629 = vrot.slane %v555, %v628
    %v630 = vlaneseq
    %v631 = vshrl.u32 %v630, 7
    %v632 = vsub.s32 1, %v631
    %v633 = vrot.slane %v555, %v632
    %v636 = vadd.f32 %v623, %v629
    %v637 = vadd.f32 %v624, %v633
    %vm638 = vcmp.ge.f32.partialorder %v636, 0.0
    %vm639 = vcmp.ge.f32.partialorder %v637, 0.0
    %v640 = vmul.f32 %v636, 0.2
    %v641 = vmul.f32 %v637, 0.2
    %v642 = vsel %vm638, %v636, %v640
    %v643 = vsel %vm639, %v637, %v641
    %v644 = vpack.c.bf16 %v642, %v642
    %v645 = vpack.c.bf16 %v643, %v643
    %v646 = vld [vmem:[#allocation14] sm:$0xff]
    %v647 = vld [vmem:[#allocation14 + $0x8] sm:$0xff]
    %v648 = vld [vmem:[#allocation14 + $0x10] sm:$0xff]
    %v649 = vld [vmem:[#allocation14 + $0x18] sm:$0xff]
    %v650 = vld [vmem:[#allocation14 + $0x20] sm:$0xff]
    %v651 = vld [vmem:[#allocation14 + $0x28] sm:$0xff]
    %v652 = vld [vmem:[#allocation14 + $0x30] sm:$0xff]
    %v653 = vld [vmem:[#allocation14 + $0x38] sm:$0xff]
    %v654 = vld [vmem:[#allocation14 + $0x40] sm:$0xff]
    %v655 = vld [vmem:[#allocation14 + $0x48] sm:$0xff]
    %v656 = vld [vmem:[#allocation14 + $0x50] sm:$0xff]
    %v657 = vld [vmem:[#allocation14 + $0x58] sm:$0xff]
    %v658 = vld [vmem:[#allocation14 + $0x60] sm:$0xff]
    %v659 = vld [vmem:[#allocation14 + $0x68] sm:$0xff]
    %v660 = vld [vmem:[#allocation14 + $0x70] sm:$0xff]
    %v661 = vld [vmem:[#allocation14 + $0x78] sm:$0xff]
    %v662 = vld [vmem:[#allocation14 + $0x80] sm:$0xff]
    %v663 = vld [vmem:[#allocation14 + $0x88] sm:$0xff]
    %v664 = vld [vmem:[#allocation14 + $0x90] sm:$0xff]
    %v665 = vld [vmem:[#allocation14 + $0x98] sm:$0xff]
    %v666 = vld [vmem:[#allocation14 + $0xa0] sm:$0xff]
    %v667 = vld [vmem:[#allocation14 + $0xa8] sm:$0xff]
    %v668 = vld [vmem:[#allocation14 + $0xb0] sm:$0xff]
    %v669 = vld [vmem:[#allocation14 + $0xb8] sm:$0xff]
    %v670 = vld [vmem:[#allocation14 + $0xc0] sm:$0xff]
    %v671 = vld [vmem:[#allocation14 + $0xc8] sm:$0xff]
    %v672 = vld [vmem:[#allocation14 + $0xd0] sm:$0xff]
    %v673 = vld [vmem:[#allocation14 + $0xd8] sm:$0xff]
    %v674 = vld [vmem:[#allocation14 + $0xe0] sm:$0xff]
    %v675 = vld [vmem:[#allocation14 + $0xe8] sm:$0xff]
    %v676 = vld [vmem:[#allocation14 + $0xf0] sm:$0xff]
    %v677 = vld [vmem:[#allocation14 + $0xf8] sm:$0xff]
    %v678 = vld [vmem:[#allocation14 + $0x100] sm:$0xff]
    %v679 = vld [vmem:[#allocation14 + $0x108] sm:$0xff]
    %v680 = vld [vmem:[#allocation14 + $0x110] sm:$0xff]
    %v681 = vld [vmem:[#allocation14 + $0x118] sm:$0xff]
    %v682 = vld [vmem:[#allocation14 + $0x120] sm:$0xff]
    %v683 = vld [vmem:[#allocation14 + $0x128] sm:$0xff]
    %v684 = vld [vmem:[#allocation14 + $0x130] sm:$0xff]
    %v685 = vld [vmem:[#allocation14 + $0x138] sm:$0xff]
    %v686 = vld [vmem:[#allocation14 + $0x140] sm:$0xff]
    %v687 = vld [vmem:[#allocation14 + $0x148] sm:$0xff]
    %v688 = vld [vmem:[#allocation14 + $0x150] sm:$0xff]
    %v689 = vld [vmem:[#allocation14 + $0x158] sm:$0xff]
    %v690 = vld [vmem:[#allocation14 + $0x160] sm:$0xff]
    %v691 = vld [vmem:[#allocation14 + $0x168] sm:$0xff]
    %v692 = vld [vmem:[#allocation14 + $0x170] sm:$0xff]
    %v693 = vld [vmem:[#allocation14 + $0x178] sm:$0xff]
    %v694 = vld [vmem:[#allocation14 + $0x180] sm:$0xff]
    %v695 = vld [vmem:[#allocation14 + $0x188] sm:$0xff]
    %v696 = vld [vmem:[#allocation14 + $0x190] sm:$0xff]
    %v697 = vld [vmem:[#allocation14 + $0x198] sm:$0xff]
    %v698 = vld [vmem:[#allocation14 + $0x1a0] sm:$0xff]
    %v699 = vld [vmem:[#allocation14 + $0x1a8] sm:$0xff]
    %v700 = vld [vmem:[#allocation14 + $0x1b0] sm:$0xff]
    %v701 = vld [vmem:[#allocation14 + $0x1b8] sm:$0xff]
    %v702 = vld [vmem:[#allocation14 + $0x1c0] sm:$0xff]
    %v703 = vld [vmem:[#allocation14 + $0x1c8] sm:$0xff]
    %v704 = vld [vmem:[#allocation14 + $0x1d0] sm:$0xff]
    %v705 = vld [vmem:[#allocation14 + $0x1d8] sm:$0xff]
    %v706 = vld [vmem:[#allocation14 + $0x1e0] sm:$0xff]
    %v707 = vld [vmem:[#allocation14 + $0x1e8] sm:$0xff]
    %v708 = vld [vmem:[#allocation14 + $0x1f0] sm:$0xff]
    %v709 = vld [vmem:[#allocation14 + $0x1f8] sm:$0xff]
    %v710 = vld [vmem:[#allocation16] sm:$0xf]
    %v712 = vlaneseq
    %v713 = vshrl.u32 %v712, 7
    %v714 = vsub.s32 0, %v713
    %v715 = vrot.slane %v710, %v714
    %v716 = vlaneseq
    %v717 = vshrl.u32 %v716, 7
    %v718 = vsub.s32 1, %v717
    %v719 = vrot.slane %v710, %v718
    %v720 = vlaneseq
    %v721 = vshrl.u32 %v720, 7
    %v722 = vsub.s32 2, %v721
    %v723 = vrot.slane %v710, %v722
    %v724 = vlaneseq
    %v725 = vshrl.u32 %v724, 7
    %v726 = vsub.s32 3, %v725
    %v727 = vrot.slane %v710, %v726
    %v796 = vunpack.c.l.b16 %v646
    %v797 = vunpack.c.h.b16 %v646
    %v798 = vunpack.c.l.b16 %v647
    %v799 = vunpack.c.h.b16 %v647
    %v800 = vunpack.c.l.b16 %v648
    %v801 = vunpack.c.h.b16 %v648
    %v802 = vunpack.c.l.b16 %v649
    %v803 = vunpack.c.h.b16 %v649
    %v804 = vunpack.c.l.b16 %v650
    %v805 = vunpack.c.h.b16 %v650
    %v806 = vunpack.c.l.b16 %v651
    %v807 = vunpack.c.h.b16 %v651
    %v808 = vunpack.c.l.b16 %v652
    %v809 = vunpack.c.h.b16 %v652
    %v810 = vunpack.c.l.b16 %v653
    %v811 = vunpack.c.h.b16 %v653
    %v812 = vunpack.c.l.b16 %v654
    %v813 = vunpack.c.h.b16 %v654
    %v814 = vunpack.c.l.b16 %v655
    %v815 = vunpack.c.h.b16 %v655
    %v816 = vunpack.c.l.b16 %v656
    %v817 = vunpack.c.h.b16 %v656
    %v818 = vunpack.c.l.b16 %v657
    %v819 = vunpack.c.h.b16 %v657
    %v820 = vunpack.c.l.b16 %v658
    %v821 = vunpack.c.h.b16 %v658
    %v822 = vunpack.c.l.b16 %v659
    %v823 = vunpack.c.h.b16 %v659
    %v824 = vunpack.c.l.b16 %v660
    %v825 = vunpack.c.h.b16 %v660
    %v826 = vunpack.c.l.b16 %v661
    %v827 = vunpack.c.h.b16 %v661
    %v828 = vunpack.c.l.b16 %v662
    %v829 = vunpack.c.h.b16 %v662
    %v830 = vunpack.c.l.b16 %v663
    %v831 = vunpack.c.h.b16 %v663
    %v832 = vunpack.c.l.b16 %v664
    %v833 = vunpack.c.h.b16 %v664
    %v834 = vunpack.c.l.b16 %v665
    %v835 = vunpack.c.h.b16 %v665
    %v836 = vunpack.c.l.b16 %v666
    %v837 = vunpack.c.h.b16 %v666
    %v838 = vunpack.c.l.b16 %v667
    %v839 = vunpack.c.h.b16 %v667
    %v840 = vunpack.c.l.b16 %v668
    %v841 = vunpack.c.h.b16 %v668
    %v842 = vunpack.c.l.b16 %v669
    %v843 = vunpack.c.h.b16 %v669
    %v844 = vunpack.c.l.b16 %v670
    %v845 = vunpack.c.h.b16 %v670
    %v846 = vunpack.c.l.b16 %v671
    %v847 = vunpack.c.h.b16 %v671
    %v848 = vunpack.c.l.b16 %v672
    %v849 = vunpack.c.h.b16 %v672
    %v850 = vunpack.c.l.b16 %v673
    %v851 = vunpack.c.h.b16 %v673
    %v852 = vunpack.c.l.b16 %v674
    %v853 = vunpack.c.h.b16 %v674
    %v854 = vunpack.c.l.b16 %v675
    %v855 = vunpack.c.h.b16 %v675
    %v856 = vunpack.c.l.b16 %v676
    %v857 = vunpack.c.h.b16 %v676
    %v858 = vunpack.c.l.b16 %v677
    %v859 = vunpack.c.h.b16 %v677
    %v860 = vunpack.c.l.b16 %v678
    %v861 = vunpack.c.h.b16 %v678
    %v862 = vunpack.c.l.b16 %v679
    %v863 = vunpack.c.h.b16 %v679
    %v864 = vunpack.c.l.b16 %v680
    %v865 = vunpack.c.h.b16 %v680
    %v866 = vunpack.c.l.b16 %v681
    %v867 = vunpack.c.h.b16 %v681
    %v868 = vunpack.c.l.b16 %v682
    %v869 = vunpack.c.h.b16 %v682
    %v870 = vunpack.c.l.b16 %v683
    %v871 = vunpack.c.h.b16 %v683
    %v872 = vunpack.c.l.b16 %v684
    %v873 = vunpack.c.h.b16 %v684
    %v874 = vunpack.c.l.b16 %v685
    %v875 = vunpack.c.h.b16 %v685
    %v876 = vunpack.c.l.b16 %v686
    %v877 = vunpack.c.h.b16 %v686
    %v878 = vunpack.c.l.b16 %v687
    %v879 = vunpack.c.h.b16 %v687
    %v880 = vunpack.c.l.b16 %v688
    %v881 = vunpack.c.h.b16 %v688
    %v882 = vunpack.c.l.b16 %v689
    %v883 = vunpack.c.h.b16 %v689
    %v884 = vunpack.c.l.b16 %v690
    %v885 = vunpack.c.h.b16 %v690
    %v886 = vunpack.c.l.b16 %v691
    %v887 = vunpack.c.h.b16 %v691
    %v888 = vunpack.c.l.b16 %v692
    %v889 = vunpack.c.h.b16 %v692
    %v890 = vunpack.c.l.b16 %v693
    %v891 = vunpack.c.h.b16 %v693
    %v892 = vunpack.c.l.b16 %v694
    %v893 = vunpack.c.h.b16 %v694
    %v894 = vunpack.c.l.b16 %v695
    %v895 = vunpack.c.h.b16 %v695
    %v896 = vunpack.c.l.b16 %v696
    %v897 = vunpack.c.h.b16 %v696
    %v898 = vunpack.c.l.b16 %v697
    %v899 = vunpack.c.h.b16 %v697
    %v900 = vunpack.c.l.b16 %v698
    %v901 = vunpack.c.h.b16 %v698
    %v902 = vunpack.c.l.b16 %v699
    %v903 = vunpack.c.h.b16 %v699
    %v904 = vunpack.c.l.b16 %v700
    %v905 = vunpack.c.h.b16 %v700
    %v906 = vunpack.c.l.b16 %v701
    %v907 = vunpack.c.h.b16 %v701
    %v908 = vunpack.c.l.b16 %v702
    %v909 = vunpack.c.h.b16 %v702
    %v910 = vunpack.c.l.b16 %v703
    %v911 = vunpack.c.h.b16 %v703
    %v912 = vunpack.c.l.b16 %v704
    %v913 = vunpack.c.h.b16 %v704
    %v914 = vunpack.c.l.b16 %v705
    %v915 = vunpack.c.h.b16 %v705
    %v916 = vunpack.c.l.b16 %v706
    %v917 = vunpack.c.h.b16 %v706
    %v918 = vunpack.c.l.b16 %v707
    %v919 = vunpack.c.h.b16 %v707
    %v920 = vunpack.c.l.b16 %v708
    %v921 = vunpack.c.h.b16 %v708
    %v922 = vunpack.c.l.b16 %v709
    %v923 = vunpack.c.h.b16 %v709
    %v924 = vpack.c.b16 %v800, %v796
    %v925 = vpack.c.b16 %v801, %v797
    %v926 = vpack.c.b16 %v802, %v798
    %v927 = vpack.c.b16 %v803, %v799
    %v928 = vpack.c.b16 %v808, %v804
    %v929 = vpack.c.b16 %v809, %v805
    %v930 = vpack.c.b16 %v810, %v806
    %v931 = vpack.c.b16 %v811, %v807
    %v932 = vpack.c.b16 %v816, %v812
    %v933 = vpack.c.b16 %v817, %v813
    %v934 = vpack.c.b16 %v818, %v814
    %v935 = vpack.c.b16 %v819, %v815
    %v936 = vpack.c.b16 %v824, %v820
    %v937 = vpack.c.b16 %v825, %v821
    %v938 = vpack.c.b16 %v826, %v822
    %v939 = vpack.c.b16 %v827, %v823
    %v940 = vpack.c.b16 %v832, %v828
    %v941 = vpack.c.b16 %v833, %v829
    %v942 = vpack.c.b16 %v834, %v830
    %v943 = vpack.c.b16 %v835, %v831
    %v944 = vpack.c.b16 %v840, %v836
    %v945 = vpack.c.b16 %v841, %v837
    %v946 = vpack.c.b16 %v842, %v838
    %v947 = vpack.c.b16 %v843, %v839
    %v948 = vpack.c.b16 %v848, %v844
    %v949 = vpack.c.b16 %v849, %v845
    %v950 = vpack.c.b16 %v850, %v846
    %v951 = vpack.c.b16 %v851, %v847
    %v952 = vpack.c.b16 %v856, %v852
    %v953 = vpack.c.b16 %v857, %v853
    %v954 = vpack.c.b16 %v858, %v854
    %v955 = vpack.c.b16 %v859, %v855
    %v956 = vpack.c.b16 %v864, %v860
    %v957 = vpack.c.b16 %v865, %v861
    %v958 = vpack.c.b16 %v866, %v862
    %v959 = vpack.c.b16 %v867, %v863
    %v960 = vpack.c.b16 %v872, %v868
    %v961 = vpack.c.b16 %v873, %v869
    %v962 = vpack.c.b16 %v874, %v870
    %v963 = vpack.c.b16 %v875, %v871
    %v964 = vpack.c.b16 %v880, %v876
    %v965 = vpack.c.b16 %v881, %v877
    %v966 = vpack.c.b16 %v882, %v878
    %v967 = vpack.c.b16 %v883, %v879
    %v968 = vpack.c.b16 %v888, %v884
    %v969 = vpack.c.b16 %v889, %v885
    %v970 = vpack.c.b16 %v890, %v886
    %v971 = vpack.c.b16 %v891, %v887
    %v972 = vpack.c.b16 %v896, %v892
    %v973 = vpack.c.b16 %v897, %v893
    %v974 = vpack.c.b16 %v898, %v894
    %v975 = vpack.c.b16 %v899, %v895
    %v976 = vpack.c.b16 %v904, %v900
    %v977 = vpack.c.b16 %v905, %v901
    %v978 = vpack.c.b16 %v906, %v902
    %v979 = vpack.c.b16 %v907, %v903
    %v980 = vpack.c.b16 %v912, %v908
    %v981 = vpack.c.b16 %v913, %v909
    %v982 = vpack.c.b16 %v914, %v910
    %v983 = vpack.c.b16 %v915, %v911
    %v984 = vpack.c.b16 %v920, %v916
    %v985 = vpack.c.b16 %v921, %v917
    %v986 = vpack.c.b16 %v922, %v918
    %v987 = vpack.c.b16 %v923, %v919
    %1052 = vmatprep.subr.bf16.mxu0 %v953
    %1053 = vmatpush1.bf16.msra.mxu0 %v952
    %1054 = vmatprep.subr.bf16.mxu0 %v949
    %1055 = vmatpush1.bf16.msra.mxu0 %v948
    %1056 = vmatprep.subr.bf16.mxu0 %v945
    %1057 = vmatpush1.bf16.msra.mxu0 %v944
    %1058 = vmatprep.subr.bf16.mxu0 %v941
    %1059 = vmatpush1.bf16.msra.mxu0 %v940
    %1060 = vmatprep.subr.bf16.mxu0 %v937
    %1061 = vmatpush1.bf16.msra.mxu0 %v936
    %1062 = vmatprep.subr.bf16.mxu0 %v933
    %1063 = vmatpush1.bf16.msra.mxu0 %v932
    %1064 = vmatprep.subr.bf16.mxu0 %v929
    %1065 = vmatpush1.bf16.msra.mxu0 %v928
    %1066 = vmatprep.subr.bf16.mxu0 %v925
    %1067 = vmatpush1.bf16.msra.mxu0 %v924
    %1068 = vmatprep.subr.bf16.mxu0 %v985
    %1069 = vmatpush2.bf16.msra.mxu0 %v984
    %1070 = vmatprep.subr.bf16.mxu0 %v981
    %1071 = vmatpush2.bf16.msra.mxu0 %v980
    %1072 = vmatprep.subr.bf16.mxu0 %v977
    %1073 = vmatpush2.bf16.msra.mxu0 %v976
    %1074 = vmatprep.subr.bf16.mxu0 %v973
    %1075 = vmatpush2.bf16.msra.mxu0 %v972
    %1076 = vmatprep.subr.bf16.mxu0 %v969
    %1077 = vmatpush2.bf16.msra.mxu0 %v968
    %1078 = vmatprep.subr.bf16.mxu0 %v965
    %1079 = vmatpush2.bf16.msra.mxu0 %v964
    %1080 = vmatprep.subr.bf16.mxu0 %v961
    %1081 = vmatpush2.bf16.msra.mxu0 %v960
    %1082 = vmatprep.subr.bf16.mxu0 %v957
    %1083 = vmatpush2.bf16.msra.mxu0 %v956
    %1084 = vmatprep.mubr.bf16.mxu0 %v645
    %1085 = vmatmul.mubr.bf16.gmra.mxu0 %v644
    %v1086 = vpop.f32.mrf.mxu0
    %v1087 = vadd.f32 %v715, %v1086
    %v1088 = vpop.f32.mrf.mxu0
    %v1089 = vadd.f32 %v719, %v1088
    %v1090 = vpop.f32.mrf.mxu0
    %v1091 = vpop.f32.mrf.mxu0
    %1092 = vdwg.mxu0
    %1093 = vmatprep.subr.bf16.mxu0 %v955
    %1094 = vmatpush1.bf16.msra.mxu0 %v954
    %1095 = vmatprep.subr.bf16.mxu0 %v951
    %1096 = vmatpush1.bf16.msra.mxu0 %v950
    %1097 = vmatprep.subr.bf16.mxu0 %v947
    %1098 = vmatpush1.bf16.msra.mxu0 %v946
    %1099 = vmatprep.subr.bf16.mxu0 %v943
    %1100 = vmatpush1.bf16.msra.mxu0 %v942
    %1101 = vmatprep.subr.bf16.mxu0 %v939
    %1102 = vmatpush1.bf16.msra.mxu0 %v938
    %1103 = vmatprep.subr.bf16.mxu0 %v935
    %1104 = vmatpush1.bf16.msra.mxu0 %v934
    %1105 = vmatprep.subr.bf16.mxu0 %v931
    %1106 = vmatpush1.bf16.msra.mxu0 %v930
    %1107 = vmatprep.subr.bf16.mxu0 %v927
    %1108 = vmatpush1.bf16.msra.mxu0 %v926
    %1109 = vmatprep.subr.bf16.mxu0 %v987
    %1110 = vmatpush2.bf16.msra.mxu0 %v986
    %1111 = vmatprep.subr.bf16.mxu0 %v983
    %1112 = vmatpush2.bf16.msra.mxu0 %v982
    %1113 = vmatprep.subr.bf16.mxu0 %v979
    %1114 = vmatpush2.bf16.msra.mxu0 %v978
    %1115 = vmatprep.subr.bf16.mxu0 %v975
    %1116 = vmatpush2.bf16.msra.mxu0 %v974
    %1117 = vmatprep.subr.bf16.mxu0 %v971
    %1118 = vmatpush2.bf16.msra.mxu0 %v970
    %1119 = vmatprep.subr.bf16.mxu0 %v967
    %1120 = vmatpush2.bf16.msra.mxu0 %v966
    %1121 = vmatprep.subr.bf16.mxu0 %v963
    %1122 = vmatpush2.bf16.msra.mxu0 %v962
    %1123 = vmatprep.subr.bf16.mxu0 %v959
    %1124 = vmatpush2.bf16.msra.mxu0 %v958
    %1125 = vmatprep.mubr.bf16.mxu0 %v645
    %1126 = vmatmul.mubr.bf16.gmra.mxu0 %v644
    %v1127 = vpop.f32.mrf.mxu0
    %v1128 = vadd.f32 %v723, %v1127
    %v1129 = vpop.f32.mrf.mxu0
    %v1130 = vadd.f32 %v727, %v1129
    %v1131 = vpop.f32.mrf.mxu0
    %v1132 = vpop.f32.mrf.mxu0
    %1133 = vdwg.mxu0
    %v1134 = vld [vmem:[#allocation17] sm:$0xf]
    %v1135 = vld [vmem:[#allocation19] sm:$0xf]
    %v1136 = vrot.slane %v1087, 4
    %v1137 = vadd.f32 %v1087, %v1136
    %v1138 = vrot.slane %v1137, 2
    %v1139 = vadd.f32 %v1137, %v1138
    %v1140 = vrot.slane %v1139, 1
    %v1141 = vadd.f32 %v1139, %v1140
    %v1142 = vrot.slane %v1089, 4
    %v1143 = vadd.f32 %v1089, %v1142
    %v1144 = vrot.slane %v1143, 2
    %v1145 = vadd.f32 %v1143, %v1144
    %v1146 = vrot.slane %v1145, 1
    %v1147 = vadd.f32 %v1145, %v1146
    %v1148 = vrot.slane %v1128, 4
    %v1149 = vadd.f32 %v1128, %v1148
    %v1150 = vrot.slane %v1149, 2
    %v1151 = vadd.f32 %v1149, %v1150
    %v1152 = vrot.slane %v1151, 1
    %v1153 = vadd.f32 %v1151, %v1152
    %v1154 = vrot.slane %v1130, 4
    %v1155 = vadd.f32 %v1130, %v1154
    %v1156 = vrot.slane %v1155, 2
    %v1157 = vadd.f32 %v1155, %v1156
    %v1158 = vrot.slane %v1157, 1
    %v1159 = vadd.f32 %v1157, %v1158
    %v1160 = vmul.f32 %v1141, %v568
    %v1161 = vmul.f32 %v1147, %v568
    %v1162 = vmul.f32 %v1153, %v568
    %v1163 = vmul.f32 %v1159, %v568
    %v1164 = vsub.f32 %v1087, %v1160
    %v1165 = vsub.f32 %v1089, %v1161
    %v1166 = vsub.f32 %v1128, %v1162
    %v1167 = vsub.f32 %v1130, %v1163
    %v1168 = vmul.f32 %v1164, %v1164
    %v1169 = vmul.f32 %v1165, %v1165
    %v1170 = vmul.f32 %v1166, %v1166
    %v1171 = vmul.f32 %v1167, %v1167
    %v1172 = vrot.slane %v1168, 4
    %v1173 = vadd.f32 %v1168, %v1172
    %v1174 = vrot.slane %v1173, 2
    %v1175 = vadd.f32 %v1173, %v1174
    %v1176 = vrot.slane %v1175, 1
    %v1177 = vadd.f32 %v1175, %v1176
    %v1178 = vrot.slane %v1169, 4
    %v1179 = vadd.f32 %v1169, %v1178
    %v1180 = vrot.slane %v1179, 2
    %v1181 = vadd.f32 %v1179, %v1180
    %v1182 = vrot.slane %v1181, 1
    %v1183 = vadd.f32 %v1181, %v1182
    %v1184 = vrot.slane %v1170, 4
    %v1185 = vadd.f32 %v1170, %v1184
    %v1186 = vrot.slane %v1185, 2
    %v1187 = vadd.f32 %v1185, %v1186
    %v1188 = vrot.slane %v1187, 1
    %v1189 = vadd.f32 %v1187, %v1188
    %v1190 = vrot.slane %v1171, 4
    %v1191 = vadd.f32 %v1171, %v1190
    %v1192 = vrot.slane %v1191, 2
    %v1193 = vadd.f32 %v1191, %v1192
    %v1194 = vrot.slane %v1193, 1
    %v1195 = vadd.f32 %v1193, %v1194
    %v1196 = vmul.f32 %v1177, %v568
    %v1197 = vmul.f32 %v1183, %v568
    %v1198 = vmul.f32 %v1189, %v568
    %v1199 = vmul.f32 %v1195, %v568
    %v1200 = vadd.f32 %v1196, 0.8
    %v1201 = vadd.f32 %v1197, 0.8
    %v1202 = vadd.f32 %v1198, 0.8
    %v1203 = vadd.f32 %v1199, 0.8
    %v1204 = vrsqrt.pop %v1200
    %v1205 = vrsqrt.pop %v1201
    %v1206 = vrsqrt.pop %v1202
    %v1207 = vrsqrt.pop %v1203
    %v1212 = vcombine.low %v1204, %v1205
    %v1213 = vcombine.low %v1206, %v1207
    %v1215 = vunpack.c.l.s4 1966171168
    %v1216 = vunpack.c.0.s8 %v1215
    %v1217 = vlaneseq
    %v1218 = vshrl.u32 %v1217, 7
    %v1219 = vsub.s32 %v1216, %v1218
    %v1220 = vrot.slane %v1212, %v1219
    %v1222 = vunpack.c.l.s4 1966171168
    %v1223 = vunpack.c.0.s8 %v1222
    %v1224 = vlaneseq
    %v1225 = vshrl.u32 %v1224, 7
    %v1226 = vsub.s32 %v1223, %v1225
    %v1227 = vrot.slane %v1213, %v1226
    %v1228 = vcombine.low %v1220, %v1227
    %v1230 = vunpack.c.l.s4 1966171168
    %v1231 = vunpack.c.0.s8 %v1230
    %v1232 = vlaneseq
    %v1233 = vshrl.u32 %v1232, 7
    %v1234 = vsub.s32 %v1231, %v1233
    %v1235 = vrot.slane %v1228, %v1234
    %v1237 = vmul.f32 %v1134, %v1235
    %v1239 = vlaneseq
    %v1240 = vshrl.u32 %v1239, 7
    %v1241 = vsub.s32 0, %v1240
    %v1242 = vrot.slane %v1237, %v1241
    %v1243 = vlaneseq
    %v1244 = vshrl.u32 %v1243, 7
    %v1245 = vsub.s32 1, %v1244
    %v1246 = vrot.slane %v1237, %v1245
    %v1247 = vlaneseq
    %v1248 = vshrl.u32 %v1247, 7
    %v1249 = vsub.s32 2, %v1248
    %v1250 = vrot.slane %v1237, %v1249
    %v1251 = vlaneseq
    %v1252 = vshrl.u32 %v1251, 7
    %v1253 = vsub.s32 3, %v1252
    %v1254 = vrot.slane %v1237, %v1253
    %v1259 = vmul.f32 %v1164, %v1242
    %v1260 = vmul.f32 %v1165, %v1246
    %v1261 = vmul.f32 %v1166, %v1250
    %v1262 = vmul.f32 %v1167, %v1254
    %v1264 = vlaneseq
    %v1265 = vshrl.u32 %v1264, 7
    %v1266 = vsub.s32 0, %v1265
    %v1267 = vrot.slane %v1135, %v1266
    %v1268 = vlaneseq
    %v1269 = vshrl.u32 %v1268, 7
    %v1270 = vsub.s32 1, %v1269
    %v1271 = vrot.slane %v1135, %v1270
    %v1272 = vlaneseq
    %v1273 = vshrl.u32 %v1272, 7
    %v1274 = vsub.s32 2, %v1273
    %v1275 = vrot.slane %v1135, %v1274
    %v1276 = vlaneseq
    %v1277 = vshrl.u32 %v1276, 7
    %v1278 = vsub.s32 3, %v1277
    %v1279 = vrot.slane %v1135, %v1278
    %v1284 = vadd.f32 %v1259, %v1267
    %v1285 = vadd.f32 %v1260, %v1271
    %v1286 = vadd.f32 %v1261, %v1275
    %v1287 = vadd.f32 %v1262, %v1279
    %vm1288 = vcmp.ge.f32.partialorder %v1284, 0.0
    %vm1289 = vcmp.ge.f32.partialorder %v1285, 0.0
    %vm1290 = vcmp.ge.f32.partialorder %v1286, 0.0
    %vm1291 = vcmp.ge.f32.partialorder %v1287, 0.0
    %v1292 = vmul.f32 %v1284, 0.2
    %v1293 = vmul.f32 %v1285, 0.2
    %v1294 = vmul.f32 %v1286, 0.2
    %v1295 = vmul.f32 %v1287, 0.2
    %v1296 = vsel %vm1288, %v1284, %v1292
    %v1297 = vsel %vm1289, %v1285, %v1293
    %v1298 = vsel %vm1290, %v1286, %v1294
    %v1299 = vsel %vm1291, %v1287, %v1295
    %v1300 = vpack.c.bf16 %v1296, %v1296
    %v1301 = vpack.c.bf16 %v1297, %v1297
    %v1302 = vpack.c.bf16 %v1298, %v1298
    %v1303 = vpack.c.bf16 %v1299, %v1299
    %v1304 = vld [vmem:[#allocation20] sm:$0xff]
    %v1305 = vld [vmem:[#allocation20 + $0x8] sm:$0xff]
    %v1306 = vld [vmem:[#allocation20 + $0x10] sm:$0xff]
    %v1307 = vld [vmem:[#allocation20 + $0x18] sm:$0xff]
    %v1308 = vld [vmem:[#allocation20 + $0x20] sm:$0xff]
    %v1309 = vld [vmem:[#allocation20 + $0x28] sm:$0xff]
    %v1310 = vld [vmem:[#allocation20 + $0x30] sm:$0xff]
    %v1311 = vld [vmem:[#allocation20 + $0x38] sm:$0xff]
    %v1312 = vld [vmem:[#allocation20 + $0x40] sm:$0xff]
    %v1313 = vld [vmem:[#allocation20 + $0x48] sm:$0xff]
    %v1314 = vld [vmem:[#allocation20 + $0x50] sm:$0xff]
    %v1315 = vld [vmem:[#allocation20 + $0x58] sm:$0xff]
    %v1316 = vld [vmem:[#allocation20 + $0x60] sm:$0xff]
    %v1317 = vld [vmem:[#allocation20 + $0x68] sm:$0xff]
    %v1318 = vld [vmem:[#allocation20 + $0x70] sm:$0xff]
    %v1319 = vld [vmem:[#allocation20 + $0x78] sm:$0xff]
    %v1320 = vld [vmem:[#allocation20 + $0x80] sm:$0xff]
    %v1321 = vld [vmem:[#allocation20 + $0x88] sm:$0xff]
    %v1322 = vld [vmem:[#allocation20 + $0x90] sm:$0xff]
    %v1323 = vld [vmem:[#allocation20 + $0x98] sm:$0xff]
    %v1324 = vld [vmem:[#allocation20 + $0xa0] sm:$0xff]
    %v1325 = vld [vmem:[#allocation20 + $0xa8] sm:$0xff]
    %v1326 = vld [vmem:[#allocation20 + $0xb0] sm:$0xff]
    %v1327 = vld [vmem:[#allocation20 + $0xb8] sm:$0xff]
    %v1328 = vld [vmem:[#allocation20 + $0xc0] sm:$0xff]
    %v1329 = vld [vmem:[#allocation20 + $0xc8] sm:$0xff]
    %v1330 = vld [vmem:[#allocation20 + $0xd0] sm:$0xff]
    %v1331 = vld [vmem:[#allocation20 + $0xd8] sm:$0xff]
    %v1332 = vld [vmem:[#allocation20 + $0xe0] sm:$0xff]
    %v1333 = vld [vmem:[#allocation20 + $0xe8] sm:$0xff]
    %v1334 = vld [vmem:[#allocation20 + $0xf0] sm:$0xff]
    %v1335 = vld [vmem:[#allocation20 + $0xf8] sm:$0xff]
    %v1336 = vld [vmem:[#allocation20 + $0x100] sm:$0xff]
    %v1337 = vld [vmem:[#allocation20 + $0x108] sm:$0xff]
    %v1338 = vld [vmem:[#allocation20 + $0x110] sm:$0xff]
    %v1339 = vld [vmem:[#allocation20 + $0x118] sm:$0xff]
    %v1340 = vld [vmem:[#allocation20 + $0x120] sm:$0xff]
    %v1341 = vld [vmem:[#allocation20 + $0x128] sm:$0xff]
    %v1342 = vld [vmem:[#allocation20 + $0x130] sm:$0xff]
    %v1343 = vld [vmem:[#allocation20 + $0x138] sm:$0xff]
    %v1344 = vld [vmem:[#allocation20 + $0x140] sm:$0xff]
    %v1345 = vld [vmem:[#allocation20 + $0x148] sm:$0xff]
    %v1346 = vld [vmem:[#allocation20 + $0x150] sm:$0xff]
    %v1347 = vld [vmem:[#allocation20 + $0x158] sm:$0xff]
    %v1348 = vld [vmem:[#allocation20 + $0x160] sm:$0xff]
    %v1349 = vld [vmem:[#allocation20 + $0x168] sm:$0xff]
    %v1350 = vld [vmem:[#allocation20 + $0x170] sm:$0xff]
    %v1351 = vld [vmem:[#allocation20 + $0x178] sm:$0xff]
    %v1352 = vld [vmem:[#allocation20 + $0x180] sm:$0xff]
    %v1353 = vld [vmem:[#allocation20 + $0x188] sm:$0xff]
    %v1354 = vld [vmem:[#allocation20 + $0x190] sm:$0xff]
    %v1355 = vld [vmem:[#allocation20 + $0x198] sm:$0xff]
    %v1356 = vld [vmem:[#allocation20 + $0x1a0] sm:$0xff]
    %v1357 = vld [vmem:[#allocation20 + $0x1a8] sm:$0xff]
    %v1358 = vld [vmem:[#allocation20 + $0x1b0] sm:$0xff]
    %v1359 = vld [vmem:[#allocation20 + $0x1b8] sm:$0xff]
    %v1360 = vld [vmem:[#allocation20 + $0x1c0] sm:$0xff]
    %v1361 = vld [vmem:[#allocation20 + $0x1c8] sm:$0xff]
    %v1362 = vld [vmem:[#allocation20 + $0x1d0] sm:$0xff]
    %v1363 = vld [vmem:[#allocation20 + $0x1d8] sm:$0xff]
    %v1364 = vld [vmem:[#allocation20 + $0x1e0] sm:$0xff]
    %v1365 = vld [vmem:[#allocation20 + $0x1e8] sm:$0xff]
    %v1366 = vld [vmem:[#allocation20 + $0x1f0] sm:$0xff]
    %v1367 = vld [vmem:[#allocation20 + $0x1f8] sm:$0xff]
    %v1368 = vld [vmem:[#allocation20 + $0x200] sm:$0xff]
    %v1369 = vld [vmem:[#allocation20 + $0x208] sm:$0xff]
    %v1370 = vld [vmem:[#allocation20 + $0x210] sm:$0xff]
    %v1371 = vld [vmem:[#allocation20 + $0x218] sm:$0xff]
    %v1372 = vld [vmem:[#allocation20 + $0x220] sm:$0xff]
    %v1373 = vld [vmem:[#allocation20 + $0x228] sm:$0xff]
    %v1374 = vld [vmem:[#allocation20 + $0x230] sm:$0xff]
    %v1375 = vld [vmem:[#allocation20 + $0x238] sm:$0xff]
    %v1376 = vld [vmem:[#allocation20 + $0x240] sm:$0xff]
    %v1377 = vld [vmem:[#allocation20 + $0x248] sm:$0xff]
    %v1378 = vld [vmem:[#allocation20 + $0x250] sm:$0xff]
    %v1379 = vld [vmem:[#allocation20 + $0x258] sm:$0xff]
    %v1380 = vld [vmem:[#allocation20 + $0x260] sm:$0xff]
    %v1381 = vld [vmem:[#allocation20 + $0x268] sm:$0xff]
    %v1382 = vld [vmem:[#allocation20 + $0x270] sm:$0xff]
    %v1383 = vld [vmem:[#allocation20 + $0x278] sm:$0xff]
    %v1384 = vld [vmem:[#allocation20 + $0x280] sm:$0xff]
    %v1385 = vld [vmem:[#allocation20 + $0x288] sm:$0xff]
    %v1386 = vld [vmem:[#allocation20 + $0x290] sm:$0xff]
    %v1387 = vld [vmem:[#allocation20 + $0x298] sm:$0xff]
    %v1388 = vld [vmem:[#allocation20 + $0x2a0] sm:$0xff]
    %v1389 = vld [vmem:[#allocation20 + $0x2a8] sm:$0xff]
    %v1390 = vld [vmem:[#allocation20 + $0x2b0] sm:$0xff]
    %v1391 = vld [vmem:[#allocation20 + $0x2b8] sm:$0xff]
    %v1392 = vld [vmem:[#allocation20 + $0x2c0] sm:$0xff]
    %v1393 = vld [vmem:[#allocation20 + $0x2c8] sm:$0xff]
    %v1394 = vld [vmem:[#allocation20 + $0x2d0] sm:$0xff]
    %v1395 = vld [vmem:[#allocation20 + $0x2d8] sm:$0xff]
    %v1396 = vld [vmem:[#allocation20 + $0x2e0] sm:$0xff]
    %v1397 = vld [vmem:[#allocation20 + $0x2e8] sm:$0xff]
    %v1398 = vld [vmem:[#allocation20 + $0x2f0] sm:$0xff]
    %v1399 = vld [vmem:[#allocation20 + $0x2f8] sm:$0xff]
    %v1400 = vld [vmem:[#allocation20 + $0x300] sm:$0xff]
    %v1401 = vld [vmem:[#allocation20 + $0x308] sm:$0xff]
    %v1402 = vld [vmem:[#allocation20 + $0x310] sm:$0xff]
    %v1403 = vld [vmem:[#allocation20 + $0x318] sm:$0xff]
    %v1404 = vld [vmem:[#allocation20 + $0x320] sm:$0xff]
    %v1405 = vld [vmem:[#allocation20 + $0x328] sm:$0xff]
    %v1406 = vld [vmem:[#allocation20 + $0x330] sm:$0xff]
    %v1407 = vld [vmem:[#allocation20 + $0x338] sm:$0xff]
    %v1408 = vld [vmem:[#allocation20 + $0x340] sm:$0xff]
    %v1409 = vld [vmem:[#allocation20 + $0x348] sm:$0xff]
    %v1410 = vld [vmem:[#allocation20 + $0x350] sm:$0xff]
    %v1411 = vld [vmem:[#allocation20 + $0x358] sm:$0xff]
    %v1412 = vld [vmem:[#allocation20 + $0x360] sm:$0xff]
    %v1413 = vld [vmem:[#allocation20 + $0x368] sm:$0xff]
    %v1414 = vld [vmem:[#allocation20 + $0x370] sm:$0xff]
    %v1415 = vld [vmem:[#allocation20 + $0x378] sm:$0xff]
    %v1416 = vld [vmem:[#allocation20 + $0x380] sm:$0xff]
    %v1417 = vld [vmem:[#allocation20 + $0x388] sm:$0xff]
    %v1418 = vld [vmem:[#allocation20 + $0x390] sm:$0xff]
    %v1419 = vld [vmem:[#allocation20 + $0x398] sm:$0xff]
    %v1420 = vld [vmem:[#allocation20 + $0x3a0] sm:$0xff]
    %v1421 = vld [vmem:[#allocation20 + $0x3a8] sm:$0xff]
    %v1422 = vld [vmem:[#allocation20 + $0x3b0] sm:$0xff]
    %v1423 = vld [vmem:[#allocation20 + $0x3b8] sm:$0xff]
    %v1424 = vld [vmem:[#allocation20 + $0x3c0] sm:$0xff]
    %v1425 = vld [vmem:[#allocation20 + $0x3c8] sm:$0xff]
    %v1426 = vld [vmem:[#allocation20 + $0x3d0] sm:$0xff]
    %v1427 = vld [vmem:[#allocation20 + $0x3d8] sm:$0xff]
    %v1428 = vld [vmem:[#allocation20 + $0x3e0] sm:$0xff]
    %v1429 = vld [vmem:[#allocation20 + $0x3e8] sm:$0xff]
    %v1430 = vld [vmem:[#allocation20 + $0x3f0] sm:$0xff]
    %v1431 = vld [vmem:[#allocation20 + $0x3f8] sm:$0xff]
    %v1432 = vld [vmem:[#allocation20 + $0x400] sm:$0xff]
    %v1433 = vld [vmem:[#allocation20 + $0x408] sm:$0xff]
    %v1434 = vld [vmem:[#allocation20 + $0x410] sm:$0xff]
    %v1435 = vld [vmem:[#allocation20 + $0x418] sm:$0xff]
    %v1436 = vld [vmem:[#allocation20 + $0x420] sm:$0xff]
    %v1437 = vld [vmem:[#allocation20 + $0x428] sm:$0xff]
    %v1438 = vld [vmem:[#allocation20 + $0x430] sm:$0xff]
    %v1439 = vld [vmem:[#allocation20 + $0x438] sm:$0xff]
    %v1440 = vld [vmem:[#allocation20 + $0x440] sm:$0xff]
    %v1441 = vld [vmem:[#allocation20 + $0x448] sm:$0xff]
    %v1442 = vld [vmem:[#allocation20 + $0x450] sm:$0xff]
    %v1443 = vld [vmem:[#allocation20 + $0x458] sm:$0xff]
    %v1444 = vld [vmem:[#allocation20 + $0x460] sm:$0xff]
    %v1445 = vld [vmem:[#allocation20 + $0x468] sm:$0xff]
    %v1446 = vld [vmem:[#allocation20 + $0x470] sm:$0xff]
    %v1447 = vld [vmem:[#allocation20 + $0x478] sm:$0xff]
    %v1448 = vld [vmem:[#allocation20 + $0x480] sm:$0xff]
    %v1449 = vld [vmem:[#allocation20 + $0x488] sm:$0xff]
    %v1450 = vld [vmem:[#allocation20 + $0x490] sm:$0xff]
    %v1451 = vld [vmem:[#allocation20 + $0x498] sm:$0xff]
    %v1452 = vld [vmem:[#allocation20 + $0x4a0] sm:$0xff]
    %v1453 = vld [vmem:[#allocation20 + $0x4a8] sm:$0xff]
    %v1454 = vld [vmem:[#allocation20 + $0x4b0] sm:$0xff]
    %v1455 = vld [vmem:[#allocation20 + $0x4b8] sm:$0xff]
    %v1456 = vld [vmem:[#allocation20 + $0x4c0] sm:$0xff]
    %v1457 = vld [vmem:[#allocation20 + $0x4c8] sm:$0xff]
    %v1458 = vld [vmem:[#allocation20 + $0x4d0] sm:$0xff]
    %v1459 = vld [vmem:[#allocation20 + $0x4d8] sm:$0xff]
    %v1460 = vld [vmem:[#allocation20 + $0x4e0] sm:$0xff]
    %v1461 = vld [vmem:[#allocation20 + $0x4e8] sm:$0xff]
    %v1462 = vld [vmem:[#allocation20 + $0x4f0] sm:$0xff]
    %v1463 = vld [vmem:[#allocation20 + $0x4f8] sm:$0xff]
    %v1464 = vld [vmem:[#allocation20 + $0x500] sm:$0xff]
    %v1465 = vld [vmem:[#allocation20 + $0x508] sm:$0xff]
    %v1466 = vld [vmem:[#allocation20 + $0x510] sm:$0xff]
    %v1467 = vld [vmem:[#allocation20 + $0x518] sm:$0xff]
    %v1468 = vld [vmem:[#allocation20 + $0x520] sm:$0xff]
    %v1469 = vld [vmem:[#allocation20 + $0x528] sm:$0xff]
    %v1470 = vld [vmem:[#allocation20 + $0x530] sm:$0xff]
    %v1471 = vld [vmem:[#allocation20 + $0x538] sm:$0xff]
    %v1472 = vld [vmem:[#allocation20 + $0x540] sm:$0xff]
    %v1473 = vld [vmem:[#allocation20 + $0x548] sm:$0xff]
    %v1474 = vld [vmem:[#allocation20 + $0x550] sm:$0xff]
    %v1475 = vld [vmem:[#allocation20 + $0x558] sm:$0xff]
    %v1476 = vld [vmem:[#allocation20 + $0x560] sm:$0xff]
    %v1477 = vld [vmem:[#allocation20 + $0x568] sm:$0xff]
    %v1478 = vld [vmem:[#allocation20 + $0x570] sm:$0xff]
    %v1479 = vld [vmem:[#allocation20 + $0x578] sm:$0xff]
    %v1480 = vld [vmem:[#allocation20 + $0x580] sm:$0xff]
    %v1481 = vld [vmem:[#allocation20 + $0x588] sm:$0xff]
    %v1482 = vld [vmem:[#allocation20 + $0x590] sm:$0xff]
    %v1483 = vld [vmem:[#allocation20 + $0x598] sm:$0xff]
    %v1484 = vld [vmem:[#allocation20 + $0x5a0] sm:$0xff]
    %v1485 = vld [vmem:[#allocation20 + $0x5a8] sm:$0xff]
    %v1486 = vld [vmem:[#allocation20 + $0x5b0] sm:$0xff]
    %v1487 = vld [vmem:[#allocation20 + $0x5b8] sm:$0xff]
    %v1488 = vld [vmem:[#allocation20 + $0x5c0] sm:$0xff]
    %v1489 = vld [vmem:[#allocation20 + $0x5c8] sm:$0xff]
    %v1490 = vld [vmem:[#allocation20 + $0x5d0] sm:$0xff]
    %v1491 = vld [vmem:[#allocation20 + $0x5d8] sm:$0xff]
    %v1492 = vld [vmem:[#allocation20 + $0x5e0] sm:$0xff]
    %v1493 = vld [vmem:[#allocation20 + $0x5e8] sm:$0xff]
    %v1494 = vld [vmem:[#allocation20 + $0x5f0] sm:$0xff]
    %v1495 = vld [vmem:[#allocation20 + $0x5f8] sm:$0xff]
    %v1496 = vld [vmem:[#allocation20 + $0x600] sm:$0xff]
    %v1497 = vld [vmem:[#allocation20 + $0x608] sm:$0xff]
    %v1498 = vld [vmem:[#allocation20 + $0x610] sm:$0xff]
    %v1499 = vld [vmem:[#allocation20 + $0x618] sm:$0xff]
    %v1500 = vld [vmem:[#allocation20 + $0x620] sm:$0xff]
    %v1501 = vld [vmem:[#allocation20 + $0x628] sm:$0xff]
    %v1502 = vld [vmem:[#allocation20 + $0x630] sm:$0xff]
    %v1503 = vld [vmem:[#allocation20 + $0x638] sm:$0xff]
    %v1504 = vld [vmem:[#allocation20 + $0x640] sm:$0xff]
    %v1505 = vld [vmem:[#allocation20 + $0x648] sm:$0xff]
    %v1506 = vld [vmem:[#allocation20 + $0x650] sm:$0xff]
    %v1507 = vld [vmem:[#allocation20 + $0x658] sm:$0xff]
    %v1508 = vld [vmem:[#allocation20 + $0x660] sm:$0xff]
    %v1509 = vld [vmem:[#allocation20 + $0x668] sm:$0xff]
    %v1510 = vld [vmem:[#allocation20 + $0x670] sm:$0xff]
    %v1511 = vld [vmem:[#allocation20 + $0x678] sm:$0xff]
    %v1512 = vld [vmem:[#allocation20 + $0x680] sm:$0xff]
    %v1513 = vld [vmem:[#allocation20 + $0x688] sm:$0xff]
    %v1514 = vld [vmem:[#allocation20 + $0x690] sm:$0xff]
    %v1515 = vld [vmem:[#allocation20 + $0x698] sm:$0xff]
    %v1516 = vld [vmem:[#allocation20 + $0x6a0] sm:$0xff]
    %v1517 = vld [vmem:[#allocation20 + $0x6a8] sm:$0xff]
    %v1518 = vld [vmem:[#allocation20 + $0x6b0] sm:$0xff]
    %v1519 = vld [vmem:[#allocation20 + $0x6b8] sm:$0xff]
    %v1520 = vld [vmem:[#allocation20 + $0x6c0] sm:$0xff]
    %v1521 = vld [vmem:[#allocation20 + $0x6c8] sm:$0xff]
    %v1522 = vld [vmem:[#allocation20 + $0x6d0] sm:$0xff]
    %v1523 = vld [vmem:[#allocation20 + $0x6d8] sm:$0xff]
    %v1524 = vld [vmem:[#allocation20 + $0x6e0] sm:$0xff]
    %v1525 = vld [vmem:[#allocation20 + $0x6e8] sm:$0xff]
    %v1526 = vld [vmem:[#allocation20 + $0x6f0] sm:$0xff]
    %v1527 = vld [vmem:[#allocation20 + $0x6f8] sm:$0xff]
    %v1528 = vld [vmem:[#allocation20 + $0x700] sm:$0xff]
    %v1529 = vld [vmem:[#allocation20 + $0x708] sm:$0xff]
    %v1530 = vld [vmem:[#allocation20 + $0x710] sm:$0xff]
    %v1531 = vld [vmem:[#allocation20 + $0x718] sm:$0xff]
    %v1532 = vld [vmem:[#allocation20 + $0x720] sm:$0xff]
    %v1533 = vld [vmem:[#allocation20 + $0x728] sm:$0xff]
    %v1534 = vld [vmem:[#allocation20 + $0x730] sm:$0xff]
    %v1535 = vld [vmem:[#allocation20 + $0x738] sm:$0xff]
    %v1536 = vld [vmem:[#allocation20 + $0x740] sm:$0xff]
    %v1537 = vld [vmem:[#allocation20 + $0x748] sm:$0xff]
    %v1538 = vld [vmem:[#allocation20 + $0x750] sm:$0xff]
    %v1539 = vld [vmem:[#allocation20 + $0x758] sm:$0xff]
    %v1540 = vld [vmem:[#allocation20 + $0x760] sm:$0xff]
    %v1541 = vld [vmem:[#allocation20 + $0x768] sm:$0xff]
    %v1542 = vld [vmem:[#allocation20 + $0x770] sm:$0xff]
    %v1543 = vld [vmem:[#allocation20 + $0x778] sm:$0xff]
    %v1544 = vld [vmem:[#allocation20 + $0x780] sm:$0xff]
    %v1545 = vld [vmem:[#allocation20 + $0x788] sm:$0xff]
    %v1546 = vld [vmem:[#allocation20 + $0x790] sm:$0xff]
    %v1547 = vld [vmem:[#allocation20 + $0x798] sm:$0xff]
    %v1548 = vld [vmem:[#allocation20 + $0x7a0] sm:$0xff]
    %v1549 = vld [vmem:[#allocation20 + $0x7a8] sm:$0xff]
    %v1550 = vld [vmem:[#allocation20 + $0x7b0] sm:$0xff]
    %v1551 = vld [vmem:[#allocation20 + $0x7b8] sm:$0xff]
    %v1552 = vld [vmem:[#allocation20 + $0x7c0] sm:$0xff]
    %v1553 = vld [vmem:[#allocation20 + $0x7c8] sm:$0xff]
    %v1554 = vld [vmem:[#allocation20 + $0x7d0] sm:$0xff]
    %v1555 = vld [vmem:[#allocation20 + $0x7d8] sm:$0xff]
    %v1556 = vld [vmem:[#allocation20 + $0x7e0] sm:$0xff]
    %v1557 = vld [vmem:[#allocation20 + $0x7e8] sm:$0xff]
    %v1558 = vld [vmem:[#allocation20 + $0x7f0] sm:$0xff]
    %v1559 = vld [vmem:[#allocation20 + $0x7f8] sm:$0xff]
    %v1560 = vld [vmem:[%s15] sm:$0xff]
    %v1562 = vlaneseq
    %v1563 = vshrl.u32 %v1562, 7
    %v1564 = vsub.s32 0, %v1563
    %v1565 = vrot.slane %v1560, %v1564
    %v1566 = vlaneseq
    %v1567 = vshrl.u32 %v1566, 7
    %v1568 = vsub.s32 1, %v1567
    %v1569 = vrot.slane %v1560, %v1568
    %v1570 = vlaneseq
    %v1571 = vshrl.u32 %v1570, 7
    %v1572 = vsub.s32 2, %v1571
    %v1573 = vrot.slane %v1560, %v1572
    %v1574 = vlaneseq
    %v1575 = vshrl.u32 %v1574, 7
    %v1576 = vsub.s32 3, %v1575
    %v1577 = vrot.slane %v1560, %v1576
    %v1578 = vlaneseq
    %v1579 = vshrl.u32 %v1578, 7
    %v1580 = vsub.s32 4, %v1579
    %v1581 = vrot.slane %v1560, %v1580
    %v1582 = vlaneseq
    %v1583 = vshrl.u32 %v1582, 7
    %v1584 = vsub.s32 5, %v1583
    %v1585 = vrot.slane %v1560, %v1584
    %v1586 = vlaneseq
    %v1587 = vshrl.u32 %v1586, 7
    %v1588 = vsub.s32 6, %v1587
    %v1589 = vrot.slane %v1560, %v1588
    %v1590 = vlaneseq
    %v1591 = vshrl.u32 %v1590, 7
    %v1592 = vsub.s32 7, %v1591
    %v1593 = vrot.slane %v1560, %v1592
    %v1858 = vunpack.c.l.b16 %v1304
    %v1859 = vunpack.c.h.b16 %v1304
    %v1860 = vunpack.c.l.b16 %v1305
    %v1861 = vunpack.c.h.b16 %v1305
    %v1862 = vunpack.c.l.b16 %v1306
    %v1863 = vunpack.c.h.b16 %v1306
    %v1864 = vunpack.c.l.b16 %v1307
    %v1865 = vunpack.c.h.b16 %v1307
    %v1866 = vunpack.c.l.b16 %v1308
    %v1867 = vunpack.c.h.b16 %v1308
    %v1868 = vunpack.c.l.b16 %v1309
    %v1869 = vunpack.c.h.b16 %v1309
    %v1870 = vunpack.c.l.b16 %v1310
    %v1871 = vunpack.c.h.b16 %v1310
    %v1872 = vunpack.c.l.b16 %v1311
    %v1873 = vunpack.c.h.b16 %v1311
    %v1874 = vunpack.c.l.b16 %v1312
    %v1875 = vunpack.c.h.b16 %v1312
    %v1876 = vunpack.c.l.b16 %v1313
    %v1877 = vunpack.c.h.b16 %v1313
    %v1878 = vunpack.c.l.b16 %v1314
    %v1879 = vunpack.c.h.b16 %v1314
    %v1880 = vunpack.c.l.b16 %v1315
    %v1881 = vunpack.c.h.b16 %v1315
    %v1882 = vunpack.c.l.b16 %v1316
    %v1883 = vunpack.c.h.b16 %v1316
    %v1884 = vunpack.c.l.b16 %v1317
    %v1885 = vunpack.c.h.b16 %v1317
    %v1886 = vunpack.c.l.b16 %v1318
    %v1887 = vunpack.c.h.b16 %v1318
    %v1888 = vunpack.c.l.b16 %v1319
    %v1889 = vunpack.c.h.b16 %v1319
    %v1890 = vunpack.c.l.b16 %v1320
    %v1891 = vunpack.c.h.b16 %v1320
    %v1892 = vunpack.c.l.b16 %v1321
    %v1893 = vunpack.c.h.b16 %v1321
    %v1894 = vunpack.c.l.b16 %v1322
    %v1895 = vunpack.c.h.b16 %v1322
    %v1896 = vunpack.c.l.b16 %v1323
    %v1897 = vunpack.c.h.b16 %v1323
    %v1898 = vunpack.c.l.b16 %v1324
    %v1899 = vunpack.c.h.b16 %v1324
    %v1900 = vunpack.c.l.b16 %v1325
    %v1901 = vunpack.c.h.b16 %v1325
    %v1902 = vunpack.c.l.b16 %v1326
    %v1903 = vunpack.c.h.b16 %v1326
    %v1904 = vunpack.c.l.b16 %v1327
    %v1905 = vunpack.c.h.b16 %v1327
    %v1906 = vunpack.c.l.b16 %v1328
    %v1907 = vunpack.c.h.b16 %v1328
    %v1908 = vunpack.c.l.b16 %v1329
    %v1909 = vunpack.c.h.b16 %v1329
    %v1910 = vunpack.c.l.b16 %v1330
    %v1911 = vunpack.c.h.b16 %v1330
    %v1912 = vunpack.c.l.b16 %v1331
    %v1913 = vunpack.c.h.b16 %v1331
    %v1914 = vunpack.c.l.b16 %v1332
    %v1915 = vunpack.c.h.b16 %v1332
    %v1916 = vunpack.c.l.b16 %v1333
    %v1917 = vunpack.c.h.b16 %v1333
    %v1918 = vunpack.c.l.b16 %v1334
    %v1919 = vunpack.c.h.b16 %v1334
    %v1920 = vunpack.c.l.b16 %v1335
    %v1921 = vunpack.c.h.b16 %v1335
    %v1922 = vunpack.c.l.b16 %v1336
    %v1923 = vunpack.c.h.b16 %v1336
    %v1924 = vunpack.c.l.b16 %v1337
    %v1925 = vunpack.c.h.b16 %v1337
    %v1926 = vunpack.c.l.b16 %v1338
    %v1927 = vunpack.c.h.b16 %v1338
    %v1928 = vunpack.c.l.b16 %v1339
    %v1929 = vunpack.c.h.b16 %v1339
    %v1930 = vunpack.c.l.b16 %v1340
    %v1931 = vunpack.c.h.b16 %v1340
    %v1932 = vunpack.c.l.b16 %v1341
    %v1933 = vunpack.c.h.b16 %v1341
    %v1934 = vunpack.c.l.b16 %v1342
    %v1935 = vunpack.c.h.b16 %v1342
    %v1936 = vunpack.c.l.b16 %v1343
    %v1937 = vunpack.c.h.b16 %v1343
    %v1938 = vunpack.c.l.b16 %v1344
    %v1939 = vunpack.c.h.b16 %v1344
    %v1940 = vunpack.c.l.b16 %v1345
    %v1941 = vunpack.c.h.b16 %v1345
    %v1942 = vunpack.c.l.b16 %v1346
    %v1943 = vunpack.c.h.b16 %v1346
    %v1944 = vunpack.c.l.b16 %v1347
    %v1945 = vunpack.c.h.b16 %v1347
    %v1946 = vunpack.c.l.b16 %v1348
    %v1947 = vunpack.c.h.b16 %v1348
    %v1948 = vunpack.c.l.b16 %v1349
    %v1949 = vunpack.c.h.b16 %v1349
    %v1950 = vunpack.c.l.b16 %v1350
    %v1951 = vunpack.c.h.b16 %v1350
    %v1952 = vunpack.c.l.b16 %v1351
    %v1953 = vunpack.c.h.b16 %v1351
    %v1954 = vunpack.c.l.b16 %v1352
    %v1955 = vunpack.c.h.b16 %v1352
    %v1956 = vunpack.c.l.b16 %v1353
    %v1957 = vunpack.c.h.b16 %v1353
    %v1958 = vunpack.c.l.b16 %v1354
    %v1959 = vunpack.c.h.b16 %v1354
    %v1960 = vunpack.c.l.b16 %v1355
    %v1961 = vunpack.c.h.b16 %v1355
    %v1962 = vunpack.c.l.b16 %v1356
    %v1963 = vunpack.c.h.b16 %v1356
    %v1964 = vunpack.c.l.b16 %v1357
    %v1965 = vunpack.c.h.b16 %v1357
    %v1966 = vunpack.c.l.b16 %v1358
    %v1967 = vunpack.c.h.b16 %v1358
    %v1968 = vunpack.c.l.b16 %v1359
    %v1969 = vunpack.c.h.b16 %v1359
    %v1970 = vunpack.c.l.b16 %v1360
    %v1971 = vunpack.c.h.b16 %v1360
    %v1972 = vunpack.c.l.b16 %v1361
    %v1973 = vunpack.c.h.b16 %v1361
    %v1974 = vunpack.c.l.b16 %v1362
    %v1975 = vunpack.c.h.b16 %v1362
    %v1976 = vunpack.c.l.b16 %v1363
    %v1977 = vunpack.c.h.b16 %v1363
    %v1978 = vunpack.c.l.b16 %v1364
    %v1979 = vunpack.c.h.b16 %v1364
    %v1980 = vunpack.c.l.b16 %v1365
    %v1981 = vunpack.c.h.b16 %v1365
    %v1982 = vunpack.c.l.b16 %v1366
    %v1983 = vunpack.c.h.b16 %v1366
    %v1984 = vunpack.c.l.b16 %v1367
    %v1985 = vunpack.c.h.b16 %v1367
    %v1986 = vunpack.c.l.b16 %v1368
    %v1987 = vunpack.c.h.b16 %v1368
    %v1988 = vunpack.c.l.b16 %v1369
    %v1989 = vunpack.c.h.b16 %v1369
    %v1990 = vunpack.c.l.b16 %v1370
    %v1991 = vunpack.c.h.b16 %v1370
    %v1992 = vunpack.c.l.b16 %v1371
    %v1993 = vunpack.c.h.b16 %v1371
    %v1994 = vunpack.c.l.b16 %v1372
    %v1995 = vunpack.c.h.b16 %v1372
    %v1996 = vunpack.c.l.b16 %v1373
    %v1997 = vunpack.c.h.b16 %v1373
    %v1998 = vunpack.c.l.b16 %v1374
    %v1999 = vunpack.c.h.b16 %v1374
    %v2000 = vunpack.c.l.b16 %v1375
    %v2001 = vunpack.c.h.b16 %v1375
    %v2002 = vunpack.c.l.b16 %v1376
    %v2003 = vunpack.c.h.b16 %v1376
    %v2004 = vunpack.c.l.b16 %v1377
    %v2005 = vunpack.c.h.b16 %v1377
    %v2006 = vunpack.c.l.b16 %v1378
    %v2007 = vunpack.c.h.b16 %v1378
    %v2008 = vunpack.c.l.b16 %v1379
    %v2009 = vunpack.c.h.b16 %v1379
    %v2010 = vunpack.c.l.b16 %v1380
    %v2011 = vunpack.c.h.b16 %v1380
    %v2012 = vunpack.c.l.b16 %v1381
    %v2013 = vunpack.c.h.b16 %v1381
    %v2014 = vunpack.c.l.b16 %v1382
    %v2015 = vunpack.c.h.b16 %v1382
    %v2016 = vunpack.c.l.b16 %v1383
    %v2017 = vunpack.c.h.b16 %v1383
    %v2018 = vunpack.c.l.b16 %v1384
    %v2019 = vunpack.c.h.b16 %v1384
    %v2020 = vunpack.c.l.b16 %v1385
    %v2021 = vunpack.c.h.b16 %v1385
    %v2022 = vunpack.c.l.b16 %v1386
    %v2023 = vunpack.c.h.b16 %v1386
    %v2024 = vunpack.c.l.b16 %v1387
    %v2025 = vunpack.c.h.b16 %v1387
    %v2026 = vunpack.c.l.b16 %v1388
    %v2027 = vunpack.c.h.b16 %v1388
    %v2028 = vunpack.c.l.b16 %v1389
    %v2029 = vunpack.c.h.b16 %v1389
    %v2030 = vunpack.c.l.b16 %v1390
    %v2031 = vunpack.c.h.b16 %v1390
    %v2032 = vunpack.c.l.b16 %v1391
    %v2033 = vunpack.c.h.b16 %v1391
    %v2034 = vunpack.c.l.b16 %v1392
    %v2035 = vunpack.c.h.b16 %v1392
    %v2036 = vunpack.c.l.b16 %v1393
    %v2037 = vunpack.c.h.b16 %v1393
    %v2038 = vunpack.c.l.b16 %v1394
    %v2039 = vunpack.c.h.b16 %v1394
    %v2040 = vunpack.c.l.b16 %v1395
    %v2041 = vunpack.c.h.b16 %v1395
    %v2042 = vunpack.c.l.b16 %v1396
    %v2043 = vunpack.c.h.b16 %v1396
    %v2044 = vunpack.c.l.b16 %v1397
    %v2045 = vunpack.c.h.b16 %v1397
    %v2046 = vunpack.c.l.b16 %v1398
    %v2047 = vunpack.c.h.b16 %v1398
    %v2048 = vunpack.c.l.b16 %v1399
    %v2049 = vunpack.c.h.b16 %v1399
    %v2050 = vunpack.c.l.b16 %v1400
    %v2051 = vunpack.c.h.b16 %v1400
    %v2052 = vunpack.c.l.b16 %v1401
    %v2053 = vunpack.c.h.b16 %v1401
    %v2054 = vunpack.c.l.b16 %v1402
    %v2055 = vunpack.c.h.b16 %v1402
    %v2056 = vunpack.c.l.b16 %v1403
    %v2057 = vunpack.c.h.b16 %v1403
    %v2058 = vunpack.c.l.b16 %v1404
    %v2059 = vunpack.c.h.b16 %v1404
    %v2060 = vunpack.c.l.b16 %v1405
    %v2061 = vunpack.c.h.b16 %v1405
    %v2062 = vunpack.c.l.b16 %v1406
    %v2063 = vunpack.c.h.b16 %v1406
    %v2064 = vunpack.c.l.b16 %v1407
    %v2065 = vunpack.c.h.b16 %v1407
    %v2066 = vunpack.c.l.b16 %v1408
    %v2067 = vunpack.c.h.b16 %v1408
    %v2068 = vunpack.c.l.b16 %v1409
    %v2069 = vunpack.c.h.b16 %v1409
    %v2070 = vunpack.c.l.b16 %v1410
    %v2071 = vunpack.c.h.b16 %v1410
    %v2072 = vunpack.c.l.b16 %v1411
    %v2073 = vunpack.c.h.b16 %v1411
    %v2074 = vunpack.c.l.b16 %v1412
    %v2075 = vunpack.c.h.b16 %v1412
    %v2076 = vunpack.c.l.b16 %v1413
    %v2077 = vunpack.c.h.b16 %v1413
    %v2078 = vunpack.c.l.b16 %v1414
    %v2079 = vunpack.c.h.b16 %v1414
    %v2080 = vunpack.c.l.b16 %v1415
    %v2081 = vunpack.c.h.b16 %v1415
    %v2082 = vunpack.c.l.b16 %v1416
    %v2083 = vunpack.c.h.b16 %v1416
    %v2084 = vunpack.c.l.b16 %v1417
    %v2085 = vunpack.c.h.b16 %v1417
    %v2086 = vunpack.c.l.b16 %v1418
    %v2087 = vunpack.c.h.b16 %v1418
    %v2088 = vunpack.c.l.b16 %v1419
    %v2089 = vunpack.c.h.b16 %v1419
    %v2090 = vunpack.c.l.b16 %v1420
    %v2091 = vunpack.c.h.b16 %v1420
    %v2092 = vunpack.c.l.b16 %v1421
    %v2093 = vunpack.c.h.b16 %v1421
    %v2094 = vunpack.c.l.b16 %v1422
    %v2095 = vunpack.c.h.b16 %v1422
    %v2096 = vunpack.c.l.b16 %v1423
    %v2097 = vunpack.c.h.b16 %v1423
    %v2098 = vunpack.c.l.b16 %v1424
    %v2099 = vunpack.c.h.b16 %v1424
    %v2100 = vunpack.c.l.b16 %v1425
    %v2101 = vunpack.c.h.b16 %v1425
    %v2102 = vunpack.c.l.b16 %v1426
    %v2103 = vunpack.c.h.b16 %v1426
    %v2104 = vunpack.c.l.b16 %v1427
    %v2105 = vunpack.c.h.b16 %v1427
    %v2106 = vunpack.c.l.b16 %v1428
    %v2107 = vunpack.c.h.b16 %v1428
    %v2108 = vunpack.c.l.b16 %v1429
    %v2109 = vunpack.c.h.b16 %v1429
    %v2110 = vunpack.c.l.b16 %v1430
    %v2111 = vunpack.c.h.b16 %v1430
    %v2112 = vunpack.c.l.b16 %v1431
    %v2113 = vunpack.c.h.b16 %v1431
    %v2114 = vunpack.c.l.b16 %v1432
    %v2115 = vunpack.c.h.b16 %v1432
    %v2116 = vunpack.c.l.b16 %v1433
    %v2117 = vunpack.c.h.b16 %v1433
    %v2118 = vunpack.c.l.b16 %v1434
    %v2119 = vunpack.c.h.b16 %v1434
    %v2120 = vunpack.c.l.b16 %v1435
    %v2121 = vunpack.c.h.b16 %v1435
    %v2122 = vunpack.c.l.b16 %v1436
    %v2123 = vunpack.c.h.b16 %v1436
    %v2124 = vunpack.c.l.b16 %v1437
    %v2125 = vunpack.c.h.b16 %v1437
    %v2126 = vunpack.c.l.b16 %v1438
    %v2127 = vunpack.c.h.b16 %v1438
    %v2128 = vunpack.c.l.b16 %v1439
    %v2129 = vunpack.c.h.b16 %v1439
    %v2130 = vunpack.c.l.b16 %v1440
    %v2131 = vunpack.c.h.b16 %v1440
    %v2132 = vunpack.c.l.b16 %v1441
    %v2133 = vunpack.c.h.b16 %v1441
    %v2134 = vunpack.c.l.b16 %v1442
    %v2135 = vunpack.c.h.b16 %v1442
    %v2136 = vunpack.c.l.b16 %v1443
    %v2137 = vunpack.c.h.b16 %v1443
    %v2138 = vunpack.c.l.b16 %v1444
    %v2139 = vunpack.c.h.b16 %v1444
    %v2140 = vunpack.c.l.b16 %v1445
    %v2141 = vunpack.c.h.b16 %v1445
    %v2142 = vunpack.c.l.b16 %v1446
    %v2143 = vunpack.c.h.b16 %v1446
    %v2144 = vunpack.c.l.b16 %v1447
    %v2145 = vunpack.c.h.b16 %v1447
    %v2146 = vunpack.c.l.b16 %v1448
    %v2147 = vunpack.c.h.b16 %v1448
    %v2148 = vunpack.c.l.b16 %v1449
    %v2149 = vunpack.c.h.b16 %v1449
    %v2150 = vunpack.c.l.b16 %v1450
    %v2151 = vunpack.c.h.b16 %v1450
    %v2152 = vunpack.c.l.b16 %v1451
    %v2153 = vunpack.c.h.b16 %v1451
    %v2154 = vunpack.c.l.b16 %v1452
    %v2155 = vunpack.c.h.b16 %v1452
    %v2156 = vunpack.c.l.b16 %v1453
    %v2157 = vunpack.c.h.b16 %v1453
    %v2158 = vunpack.c.l.b16 %v1454
    %v2159 = vunpack.c.h.b16 %v1454
    %v2160 = vunpack.c.l.b16 %v1455
    %v2161 = vunpack.c.h.b16 %v1455
    %v2162 = vunpack.c.l.b16 %v1456
    %v2163 = vunpack.c.h.b16 %v1456
    %v2164 = vunpack.c.l.b16 %v1457
    %v2165 = vunpack.c.h.b16 %v1457
    %v2166 = vunpack.c.l.b16 %v1458
    %v2167 = vunpack.c.h.b16 %v1458
    %v2168 = vunpack.c.l.b16 %v1459
    %v2169 = vunpack.c.h.b16 %v1459
    %v2170 = vunpack.c.l.b16 %v1460
    %v2171 = vunpack.c.h.b16 %v1460
    %v2172 = vunpack.c.l.b16 %v1461
    %v2173 = vunpack.c.h.b16 %v1461
    %v2174 = vunpack.c.l.b16 %v1462
    %v2175 = vunpack.c.h.b16 %v1462
    %v2176 = vunpack.c.l.b16 %v1463
    %v2177 = vunpack.c.h.b16 %v1463
    %v2178 = vunpack.c.l.b16 %v1464
    %v2179 = vunpack.c.h.b16 %v1464
    %v2180 = vunpack.c.l.b16 %v1465
    %v2181 = vunpack.c.h.b16 %v1465
    %v2182 = vunpack.c.l.b16 %v1466
    %v2183 = vunpack.c.h.b16 %v1466
    %v2184 = vunpack.c.l.b16 %v1467
    %v2185 = vunpack.c.h.b16 %v1467
    %v2186 = vunpack.c.l.b16 %v1468
    %v2187 = vunpack.c.h.b16 %v1468
    %v2188 = vunpack.c.l.b16 %v1469
    %v2189 = vunpack.c.h.b16 %v1469
    %v2190 = vunpack.c.l.b16 %v1470
    %v2191 = vunpack.c.h.b16 %v1470
    %v2192 = vunpack.c.l.b16 %v1471
    %v2193 = vunpack.c.h.b16 %v1471
    %v2194 = vunpack.c.l.b16 %v1472
    %v2195 = vunpack.c.h.b16 %v1472
    %v2196 = vunpack.c.l.b16 %v1473
    %v2197 = vunpack.c.h.b16 %v1473
    %v2198 = vunpack.c.l.b16 %v1474
    %v2199 = vunpack.c.h.b16 %v1474
    %v2200 = vunpack.c.l.b16 %v1475
    %v2201 = vunpack.c.h.b16 %v1475
    %v2202 = vunpack.c.l.b16 %v1476
    %v2203 = vunpack.c.h.b16 %v1476
    %v2204 = vunpack.c.l.b16 %v1477
    %v2205 = vunpack.c.h.b16 %v1477
    %v2206 = vunpack.c.l.b16 %v1478
    %v2207 = vunpack.c.h.b16 %v1478
    %v2208 = vunpack.c.l.b16 %v1479
    %v2209 = vunpack.c.h.b16 %v1479
    %v2210 = vunpack.c.l.b16 %v1480
    %v2211 = vunpack.c.h.b16 %v1480
    %v2212 = vunpack.c.l.b16 %v1481
    %v2213 = vunpack.c.h.b16 %v1481
    %v2214 = vunpack.c.l.b16 %v1482
    %v2215 = vunpack.c.h.b16 %v1482
    %v2216 = vunpack.c.l.b16 %v1483
    %v2217 = vunpack.c.h.b16 %v1483
    %v2218 = vunpack.c.l.b16 %v1484
    %v2219 = vunpack.c.h.b16 %v1484
    %v2220 = vunpack.c.l.b16 %v1485
    %v2221 = vunpack.c.h.b16 %v1485
    %v2222 = vunpack.c.l.b16 %v1486
    %v2223 = vunpack.c.h.b16 %v1486
    %v2224 = vunpack.c.l.b16 %v1487
    %v2225 = vunpack.c.h.b16 %v1487
    %v2226 = vunpack.c.l.b16 %v1488
    %v2227 = vunpack.c.h.b16 %v1488
    %v2228 = vunpack.c.l.b16 %v1489
    %v2229 = vunpack.c.h.b16 %v1489
    %v2230 = vunpack.c.l.b16 %v1490
    %v2231 = vunpack.c.h.b16 %v1490
    %v2232 = vunpack.c.l.b16 %v1491
    %v2233 = vunpack.c.h.b16 %v1491
    %v2234 = vunpack.c.l.b16 %v1492
    %v2235 = vunpack.c.h.b16 %v1492
    %v2236 = vunpack.c.l.b16 %v1493
    %v2237 = vunpack.c.h.b16 %v1493
    %v2238 = vunpack.c.l.b16 %v1494
    %v2239 = vunpack.c.h.b16 %v1494
    %v2240 = vunpack.c.l.b16 %v1495
    %v2241 = vunpack.c.h.b16 %v1495
    %v2242 = vunpack.c.l.b16 %v1496
    %v2243 = vunpack.c.h.b16 %v1496
    %v2244 = vunpack.c.l.b16 %v1497
    %v2245 = vunpack.c.h.b16 %v1497
    %v2246 = vunpack.c.l.b16 %v1498
    %v2247 = vunpack.c.h.b16 %v1498
    %v2248 = vunpack.c.l.b16 %v1499
    %v2249 = vunpack.c.h.b16 %v1499
    %v2250 = vunpack.c.l.b16 %v1500
    %v2251 = vunpack.c.h.b16 %v1500
    %v2252 = vunpack.c.l.b16 %v1501
    %v2253 = vunpack.c.h.b16 %v1501
    %v2254 = vunpack.c.l.b16 %v1502
    %v2255 = vunpack.c.h.b16 %v1502
    %v2256 = vunpack.c.l.b16 %v1503
    %v2257 = vunpack.c.h.b16 %v1503
    %v2258 = vunpack.c.l.b16 %v1504
    %v2259 = vunpack.c.h.b16 %v1504
    %v2260 = vunpack.c.l.b16 %v1505
    %v2261 = vunpack.c.h.b16 %v1505
    %v2262 = vunpack.c.l.b16 %v1506
    %v2263 = vunpack.c.h.b16 %v1506
    %v2264 = vunpack.c.l.b16 %v1507
    %v2265 = vunpack.c.h.b16 %v1507
    %v2266 = vunpack.c.l.b16 %v1508
    %v2267 = vunpack.c.h.b16 %v1508
    %v2268 = vunpack.c.l.b16 %v1509
    %v2269 = vunpack.c.h.b16 %v1509
    %v2270 = vunpack.c.l.b16 %v1510
    %v2271 = vunpack.c.h.b16 %v1510
    %v2272 = vunpack.c.l.b16 %v1511
    %v2273 = vunpack.c.h.b16 %v1511
    %v2274 = vunpack.c.l.b16 %v1512
    %v2275 = vunpack.c.h.b16 %v1512
    %v2276 = vunpack.c.l.b16 %v1513
    %v2277 = vunpack.c.h.b16 %v1513
    %v2278 = vunpack.c.l.b16 %v1514
    %v2279 = vunpack.c.h.b16 %v1514
    %v2280 = vunpack.c.l.b16 %v1515
    %v2281 = vunpack.c.h.b16 %v1515
    %v2282 = vunpack.c.l.b16 %v1516
    %v2283 = vunpack.c.h.b16 %v1516
    %v2284 = vunpack.c.l.b16 %v1517
    %v2285 = vunpack.c.h.b16 %v1517
    %v2286 = vunpack.c.l.b16 %v1518
    %v2287 = vunpack.c.h.b16 %v1518
    %v2288 = vunpack.c.l.b16 %v1519
    %v2289 = vunpack.c.h.b16 %v1519
    %v2290 = vunpack.c.l.b16 %v1520
    %v2291 = vunpack.c.h.b16 %v1520
    %v2292 = vunpack.c.l.b16 %v1521
    %v2293 = vunpack.c.h.b16 %v1521
    %v2294 = vunpack.c.l.b16 %v1522
    %v2295 = vunpack.c.h.b16 %v1522
    %v2296 = vunpack.c.l.b16 %v1523
    %v2297 = vunpack.c.h.b16 %v1523
    %v2298 = vunpack.c.l.b16 %v1524
    %v2299 = vunpack.c.h.b16 %v1524
    %v2300 = vunpack.c.l.b16 %v1525
    %v2301 = vunpack.c.h.b16 %v1525
    %v2302 = vunpack.c.l.b16 %v1526
    %v2303 = vunpack.c.h.b16 %v1526
    %v2304 = vunpack.c.l.b16 %v1527
    %v2305 = vunpack.c.h.b16 %v1527
    %v2306 = vunpack.c.l.b16 %v1528
    %v2307 = vunpack.c.h.b16 %v1528
    %v2308 = vunpack.c.l.b16 %v1529
    %v2309 = vunpack.c.h.b16 %v1529
    %v2310 = vunpack.c.l.b16 %v1530
    %v2311 = vunpack.c.h.b16 %v1530
    %v2312 = vunpack.c.l.b16 %v1531
    %v2313 = vunpack.c.h.b16 %v1531
    %v2314 = vunpack.c.l.b16 %v1532
    %v2315 = vunpack.c.h.b16 %v1532
    %v2316 = vunpack.c.l.b16 %v1533
    %v2317 = vunpack.c.h.b16 %v1533
    %v2318 = vunpack.c.l.b16 %v1534
    %v2319 = vunpack.c.h.b16 %v1534
    %v2320 = vunpack.c.l.b16 %v1535
    %v2321 = vunpack.c.h.b16 %v1535
    %v2322 = vunpack.c.l.b16 %v1536
    %v2323 = vunpack.c.h.b16 %v1536
    %v2324 = vunpack.c.l.b16 %v1537
    %v2325 = vunpack.c.h.b16 %v1537
    %v2326 = vunpack.c.l.b16 %v1538
    %v2327 = vunpack.c.h.b16 %v1538
    %v2328 = vunpack.c.l.b16 %v1539
    %v2329 = vunpack.c.h.b16 %v1539
    %v2330 = vunpack.c.l.b16 %v1540
    %v2331 = vunpack.c.h.b16 %v1540
    %v2332 = vunpack.c.l.b16 %v1541
    %v2333 = vunpack.c.h.b16 %v1541
    %v2334 = vunpack.c.l.b16 %v1542
    %v2335 = vunpack.c.h.b16 %v1542
    %v2336 = vunpack.c.l.b16 %v1543
    %v2337 = vunpack.c.h.b16 %v1543
    %v2338 = vunpack.c.l.b16 %v1544
    %v2339 = vunpack.c.h.b16 %v1544
    %v2340 = vunpack.c.l.b16 %v1545
    %v2341 = vunpack.c.h.b16 %v1545
    %v2342 = vunpack.c.l.b16 %v1546
    %v2343 = vunpack.c.h.b16 %v1546
    %v2344 = vunpack.c.l.b16 %v1547
    %v2345 = vunpack.c.h.b16 %v1547
    %v2346 = vunpack.c.l.b16 %v1548
    %v2347 = vunpack.c.h.b16 %v1548
    %v2348 = vunpack.c.l.b16 %v1549
    %v2349 = vunpack.c.h.b16 %v1549
    %v2350 = vunpack.c.l.b16 %v1550
    %v2351 = vunpack.c.h.b16 %v1550
    %v2352 = vunpack.c.l.b16 %v1551
    %v2353 = vunpack.c.h.b16 %v1551
    %v2354 = vunpack.c.l.b16 %v1552
    %v2355 = vunpack.c.h.b16 %v1552
    %v2356 = vunpack.c.l.b16 %v1553
    %v2357 = vunpack.c.h.b16 %v1553
    %v2358 = vunpack.c.l.b16 %v1554
    %v2359 = vunpack.c.h.b16 %v1554
    %v2360 = vunpack.c.l.b16 %v1555
    %v2361 = vunpack.c.h.b16 %v1555
    %v2362 = vunpack.c.l.b16 %v1556
    %v2363 = vunpack.c.h.b16 %v1556
    %v2364 = vunpack.c.l.b16 %v1557
    %v2365 = vunpack.c.h.b16 %v1557
    %v2366 = vunpack.c.l.b16 %v1558
    %v2367 = vunpack.c.h.b16 %v1558
    %v2368 = vunpack.c.l.b16 %v1559
    %v2369 = vunpack.c.h.b16 %v1559
    %v2370 = vpack.c.b16 %v1866, %v1858
    %v2371 = vpack.c.b16 %v1867, %v1859
    %v2372 = vpack.c.b16 %v1868, %v1860
    %v2373 = vpack.c.b16 %v1869, %v1861
    %v2374 = vpack.c.b16 %v1870, %v1862
    %v2375 = vpack.c.b16 %v1871, %v1863
    %v2376 = vpack.c.b16 %v1872, %v1864
    %v2377 = vpack.c.b16 %v1873, %v1865
    %v2378 = vpack.c.b16 %v1882, %v1874
    %v2379 = vpack.c.b16 %v1883, %v1875
    %v2380 = vpack.c.b16 %v1884, %v1876
    %v2381 = vpack.c.b16 %v1885, %v1877
    %v2382 = vpack.c.b16 %v1886, %v1878
    %v2383 = vpack.c.b16 %v1887, %v1879
    %v2384 = vpack.c.b16 %v1888, %v1880
    %v2385 = vpack.c.b16 %v1889, %v1881
    %v2386 = vpack.c.b16 %v1898, %v1890
    %v2387 = vpack.c.b16 %v1899, %v1891
    %v2388 = vpack.c.b16 %v1900, %v1892
    %v2389 = vpack.c.b16 %v1901, %v1893
    %v2390 = vpack.c.b16 %v1902, %v1894
    %v2391 = vpack.c.b16 %v1903, %v1895
    %v2392 = vpack.c.b16 %v1904, %v1896
    %v2393 = vpack.c.b16 %v1905, %v1897
    %v2394 = vpack.c.b16 %v1914, %v1906
    %v2395 = vpack.c.b16 %v1915, %v1907
    %v2396 = vpack.c.b16 %v1916, %v1908
    %v2397 = vpack.c.b16 %v1917, %v1909
    %v2398 = vpack.c.b16 %v1918, %v1910
    %v2399 = vpack.c.b16 %v1919, %v1911
    %v2400 = vpack.c.b16 %v1920, %v1912
    %v2401 = vpack.c.b16 %v1921, %v1913
    %v2402 = vpack.c.b16 %v1930, %v1922
    %v2403 = vpack.c.b16 %v1931, %v1923
    %v2404 = vpack.c.b16 %v1932, %v1924
    %v2405 = vpack.c.b16 %v1933, %v1925
    %v2406 = vpack.c.b16 %v1934, %v1926
    %v2407 = vpack.c.b16 %v1935, %v1927
    %v2408 = vpack.c.b16 %v1936, %v1928
    %v2409 = vpack.c.b16 %v1937, %v1929
    %v2410 = vpack.c.b16 %v1946, %v1938
    %v2411 = vpack.c.b16 %v1947, %v1939
    %v2412 = vpack.c.b16 %v1948, %v1940
    %v2413 = vpack.c.b16 %v1949, %v1941
    %v2414 = vpack.c.b16 %v1950, %v1942
    %v2415 = vpack.c.b16 %v1951, %v1943
    %v2416 = vpack.c.b16 %v1952, %v1944
    %v2417 = vpack.c.b16 %v1953, %v1945
    %v2418 = vpack.c.b16 %v1962, %v1954
    %v2419 = vpack.c.b16 %v1963, %v1955
    %v2420 = vpack.c.b16 %v1964, %v1956
    %v2421 = vpack.c.b16 %v1965, %v1957
    %v2422 = vpack.c.b16 %v1966, %v1958
    %v2423 = vpack.c.b16 %v1967, %v1959
    %v2424 = vpack.c.b16 %v1968, %v1960
    %v2425 = vpack.c.b16 %v1969, %v1961
    %v2426 = vpack.c.b16 %v1978, %v1970
    %v2427 = vpack.c.b16 %v1979, %v1971
    %v2428 = vpack.c.b16 %v1980, %v1972
    %v2429 = vpack.c.b16 %v1981, %v1973
    %v2430 = vpack.c.b16 %v1982, %v1974
    %v2431 = vpack.c.b16 %v1983, %v1975
    %v2432 = vpack.c.b16 %v1984, %v1976
    %v2433 = vpack.c.b16 %v1985, %v1977
    %v2434 = vpack.c.b16 %v1994, %v1986
    %v2435 = vpack.c.b16 %v1995, %v1987
    %v2436 = vpack.c.b16 %v1996, %v1988
    %v2437 = vpack.c.b16 %v1997, %v1989
    %v2438 = vpack.c.b16 %v1998, %v1990
    %v2439 = vpack.c.b16 %v1999, %v1991
    %v2440 = vpack.c.b16 %v2000, %v1992
    %v2441 = vpack.c.b16 %v2001, %v1993
    %v2442 = vpack.c.b16 %v2010, %v2002
    %v2443 = vpack.c.b16 %v2011, %v2003
    %v2444 = vpack.c.b16 %v2012, %v2004
    %v2445 = vpack.c.b16 %v2013, %v2005
    %v2446 = vpack.c.b16 %v2014, %v2006
    %v2447 = vpack.c.b16 %v2015, %v2007
    %v2448 = vpack.c.b16 %v2016, %v2008
    %v2449 = vpack.c.b16 %v2017, %v2009
    %v2450 = vpack.c.b16 %v2026, %v2018
    %v2451 = vpack.c.b16 %v2027, %v2019
    %v2452 = vpack.c.b16 %v2028, %v2020
    %v2453 = vpack.c.b16 %v2029, %v2021
    %v2454 = vpack.c.b16 %v2030, %v2022
    %v2455 = vpack.c.b16 %v2031, %v2023
    %v2456 = vpack.c.b16 %v2032, %v2024
    %v2457 = vpack.c.b16 %v2033, %v2025
    %v2458 = vpack.c.b16 %v2042, %v2034
    %v2459 = vpack.c.b16 %v2043, %v2035
    %v2460 = vpack.c.b16 %v2044, %v2036
    %v2461 = vpack.c.b16 %v2045, %v2037
    %v2462 = vpack.c.b16 %v2046, %v2038
    %v2463 = vpack.c.b16 %v2047, %v2039
    %v2464 = vpack.c.b16 %v2048, %v2040
    %v2465 = vpack.c.b16 %v2049, %v2041
    %v2466 = vpack.c.b16 %v2058, %v2050
    %v2467 = vpack.c.b16 %v2059, %v2051
    %v2468 = vpack.c.b16 %v2060, %v2052
    %v2469 = vpack.c.b16 %v2061, %v2053
    %v2470 = vpack.c.b16 %v2062, %v2054
    %v2471 = vpack.c.b16 %v2063, %v2055
    %v2472 = vpack.c.b16 %v2064, %v2056
    %v2473 = vpack.c.b16 %v2065, %v2057
    %v2474 = vpack.c.b16 %v2074, %v2066
    %v2475 = vpack.c.b16 %v2075, %v2067
    %v2476 = vpack.c.b16 %v2076, %v2068
    %v2477 = vpack.c.b16 %v2077, %v2069
    %v2478 = vpack.c.b16 %v2078, %v2070
    %v2479 = vpack.c.b16 %v2079, %v2071
    %v2480 = vpack.c.b16 %v2080, %v2072
    %v2481 = vpack.c.b16 %v2081, %v2073
    %v2482 = vpack.c.b16 %v2090, %v2082
    %v2483 = vpack.c.b16 %v2091, %v2083
    %v2484 = vpack.c.b16 %v2092, %v2084
    %v2485 = vpack.c.b16 %v2093, %v2085
    %v2486 = vpack.c.b16 %v2094, %v2086
    %v2487 = vpack.c.b16 %v2095, %v2087
    %v2488 = vpack.c.b16 %v2096, %v2088
    %v2489 = vpack.c.b16 %v2097, %v2089
    %v2490 = vpack.c.b16 %v2106, %v2098
    %v2491 = vpack.c.b16 %v2107, %v2099
    %v2492 = vpack.c.b16 %v2108, %v2100
    %v2493 = vpack.c.b16 %v2109, %v2101
    %v2494 = vpack.c.b16 %v2110, %v2102
    %v2495 = vpack.c.b16 %v2111, %v2103
    %v2496 = vpack.c.b16 %v2112, %v2104
    %v2497 = vpack.c.b16 %v2113, %v2105
    %v2498 = vpack.c.b16 %v2122, %v2114
    %v2499 = vpack.c.b16 %v2123, %v2115
    %v2500 = vpack.c.b16 %v2124, %v2116
    %v2501 = vpack.c.b16 %v2125, %v2117
    %v2502 = vpack.c.b16 %v2126, %v2118
    %v2503 = vpack.c.b16 %v2127, %v2119
    %v2504 = vpack.c.b16 %v2128, %v2120
    %v2505 = vpack.c.b16 %v2129, %v2121
    %v2506 = vpack.c.b16 %v2138, %v2130
    %v2507 = vpack.c.b16 %v2139, %v2131
    %v2508 = vpack.c.b16 %v2140, %v2132
    %v2509 = vpack.c.b16 %v2141, %v2133
    %v2510 = vpack.c.b16 %v2142, %v2134
    %v2511 = vpack.c.b16 %v2143, %v2135
    %v2512 = vpack.c.b16 %v2144, %v2136
    %v2513 = vpack.c.b16 %v2145, %v2137
    %v2514 = vpack.c.b16 %v2154, %v2146
    %v2515 = vpack.c.b16 %v2155, %v2147
    %v2516 = vpack.c.b16 %v2156, %v2148
    %v2517 = vpack.c.b16 %v2157, %v2149
    %v2518 = vpack.c.b16 %v2158, %v2150
    %v2519 = vpack.c.b16 %v2159, %v2151
    %v2520 = vpack.c.b16 %v2160, %v2152
    %v2521 = vpack.c.b16 %v2161, %v2153
    %v2522 = vpack.c.b16 %v2170, %v2162
    %v2523 = vpack.c.b16 %v2171, %v2163
    %v2524 = vpack.c.b16 %v2172, %v2164
    %v2525 = vpack.c.b16 %v2173, %v2165
    %v2526 = vpack.c.b16 %v2174, %v2166
    %v2527 = vpack.c.b16 %v2175, %v2167
    %v2528 = vpack.c.b16 %v2176, %v2168
    %v2529 = vpack.c.b16 %v2177, %v2169
    %v2530 = vpack.c.b16 %v2186, %v2178
    %v2531 = vpack.c.b16 %v2187, %v2179
    %v2532 = vpack.c.b16 %v2188, %v2180
    %v2533 = vpack.c.b16 %v2189, %v2181
    %v2534 = vpack.c.b16 %v2190, %v2182
    %v2535 = vpack.c.b16 %v2191, %v2183
    %v2536 = vpack.c.b16 %v2192, %v2184
    %v2537 = vpack.c.b16 %v2193, %v2185
    %v2538 = vpack.c.b16 %v2202, %v2194
    %v2539 = vpack.c.b16 %v2203, %v2195
    %v2540 = vpack.c.b16 %v2204, %v2196
    %v2541 = vpack.c.b16 %v2205, %v2197
    %v2542 = vpack.c.b16 %v2206, %v2198
    %v2543 = vpack.c.b16 %v2207, %v2199
    %v2544 = vpack.c.b16 %v2208, %v2200
    %v2545 = vpack.c.b16 %v2209, %v2201
    %v2546 = vpack.c.b16 %v2218, %v2210
    %v2547 = vpack.c.b16 %v2219, %v2211
    %v2548 = vpack.c.b16 %v2220, %v2212
    %v2549 = vpack.c.b16 %v2221, %v2213
    %v2550 = vpack.c.b16 %v2222, %v2214
    %v2551 = vpack.c.b16 %v2223, %v2215
    %v2552 = vpack.c.b16 %v2224, %v2216
    %v2553 = vpack.c.b16 %v2225, %v2217
    %v2554 = vpack.c.b16 %v2234, %v2226
    %v2555 = vpack.c.b16 %v2235, %v2227
    %v2556 = vpack.c.b16 %v2236, %v2228
    %v2557 = vpack.c.b16 %v2237, %v2229
    %v2558 = vpack.c.b16 %v2238, %v2230
    %v2559 = vpack.c.b16 %v2239, %v2231
    %v2560 = vpack.c.b16 %v2240, %v2232
    %v2561 = vpack.c.b16 %v2241, %v2233
    %v2562 = vpack.c.b16 %v2250, %v2242
    %v2563 = vpack.c.b16 %v2251, %v2243
    %v2564 = vpack.c.b16 %v2252, %v2244
    %v2565 = vpack.c.b16 %v2253, %v2245
    %v2566 = vpack.c.b16 %v2254, %v2246
    %v2567 = vpack.c.b16 %v2255, %v2247
    %v2568 = vpack.c.b16 %v2256, %v2248
    %v2569 = vpack.c.b16 %v2257, %v2249
    %v2570 = vpack.c.b16 %v2266, %v2258
    %v2571 = vpack.c.b16 %v2267, %v2259
    %v2572 = vpack.c.b16 %v2268, %v2260
    %v2573 = vpack.c.b16 %v2269, %v2261
    %v2574 = vpack.c.b16 %v2270, %v2262
    %v2575 = vpack.c.b16 %v2271, %v2263
    %v2576 = vpack.c.b16 %v2272, %v2264
    %v2577 = vpack.c.b16 %v2273, %v2265
    %v2578 = vpack.c.b16 %v2282, %v2274
    %v2579 = vpack.c.b16 %v2283, %v2275
    %v2580 = vpack.c.b16 %v2284, %v2276
    %v2581 = vpack.c.b16 %v2285, %v2277
    %v2582 = vpack.c.b16 %v2286, %v2278
    %v2583 = vpack.c.b16 %v2287, %v2279
    %v2584 = vpack.c.b16 %v2288, %v2280
    %v2585 = vpack.c.b16 %v2289, %v2281
    %v2586 = vpack.c.b16 %v2298, %v2290
    %v2587 = vpack.c.b16 %v2299, %v2291
    %v2588 = vpack.c.b16 %v2300, %v2292
    %v2589 = vpack.c.b16 %v2301, %v2293
    %v2590 = vpack.c.b16 %v2302, %v2294
    %v2591 = vpack.c.b16 %v2303, %v2295
    %v2592 = vpack.c.b16 %v2304, %v2296
    %v2593 = vpack.c.b16 %v2305, %v2297
    %v2594 = vpack.c.b16 %v2314, %v2306
    %v2595 = vpack.c.b16 %v2315, %v2307
    %v2596 = vpack.c.b16 %v2316, %v2308
    %v2597 = vpack.c.b16 %v2317, %v2309
    %v2598 = vpack.c.b16 %v2318, %v2310
    %v2599 = vpack.c.b16 %v2319, %v2311
    %v2600 = vpack.c.b16 %v2320, %v2312
    %v2601 = vpack.c.b16 %v2321, %v2313
    %v2602 = vpack.c.b16 %v2330, %v2322
    %v2603 = vpack.c.b16 %v2331, %v2323
    %v2604 = vpack.c.b16 %v2332, %v2324
    %v2605 = vpack.c.b16 %v2333, %v2325
    %v2606 = vpack.c.b16 %v2334, %v2326
    %v2607 = vpack.c.b16 %v2335, %v2327
    %v2608 = vpack.c.b16 %v2336, %v2328
    %v2609 = vpack.c.b16 %v2337, %v2329
    %v2610 = vpack.c.b16 %v2346, %v2338
    %v2611 = vpack.c.b16 %v2347, %v2339
    %v2612 = vpack.c.b16 %v2348, %v2340
    %v2613 = vpack.c.b16 %v2349, %v2341
    %v2614 = vpack.c.b16 %v2350, %v2342
    %v2615 = vpack.c.b16 %v2351, %v2343
    %v2616 = vpack.c.b16 %v2352, %v2344
    %v2617 = vpack.c.b16 %v2353, %v2345
    %v2618 = vpack.c.b16 %v2362, %v2354
    %v2619 = vpack.c.b16 %v2363, %v2355
    %v2620 = vpack.c.b16 %v2364, %v2356
    %v2621 = vpack.c.b16 %v2365, %v2357
    %v2622 = vpack.c.b16 %v2366, %v2358
    %v2623 = vpack.c.b16 %v2367, %v2359
    %v2624 = vpack.c.b16 %v2368, %v2360
    %v2625 = vpack.c.b16 %v2369, %v2361
    %2882 = vmatprep.subr.bf16.mxu0 %v2427
    %2883 = vmatpush1.bf16.msra.mxu0 %v2426
    %2884 = vmatprep.subr.bf16.mxu0 %v2419
    %2885 = vmatpush1.bf16.msra.mxu0 %v2418
    %2886 = vmatprep.subr.bf16.mxu0 %v2411
    %2887 = vmatpush1.bf16.msra.mxu0 %v2410
    %2888 = vmatprep.subr.bf16.mxu0 %v2403
    %2889 = vmatpush1.bf16.msra.mxu0 %v2402
    %2890 = vmatprep.subr.bf16.mxu0 %v2395
    %2891 = vmatpush1.bf16.msra.mxu0 %v2394
    %2892 = vmatprep.subr.bf16.mxu0 %v2387
    %2893 = vmatpush1.bf16.msra.mxu0 %v2386
    %2894 = vmatprep.subr.bf16.mxu0 %v2379
    %2895 = vmatpush1.bf16.msra.mxu0 %v2378
    %2896 = vmatprep.subr.bf16.mxu0 %v2371
    %2897 = vmatpush1.bf16.msra.mxu0 %v2370
    %2898 = vmatprep.subr.bf16.mxu0 %v2491
    %2899 = vmatpush2.bf16.msra.mxu0 %v2490
    %2900 = vmatprep.subr.bf16.mxu0 %v2483
    %2901 = vmatpush2.bf16.msra.mxu0 %v2482
    %2902 = vmatprep.subr.bf16.mxu0 %v2475
    %2903 = vmatpush2.bf16.msra.mxu0 %v2474
    %2904 = vmatprep.subr.bf16.mxu0 %v2467
    %2905 = vmatpush2.bf16.msra.mxu0 %v2466
    %2906 = vmatprep.subr.bf16.mxu0 %v2459
    %2907 = vmatpush2.bf16.msra.mxu0 %v2458
    %2908 = vmatprep.subr.bf16.mxu0 %v2451
    %2909 = vmatpush2.bf16.msra.mxu0 %v2450
    %2910 = vmatprep.subr.bf16.mxu0 %v2443
    %2911 = vmatpush2.bf16.msra.mxu0 %v2442
    %2912 = vmatprep.subr.bf16.mxu0 %v2435
    %2913 = vmatpush2.bf16.msra.mxu0 %v2434
    %2914 = vmatprep.mubr.bf16.mxu0 %v1301
    %2915 = vmatmul.mubr.bf16.gmra.mxu0 %v1300
    %v2916 = vpop.f32.mrf.mxu0
    %v2917 = vadd.f32 %v1565, %v2916
    %v2918 = vpop.f32.mrf.mxu0
    %v2919 = vadd.f32 %v1569, %v2918
    %v2920 = vpop.f32.mrf.mxu0
    %v2921 = vpop.f32.mrf.mxu0
    %2922 = vdwg.mxu0
    %2923 = vmatprep.subr.bf16.mxu0 %v2555
    %2924 = vmatpush1.bf16.msra.mxu0 %v2554
    %2925 = vmatprep.subr.bf16.mxu0 %v2547
    %2926 = vmatpush1.bf16.msra.mxu0 %v2546
    %2927 = vmatprep.subr.bf16.mxu0 %v2539
    %2928 = vmatpush1.bf16.msra.mxu0 %v2538
    %2929 = vmatprep.subr.bf16.mxu0 %v2531
    %2930 = vmatpush1.bf16.msra.mxu0 %v2530
    %2931 = vmatprep.subr.bf16.mxu0 %v2523
    %2932 = vmatpush1.bf16.msra.mxu0 %v2522
    %2933 = vmatprep.subr.bf16.mxu0 %v2515
    %2934 = vmatpush1.bf16.msra.mxu0 %v2514
    %2935 = vmatprep.subr.bf16.mxu0 %v2507
    %2936 = vmatpush1.bf16.msra.mxu0 %v2506
    %2937 = vmatprep.subr.bf16.mxu0 %v2499
    %2938 = vmatpush1.bf16.msra.mxu0 %v2498
    %2939 = vmatprep.subr.bf16.mxu0 %v2619
    %2940 = vmatpush2.bf16.msra.mxu0 %v2618
    %2941 = vmatprep.subr.bf16.mxu0 %v2611
    %2942 = vmatpush2.bf16.msra.mxu0 %v2610
    %2943 = vmatprep.subr.bf16.mxu0 %v2603
    %2944 = vmatpush2.bf16.msra.mxu0 %v2602
    %2945 = vmatprep.subr.bf16.mxu0 %v2595
    %2946 = vmatpush2.bf16.msra.mxu0 %v2594
    %2947 = vmatprep.subr.bf16.mxu0 %v2587
    %2948 = vmatpush2.bf16.msra.mxu0 %v2586
    %2949 = vmatprep.subr.bf16.mxu0 %v2579
    %2950 = vmatpush2.bf16.msra.mxu0 %v2578
    %2951 = vmatprep.subr.bf16.mxu0 %v2571
    %2952 = vmatpush2.bf16.msra.mxu0 %v2570
    %2953 = vmatprep.subr.bf16.mxu0 %v2563
    %2954 = vmatpush2.bf16.msra.mxu0 %v2562
    %2955 = vmatprep.mubr.bf16.mxu0 %v1303
    %2956 = vmatmul.mubr.bf16.gmra.mxu0 %v1302
    %v2957 = vpop.f32.mrf.mxu0
    %v2958 = vadd.f32 %v2917, %v2957
    %v2959 = vpop.f32.mrf.mxu0
    %v2960 = vadd.f32 %v2919, %v2959
    %v2961 = vpop.f32.mrf.mxu0
    %v2962 = vpop.f32.mrf.mxu0
    %2963 = vdwg.mxu0
    %2964 = vmatprep.subr.bf16.mxu0 %v2429
    %2965 = vmatpush1.bf16.msra.mxu0 %v2428
    %2966 = vmatprep.subr.bf16.mxu0 %v2421
    %2967 = vmatpush1.bf16.msra.mxu0 %v2420
    %2968 = vmatprep.subr.bf16.mxu0 %v2413
    %2969 = vmatpush1.bf16.msra.mxu0 %v2412
    %2970 = vmatprep.subr.bf16.mxu0 %v2405
    %2971 = vmatpush1.bf16.msra.mxu0 %v2404
    %2972 = vmatprep.subr.bf16.mxu0 %v2397
    %2973 = vmatpush1.bf16.msra.mxu0 %v2396
    %2974 = vmatprep.subr.bf16.mxu0 %v2389
    %2975 = vmatpush1.bf16.msra.mxu0 %v2388
    %2976 = vmatprep.subr.bf16.mxu0 %v2381
    %2977 = vmatpush1.bf16.msra.mxu0 %v2380
    %2978 = vmatprep.subr.bf16.mxu0 %v2373
    %2979 = vmatpush1.bf16.msra.mxu0 %v2372
    %2980 = vmatprep.subr.bf16.mxu0 %v2493
    %2981 = vmatpush2.bf16.msra.mxu0 %v2492
    %2982 = vmatprep.subr.bf16.mxu0 %v2485
    %2983 = vmatpush2.bf16.msra.mxu0 %v2484
    %2984 = vmatprep.subr.bf16.mxu0 %v2477
    %2985 = vmatpush2.bf16.msra.mxu0 %v2476
    %2986 = vmatprep.subr.bf16.mxu0 %v2469
    %2987 = vmatpush2.bf16.msra.mxu0 %v2468
    %2988 = vmatprep.subr.bf16.mxu0 %v2461
    %2989 = vmatpush2.bf16.msra.mxu0 %v2460
    %2990 = vmatprep.subr.bf16.mxu0 %v2453
    %2991 = vmatpush2.bf16.msra.mxu0 %v2452
    %2992 = vmatprep.subr.bf16.mxu0 %v2445
    %2993 = vmatpush2.bf16.msra.mxu0 %v2444
    %2994 = vmatprep.subr.bf16.mxu0 %v2437
    %2995 = vmatpush2.bf16.msra.mxu0 %v2436
    %2996 = vmatprep.mubr.bf16.mxu0 %v1301
    %2997 = vmatmul.mubr.bf16.gmra.mxu0 %v1300
    %v2998 = vpop.f32.mrf.mxu0
    %v2999 = vadd.f32 %v1573, %v2998
    %v3000 = vpop.f32.mrf.mxu0
    %v3001 = vadd.f32 %v1577, %v3000
    %v3002 = vpop.f32.mrf.mxu0
    %v3003 = vpop.f32.mrf.mxu0
    %3004 = vdwg.mxu0
    %3005 = vmatprep.subr.bf16.mxu0 %v2557
    %3006 = vmatpush1.bf16.msra.mxu0 %v2556
    %3007 = vmatprep.subr.bf16.mxu0 %v2549
    %3008 = vmatpush1.bf16.msra.mxu0 %v2548
    %3009 = vmatprep.subr.bf16.mxu0 %v2541
    %3010 = vmatpush1.bf16.msra.mxu0 %v2540
    %3011 = vmatprep.subr.bf16.mxu0 %v2533
    %3012 = vmatpush1.bf16.msra.mxu0 %v2532
    %3013 = vmatprep.subr.bf16.mxu0 %v2525
    %3014 = vmatpush1.bf16.msra.mxu0 %v2524
    %3015 = vmatprep.subr.bf16.mxu0 %v2517
    %3016 = vmatpush1.bf16.msra.mxu0 %v2516
    %3017 = vmatprep.subr.bf16.mxu0 %v2509
    %3018 = vmatpush1.bf16.msra.mxu0 %v2508
    %3019 = vmatprep.subr.bf16.mxu0 %v2501
    %3020 = vmatpush1.bf16.msra.mxu0 %v2500
    %3021 = vmatprep.subr.bf16.mxu0 %v2621
    %3022 = vmatpush2.bf16.msra.mxu0 %v2620
    %3023 = vmatprep.subr.bf16.mxu0 %v2613
    %3024 = vmatpush2.bf16.msra.mxu0 %v2612
    %3025 = vmatprep.subr.bf16.mxu0 %v2605
    %3026 = vmatpush2.bf16.msra.mxu0 %v2604
    %3027 = vmatprep.subr.bf16.mxu0 %v2597
    %3028 = vmatpush2.bf16.msra.mxu0 %v2596
    %3029 = vmatprep.subr.bf16.mxu0 %v2589
    %3030 = vmatpush2.bf16.msra.mxu0 %v2588
    %3031 = vmatprep.subr.bf16.mxu0 %v2581
    %3032 = vmatpush2.bf16.msra.mxu0 %v2580
    %3033 = vmatprep.subr.bf16.mxu0 %v2573
    %3034 = vmatpush2.bf16.msra.mxu0 %v2572
    %3035 = vmatprep.subr.bf16.mxu0 %v2565
    %3036 = vmatpush2.bf16.msra.mxu0 %v2564
    %3037 = vmatprep.mubr.bf16.mxu0 %v1303
    %3038 = vmatmul.mubr.bf16.gmra.mxu0 %v1302
    %v3039 = vpop.f32.mrf.mxu0
    %v3040 = vadd.f32 %v2999, %v3039
    %v3041 = vpop.f32.mrf.mxu0
    %v3042 = vadd.f32 %v3001, %v3041
    %v3043 = vpop.f32.mrf.mxu0
    %v3044 = vpop.f32.mrf.mxu0
    %3045 = vdwg.mxu0
    %3046 = vmatprep.subr.bf16.mxu0 %v2431
    %3047 = vmatpush1.bf16.msra.mxu0 %v2430
    %3048 = vmatprep.subr.bf16.mxu0 %v2423
    %3049 = vmatpush1.bf16.msra.mxu0 %v2422
    %3050 = vmatprep.subr.bf16.mxu0 %v2415
    %3051 = vmatpush1.bf16.msra.mxu0 %v2414
    %3052 = vmatprep.subr.bf16.mxu0 %v2407
    %3053 = vmatpush1.bf16.msra.mxu0 %v2406
    %3054 = vmatprep.subr.bf16.mxu0 %v2399
    %3055 = vmatpush1.bf16.msra.mxu0 %v2398
    %3056 = vmatprep.subr.bf16.mxu0 %v2391
    %3057 = vmatpush1.bf16.msra.mxu0 %v2390
    %3058 = vmatprep.subr.bf16.mxu0 %v2383
    %3059 = vmatpush1.bf16.msra.mxu0 %v2382
    %3060 = vmatprep.subr.bf16.mxu0 %v2375
    %3061 = vmatpush1.bf16.msra.mxu0 %v2374
    %3062 = vmatprep.subr.bf16.mxu0 %v2495
    %3063 = vmatpush2.bf16.msra.mxu0 %v2494
    %3064 = vmatprep.subr.bf16.mxu0 %v2487
    %3065 = vmatpush2.bf16.msra.mxu0 %v2486
    %3066 = vmatprep.subr.bf16.mxu0 %v2479
    %3067 = vmatpush2.bf16.msra.mxu0 %v2478
    %3068 = vmatprep.subr.bf16.mxu0 %v2471
    %3069 = vmatpush2.bf16.msra.mxu0 %v2470
    %3070 = vmatprep.subr.bf16.mxu0 %v2463
    %3071 = vmatpush2.bf16.msra.mxu0 %v2462
    %3072 = vmatprep.subr.bf16.mxu0 %v2455
    %3073 = vmatpush2.bf16.msra.mxu0 %v2454
    %3074 = vmatprep.subr.bf16.mxu0 %v2447
    %3075 = vmatpush2.bf16.msra.mxu0 %v2446
    %3076 = vmatprep.subr.bf16.mxu0 %v2439
    %3077 = vmatpush2.bf16.msra.mxu0 %v2438
    %3078 = vmatprep.mubr.bf16.mxu0 %v1301
    %3079 = vmatmul.mubr.bf16.gmra.mxu0 %v1300
    %v3080 = vpop.f32.mrf.mxu0
    %v3081 = vadd.f32 %v1581, %v3080
    %v3082 = vpop.f32.mrf.mxu0
    %v3083 = vadd.f32 %v1585, %v3082
    %v3084 = vpop.f32.mrf.mxu0
    %v3085 = vpop.f32.mrf.mxu0
    %3086 = vdwg.mxu0
    %3087 = vmatprep.subr.bf16.mxu0 %v2559
    %3088 = vmatpush1.bf16.msra.mxu0 %v2558
    %3089 = vmatprep.subr.bf16.mxu0 %v2551
    %3090 = vmatpush1.bf16.msra.mxu0 %v2550
    %3091 = vmatprep.subr.bf16.mxu0 %v2543
    %3092 = vmatpush1.bf16.msra.mxu0 %v2542
    %3093 = vmatprep.subr.bf16.mxu0 %v2535
    %3094 = vmatpush1.bf16.msra.mxu0 %v2534
    %3095 = vmatprep.subr.bf16.mxu0 %v2527
    %3096 = vmatpush1.bf16.msra.mxu0 %v2526
    %3097 = vmatprep.subr.bf16.mxu0 %v2519
    %3098 = vmatpush1.bf16.msra.mxu0 %v2518
    %3099 = vmatprep.subr.bf16.mxu0 %v2511
    %3100 = vmatpush1.bf16.msra.mxu0 %v2510
    %3101 = vmatprep.subr.bf16.mxu0 %v2503
    %3102 = vmatpush1.bf16.msra.mxu0 %v2502
    %3103 = vmatprep.subr.bf16.mxu0 %v2623
    %3104 = vmatpush2.bf16.msra.mxu0 %v2622
    %3105 = vmatprep.subr.bf16.mxu0 %v2615
    %3106 = vmatpush2.bf16.msra.mxu0 %v2614
    %3107 = vmatprep.subr.bf16.mxu0 %v2607
    %3108 = vmatpush2.bf16.msra.mxu0 %v2606
    %3109 = vmatprep.subr.bf16.mxu0 %v2599
    %3110 = vmatpush2.bf16.msra.mxu0 %v2598
    %3111 = vmatprep.subr.bf16.mxu0 %v2591
    %3112 = vmatpush2.bf16.msra.mxu0 %v2590
    %3113 = vmatprep.subr.bf16.mxu0 %v2583
    %3114 = vmatpush2.bf16.msra.mxu0 %v2582
    %3115 = vmatprep.subr.bf16.mxu0 %v2575
    %3116 = vmatpush2.bf16.msra.mxu0 %v2574
    %3117 = vmatprep.subr.bf16.mxu0 %v2567
    %3118 = vmatpush2.bf16.msra.mxu0 %v2566
    %3119 = vmatprep.mubr.bf16.mxu0 %v1303
    %3120 = vmatmul.mubr.bf16.gmra.mxu0 %v1302
    %v3121 = vpop.f32.mrf.mxu0
    %v3122 = vadd.f32 %v3081, %v3121
    %v3123 = vpop.f32.mrf.mxu0
    %v3124 = vadd.f32 %v3083, %v3123
    %v3125 = vpop.f32.mrf.mxu0
    %v3126 = vpop.f32.mrf.mxu0
    %3127 = vdwg.mxu0
    %3128 = vmatprep.subr.bf16.mxu0 %v2433
    %3129 = vmatpush1.bf16.msra.mxu0 %v2432
    %3130 = vmatprep.subr.bf16.mxu0 %v2425
    %3131 = vmatpush1.bf16.msra.mxu0 %v2424
    %3132 = vmatprep.subr.bf16.mxu0 %v2417
    %3133 = vmatpush1.bf16.msra.mxu0 %v2416
    %3134 = vmatprep.subr.bf16.mxu0 %v2409
    %3135 = vmatpush1.bf16.msra.mxu0 %v2408
    %3136 = vmatprep.subr.bf16.mxu0 %v2401
    %3137 = vmatpush1.bf16.msra.mxu0 %v2400
    %3138 = vmatprep.subr.bf16.mxu0 %v2393
    %3139 = vmatpush1.bf16.msra.mxu0 %v2392
    %3140 = vmatprep.subr.bf16.mxu0 %v2385
    %3141 = vmatpush1.bf16.msra.mxu0 %v2384
    %3142 = vmatprep.subr.bf16.mxu0 %v2377
    %3143 = vmatpush1.bf16.msra.mxu0 %v2376
    %3144 = vmatprep.subr.bf16.mxu0 %v2497
    %3145 = vmatpush2.bf16.msra.mxu0 %v2496
    %3146 = vmatprep.subr.bf16.mxu0 %v2489
    %3147 = vmatpush2.bf16.msra.mxu0 %v2488
    %3148 = vmatprep.subr.bf16.mxu0 %v2481
    %3149 = vmatpush2.bf16.msra.mxu0 %v2480
    %3150 = vmatprep.subr.bf16.mxu0 %v2473
    %3151 = vmatpush2.bf16.msra.mxu0 %v2472
    %3152 = vmatprep.subr.bf16.mxu0 %v2465
    %3153 = vmatpush2.bf16.msra.mxu0 %v2464
    %3154 = vmatprep.subr.bf16.mxu0 %v2457
    %3155 = vmatpush2.bf16.msra.mxu0 %v2456
    %3156 = vmatprep.subr.bf16.mxu0 %v2449
    %3157 = vmatpush2.bf16.msra.mxu0 %v2448
    %3158 = vmatprep.subr.bf16.mxu0 %v2441
    %3159 = vmatpush2.bf16.msra.mxu0 %v2440
    %3160 = vmatprep.mubr.bf16.mxu0 %v1301
    %3161 = vmatmul.mubr.bf16.gmra.mxu0 %v1300
    %v3162 = vpop.f32.mrf.mxu0
    %v3163 = vadd.f32 %v1589, %v3162
    %v3164 = vpop.f32.mrf.mxu0
    %v3165 = vadd.f32 %v1593, %v3164
    %v3166 = vpop.f32.mrf.mxu0
    %v3167 = vpop.f32.mrf.mxu0
    %3168 = vdwg.mxu0
    %3169 = vmatprep.subr.bf16.mxu0 %v2561
    %3170 = vmatpush1.bf16.msra.mxu0 %v2560
    %3171 = vmatprep.subr.bf16.mxu0 %v2553
    %3172 = vmatpush1.bf16.msra.mxu0 %v2552
    %3173 = vmatprep.subr.bf16.mxu0 %v2545
    %3174 = vmatpush1.bf16.msra.mxu0 %v2544
    %3175 = vmatprep.subr.bf16.mxu0 %v2537
    %3176 = vmatpush1.bf16.msra.mxu0 %v2536
    %3177 = vmatprep.subr.bf16.mxu0 %v2529
    %3178 = vmatpush1.bf16.msra.mxu0 %v2528
    %3179 = vmatprep.subr.bf16.mxu0 %v2521
    %3180 = vmatpush1.bf16.msra.mxu0 %v2520
    %3181 = vmatprep.subr.bf16.mxu0 %v2513
    %3182 = vmatpush1.bf16.msra.mxu0 %v2512
    %3183 = vmatprep.subr.bf16.mxu0 %v2505
    %3184 = vmatpush1.bf16.msra.mxu0 %v2504
    %3185 = vmatprep.subr.bf16.mxu0 %v2625
    %3186 = vmatpush2.bf16.msra.mxu0 %v2624
    %3187 = vmatprep.subr.bf16.mxu0 %v2617
    %3188 = vmatpush2.bf16.msra.mxu0 %v2616
    %3189 = vmatprep.subr.bf16.mxu0 %v2609
    %3190 = vmatpush2.bf16.msra.mxu0 %v2608
    %3191 = vmatprep.subr.bf16.mxu0 %v2601
    %3192 = vmatpush2.bf16.msra.mxu0 %v2600
    %3193 = vmatprep.subr.bf16.mxu0 %v2593
    %3194 = vmatpush2.bf16.msra.mxu0 %v2592
    %3195 = vmatprep.subr.bf16.mxu0 %v2585
    %3196 = vmatpush2.bf16.msra.mxu0 %v2584
    %3197 = vmatprep.subr.bf16.mxu0 %v2577
    %3198 = vmatpush2.bf16.msra.mxu0 %v2576
    %3199 = vmatprep.subr.bf16.mxu0 %v2569
    %3200 = vmatpush2.bf16.msra.mxu0 %v2568
    %3201 = vmatprep.mubr.bf16.mxu0 %v1303
    %3202 = vmatmul.mubr.bf16.gmra.mxu0 %v1302
    %v3203 = vpop.f32.mrf.mxu0
    %v3204 = vadd.f32 %v3163, %v3203
    %v3205 = vpop.f32.mrf.mxu0
    %v3206 = vadd.f32 %v3165, %v3205
    %v3207 = vpop.f32.mrf.mxu0
    %v3208 = vpop.f32.mrf.mxu0
    %3209 = vdwg.mxu0
    %v3210 = vld [vmem:[%s16] sm:$0xff]
    %v3211 = vld [vmem:[%s17] sm:$0xff]
    %v3212 = vrot.slane %v2958, 4
    %v3213 = vadd.f32 %v2958, %v3212
    %v3214 = vrot.slane %v3213, 2
    %v3215 = vadd.f32 %v3213, %v3214
    %v3216 = vrot.slane %v3215, 1
    %v3217 = vadd.f32 %v3215, %v3216
    %v3218 = vrot.slane %v2960, 4
    %v3219 = vadd.f32 %v2960, %v3218
    %v3220 = vrot.slane %v3219, 2
    %v3221 = vadd.f32 %v3219, %v3220
    %v3222 = vrot.slane %v3221, 1
    %v3223 = vadd.f32 %v3221, %v3222
    %v3224 = vrot.slane %v3040, 4
    %v3225 = vadd.f32 %v3040, %v3224
    %v3226 = vrot.slane %v3225, 2
    %v3227 = vadd.f32 %v3225, %v3226
    %v3228 = vrot.slane %v3227, 1
    %v3229 = vadd.f32 %v3227, %v3228
    %v3230 = vrot.slane %v3042, 4
    %v3231 = vadd.f32 %v3042, %v3230
    %v3232 = vrot.slane %v3231, 2
    %v3233 = vadd.f32 %v3231, %v3232
    %v3234 = vrot.slane %v3233, 1
    %v3235 = vadd.f32 %v3233, %v3234
    %v3236 = vrot.slane %v3122, 4
    %v3237 = vadd.f32 %v3122, %v3236
    %v3238 = vrot.slane %v3237, 2
    %v3239 = vadd.f32 %v3237, %v3238
    %v3240 = vrot.slane %v3239, 1
    %v3241 = vadd.f32 %v3239, %v3240
    %v3242 = vrot.slane %v3124, 4
    %v3243 = vadd.f32 %v3124, %v3242
    %v3244 = vrot.slane %v3243, 2
    %v3245 = vadd.f32 %v3243, %v3244
    %v3246 = vrot.slane %v3245, 1
    %v3247 = vadd.f32 %v3245, %v3246
    %v3248 = vrot.slane %v3204, 4
    %v3249 = vadd.f32 %v3204, %v3248
    %v3250 = vrot.slane %v3249, 2
    %v3251 = vadd.f32 %v3249, %v3250
    %v3252 = vrot.slane %v3251, 1
    %v3253 = vadd.f32 %v3251, %v3252
    %v3254 = vrot.slane %v3206, 4
    %v3255 = vadd.f32 %v3206, %v3254
    %v3256 = vrot.slane %v3255, 2
    %v3257 = vadd.f32 %v3255, %v3256
    %v3258 = vrot.slane %v3257, 1
    %v3259 = vadd.f32 %v3257, %v3258
    %v3260 = vmul.f32 %v3217, %v568
    %v3261 = vmul.f32 %v3223, %v568
    %v3262 = vmul.f32 %v3229, %v568
    %v3263 = vmul.f32 %v3235, %v568
    %v3264 = vmul.f32 %v3241, %v568
    %v3265 = vmul.f32 %v3247, %v568
    %v3266 = vmul.f32 %v3253, %v568
    %v3267 = vmul.f32 %v3259, %v568
    %v3268 = vsub.f32 %v2958, %v3260
    %v3269 = vsub.f32 %v2960, %v3261
    %v3270 = vsub.f32 %v3040, %v3262
    %v3271 = vsub.f32 %v3042, %v3263
    %v3272 = vsub.f32 %v3122, %v3264
    %v3273 = vsub.f32 %v3124, %v3265
    %v3274 = vsub.f32 %v3204, %v3266
    %v3275 = vsub.f32 %v3206, %v3267
    %v3276 = vmul.f32 %v3268, %v3268
    %v3277 = vmul.f32 %v3269, %v3269
    %v3278 = vmul.f32 %v3270, %v3270
    %v3279 = vmul.f32 %v3271, %v3271
    %v3280 = vmul.f32 %v3272, %v3272
    %v3281 = vmul.f32 %v3273, %v3273
    %v3282 = vmul.f32 %v3274, %v3274
    %v3283 = vmul.f32 %v3275, %v3275
    %v3284 = vrot.slane %v3276, 4
    %v3285 = vadd.f32 %v3276, %v3284
    %v3286 = vrot.slane %v3285, 2
    %v3287 = vadd.f32 %v3285, %v3286
    %v3288 = vrot.slane %v3287, 1
    %v3289 = vadd.f32 %v3287, %v3288
    %v3290 = vrot.slane %v3277, 4
    %v3291 = vadd.f32 %v3277, %v3290
    %v3292 = vrot.slane %v3291, 2
    %v3293 = vadd.f32 %v3291, %v3292
    %v3294 = vrot.slane %v3293, 1
    %v3295 = vadd.f32 %v3293, %v3294
    %v3296 = vrot.slane %v3278, 4
    %v3297 = vadd.f32 %v3278, %v3296
    %v3298 = vrot.slane %v3297, 2
    %v3299 = vadd.f32 %v3297, %v3298
    %v3300 = vrot.slane %v3299, 1
    %v3301 = vadd.f32 %v3299, %v3300
    %v3302 = vrot.slane %v3279, 4
    %v3303 = vadd.f32 %v3279, %v3302
    %v3304 = vrot.slane %v3303, 2
    %v3305 = vadd.f32 %v3303, %v3304
    %v3306 = vrot.slane %v3305, 1
    %v3307 = vadd.f32 %v3305, %v3306
    %v3308 = vrot.slane %v3280, 4
    %v3309 = vadd.f32 %v3280, %v3308
    %v3310 = vrot.slane %v3309, 2
    %v3311 = vadd.f32 %v3309, %v3310
    %v3312 = vrot.slane %v3311, 1
    %v3313 = vadd.f32 %v3311, %v3312
    %v3314 = vrot.slane %v3281, 4
    %v3315 = vadd.f32 %v3281, %v3314
    %v3316 = vrot.slane %v3315, 2
    %v3317 = vadd.f32 %v3315, %v3316
    %v3318 = vrot.slane %v3317, 1
    %v3319 = vadd.f32 %v3317, %v3318
    %v3320 = vrot.slane %v3282, 4
    %v3321 = vadd.f32 %v3282, %v3320
    %v3322 = vrot.slane %v3321, 2
    %v3323 = vadd.f32 %v3321, %v3322
    %v3324 = vrot.slane %v3323, 1
    %v3325 = vadd.f32 %v3323, %v3324
    %v3326 = vrot.slane %v3283, 4
    %v3327 = vadd.f32 %v3283, %v3326
    %v3328 = vrot.slane %v3327, 2
    %v3329 = vadd.f32 %v3327, %v3328
    %v3330 = vrot.slane %v3329, 1
    %v3331 = vadd.f32 %v3329, %v3330
    %v3332 = vmul.f32 %v3289, %v568
    %v3333 = vmul.f32 %v3295, %v568
    %v3334 = vmul.f32 %v3301, %v568
    %v3335 = vmul.f32 %v3307, %v568
    %v3336 = vmul.f32 %v3313, %v568
    %v3337 = vmul.f32 %v3319, %v568
    %v3338 = vmul.f32 %v3325, %v568
    %v3339 = vmul.f32 %v3331, %v568
    %v3340 = vadd.f32 %v3332, 0.8
    %v3341 = vadd.f32 %v3333, 0.8
    %v3342 = vadd.f32 %v3334, 0.8
    %v3343 = vadd.f32 %v3335, 0.8
    %v3344 = vadd.f32 %v3336, 0.8
    %v3345 = vadd.f32 %v3337, 0.8
    %v3346 = vadd.f32 %v3338, 0.8
    %v3347 = vadd.f32 %v3339, 0.8
    %v3348 = vrsqrt.pop %v3340
    %v3349 = vrsqrt.pop %v3341
    %v3350 = vrsqrt.pop %v3342
    %v3351 = vrsqrt.pop %v3343
    %v3352 = vrsqrt.pop %v3344
    %v3353 = vrsqrt.pop %v3345
    %v3354 = vrsqrt.pop %v3346
    %v3355 = vrsqrt.pop %v3347
    %v3364 = vcombine.low %v3348, %v3349
    %v3365 = vcombine.low %v3350, %v3351
    %v3366 = vcombine.low %v3352, %v3353
    %v3367 = vcombine.low %v3354, %v3355
    %v3369 = vunpack.c.l.s4 1966171168
    %v3370 = vunpack.c.0.s8 %v3369
    %v3371 = vlaneseq
    %v3372 = vshrl.u32 %v3371, 7
    %v3373 = vsub.s32 %v3370, %v3372
    %v3374 = vrot.slane %v3364, %v3373
    %v3376 = vunpack.c.l.s4 1966171168
    %v3377 = vunpack.c.0.s8 %v3376
    %v3378 = vlaneseq
    %v3379 = vshrl.u32 %v3378, 7
    %v3380 = vsub.s32 %v3377, %v3379
    %v3381 = vrot.slane %v3365, %v3380
    %v3383 = vunpack.c.l.s4 1966171168
    %v3384 = vunpack.c.0.s8 %v3383
    %v3385 = vlaneseq
    %v3386 = vshrl.u32 %v3385, 7
    %v3387 = vsub.s32 %v3384, %v3386
    %v3388 = vrot.slane %v3366, %v3387
    %v3390 = vunpack.c.l.s4 1966171168
    %v3391 = vunpack.c.0.s8 %v3390
    %v3392 = vlaneseq
    %v3393 = vshrl.u32 %v3392, 7
    %v3394 = vsub.s32 %v3391, %v3393
    %v3395 = vrot.slane %v3367, %v3394
    %v3396 = vcombine.low %v3374, %v3381
    %v3397 = vcombine.low %v3388, %v3395
    %v3399 = vunpack.c.l.s4 1966171168
    %v3400 = vunpack.c.0.s8 %v3399
    %v3401 = vlaneseq
    %v3402 = vshrl.u32 %v3401, 7
    %v3403 = vsub.s32 %v3400, %v3402
    %v3404 = vrot.slane %v3396, %v3403
    %v3406 = vunpack.c.l.s4 1966171168
    %v3407 = vunpack.c.0.s8 %v3406
    %v3408 = vlaneseq
    %v3409 = vshrl.u32 %v3408, 7
    %v3410 = vsub.s32 %v3407, %v3409
    %v3411 = vrot.slane %v3397, %v3410
    %v3412 = vcombine.low %v3404, %v3411
    %v3414 = vmul.f32 %v3210, %v3412
    %v3416 = vlaneseq
    %v3417 = vshrl.u32 %v3416, 7
    %v3418 = vsub.s32 0, %v3417
    %v3419 = vrot.slane %v3414, %v3418
    %v3420 = vlaneseq
    %v3421 = vshrl.u32 %v3420, 7
    %v3422 = vsub.s32 1, %v3421
    %v3423 = vrot.slane %v3414, %v3422
    %v3424 = vlaneseq
    %v3425 = vshrl.u32 %v3424, 7
    %v3426 = vsub.s32 2, %v3425
    %v3427 = vrot.slane %v3414, %v3426
    %v3428 = vlaneseq
    %v3429 = vshrl.u32 %v3428, 7
    %v3430 = vsub.s32 3, %v3429
    %v3431 = vrot.slane %v3414, %v3430
    %v3432 = vlaneseq
    %v3433 = vshrl.u32 %v3432, 7
    %v3434 = vsub.s32 4, %v3433
    %v3435 = vrot.slane %v3414, %v3434
    %v3436 = vlaneseq
    %v3437 = vshrl.u32 %v3436, 7
    %v3438 = vsub.s32 5, %v3437
    %v3439 = vrot.slane %v3414, %v3438
    %v3440 = vlaneseq
    %v3441 = vshrl.u32 %v3440, 7
    %v3442 = vsub.s32 6, %v3441
    %v3443 = vrot.slane %v3414, %v3442
    %v3444 = vlaneseq
    %v3445 = vshrl.u32 %v3444, 7
    %v3446 = vsub.s32 7, %v3445
    %v3447 = vrot.slane %v3414, %v3446
    %v3456 = vmul.f32 %v3268, %v3419
    %v3457 = vmul.f32 %v3269, %v3423
    %v3458 = vmul.f32 %v3270, %v3427
    %v3459 = vmul.f32 %v3271, %v3431
    %v3460 = vmul.f32 %v3272, %v3435
    %v3461 = vmul.f32 %v3273, %v3439
    %v3462 = vmul.f32 %v3274, %v3443
    %v3463 = vmul.f32 %v3275, %v3447
    %v3465 = vlaneseq
    %v3466 = vshrl.u32 %v3465, 7
    %v3467 = vsub.s32 0, %v3466
    %v3468 = vrot.slane %v3211, %v3467
    %v3469 = vlaneseq
    %v3470 = vshrl.u32 %v3469, 7
    %v3471 = vsub.s32 1, %v3470
    %v3472 = vrot.slane %v3211, %v3471
    %v3473 = vlaneseq
    %v3474 = vshrl.u32 %v3473, 7
    %v3475 = vsub.s32 2, %v3474
    %v3476 = vrot.slane %v3211, %v3475
    %v3477 = vlaneseq
    %v3478 = vshrl.u32 %v3477, 7
    %v3479 = vsub.s32 3, %v3478
    %v3480 = vrot.slane %v3211, %v3479
    %v3481 = vlaneseq
    %v3482 = vshrl.u32 %v3481, 7
    %v3483 = vsub.s32 4, %v3482
    %v3484 = vrot.slane %v3211, %v3483
    %v3485 = vlaneseq
    %v3486 = vshrl.u32 %v3485, 7
    %v3487 = vsub.s32 5, %v3486
    %v3488 = vrot.slane %v3211, %v3487
    %v3489 = vlaneseq
    %v3490 = vshrl.u32 %v3489, 7
    %v3491 = vsub.s32 6, %v3490
    %v3492 = vrot.slane %v3211, %v3491
    %v3493 = vlaneseq
    %v3494 = vshrl.u32 %v3493, 7
    %v3495 = vsub.s32 7, %v3494
    %v3496 = vrot.slane %v3211, %v3495
    %v3505 = vadd.f32 %v3456, %v3468
    %v3506 = vadd.f32 %v3457, %v3472
    %v3507 = vadd.f32 %v3458, %v3476
    %v3508 = vadd.f32 %v3459, %v3480
    %v3509 = vadd.f32 %v3460, %v3484
    %v3510 = vadd.f32 %v3461, %v3488
    %v3511 = vadd.f32 %v3462, %v3492
    %v3512 = vadd.f32 %v3463, %v3496
    %vm3513 = vcmp.ge.f32.partialorder %v3505, 0.0
    %vm3514 = vcmp.ge.f32.partialorder %v3506, 0.0
    %vm3515 = vcmp.ge.f32.partialorder %v3507, 0.0
    %vm3516 = vcmp.ge.f32.partialorder %v3508, 0.0
    %vm3517 = vcmp.ge.f32.partialorder %v3509, 0.0
    %vm3518 = vcmp.ge.f32.partialorder %v3510, 0.0
    %vm3519 = vcmp.ge.f32.partialorder %v3511, 0.0
    %vm3520 = vcmp.ge.f32.partialorder %v3512, 0.0
    %v3521 = vmul.f32 %v3505, 0.2
    %v3522 = vmul.f32 %v3506, 0.2
    %v3523 = vmul.f32 %v3507, 0.2
    %v3524 = vmul.f32 %v3508, 0.2
    %v3525 = vmul.f32 %v3509, 0.2
    %v3526 = vmul.f32 %v3510, 0.2
    %v3527 = vmul.f32 %v3511, 0.2
    %v3528 = vmul.f32 %v3512, 0.2
    %v3529 = vsel %vm3513, %v3505, %v3521
    %v3530 = vsel %vm3514, %v3506, %v3522
    %v3531 = vsel %vm3515, %v3507, %v3523
    %v3532 = vsel %vm3516, %v3508, %v3524
    %v3533 = vsel %vm3517, %v3509, %v3525
    %v3534 = vsel %vm3518, %v3510, %v3526
    %v3535 = vsel %vm3519, %v3511, %v3527
    %v3536 = vsel %vm3520, %v3512, %v3528
    %v3537 = vpack.c.bf16 %v3529, %v3529
    %v3538 = vpack.c.bf16 %v3530, %v3530
    %v3539 = vpack.c.bf16 %v3531, %v3531
    %v3540 = vpack.c.bf16 %v3532, %v3532
    %v3541 = vpack.c.bf16 %v3533, %v3533
    %v3542 = vpack.c.bf16 %v3534, %v3534
    %v3543 = vpack.c.bf16 %v3535, %v3535
    %v3544 = vpack.c.bf16 %v3536, %v3536
    %v3553 = vunpack.c.l.b16 %v3537
    %v3554 = vunpack.c.l.b16 %v3538
    %v3555 = vunpack.c.l.b16 %v3539
    %v3556 = vunpack.c.l.b16 %v3540
    %v3557 = vunpack.c.l.b16 %v3541
    %v3558 = vunpack.c.l.b16 %v3542
    %v3559 = vunpack.c.l.b16 %v3543
    %v3560 = vunpack.c.l.b16 %v3544
    %v3561 = vpack.c.b16 %v3554, %v3553
    %v3562 = vpack.c.b16 %v3556, %v3555
    %v3563 = vpack.c.b16 %v3558, %v3557
    %v3564 = vpack.c.b16 %v3560, %v3559
    %3569 = vst [vmem:[#allocation22] sm:$0xff] %v3561
    %3570 = vst [vmem:[#allocation22 + $0x8] sm:$0xff] %v3562
    %3571 = vst [vmem:[#allocation22 + $0x10] sm:$0xff] %v3563
    %3572 = vst [vmem:[#allocation22 + $0x18] sm:$0xff] %v3564
    // Predicated region
    $region122: #{tpu_custom_call.1} parent=1 // pred_check
      _
    $region123: #{tpu_custom_call.1} parent=1 // pred_check_branch
      %3574 = sbr.rel (0) target = $region125
    $region124: #{tpu_custom_call.1} parent=1 // pred_region
      %s3576 = ssub.s32 512, 512
      %3577 = vsyncadd [#allocation4], %s3576
      %s3579 = sshll.u32 [#allocation22], 4
      %s3580 = int_to_ptr.vmem [resolvable:$true] %s3579
      %3582 = dma.vmem_to_hbm [thread:$0]  %s3580, 512, %s18, [#allocation4]
    $region125: #{tpu_custom_call.1} parent=1 // pred_fallthru
      _
    // Predicated region
    $region126: #{tpu_custom_call.1} parent=1 // pred_check
      _
    $region127: #{tpu_custom_call.1} parent=1 // pred_check_branch
      %3584 = sbr.rel (0) target = $region129
    $region128: #{tpu_custom_call.1} parent=1 // pred_region
      %3585 = dma.done [#allocation4], 512
    $region129: #{tpu_custom_call.1} parent=1 // pred_fallthru
      _
    %3586 = vsyncpa [#allocation3], 1
    %3587 = vsyncpa [#allocation6], 1
    %3588 = vsyncpa [#allocation9], 1
    %3589 = vsyncpa [#allocation12], 1
    %3590 = vsyncpa [#allocation15], 1
    %3591 = vsyncpa [#allocation18], 1
    %3592 = vsyncpa [#allocation21], 1
    %3593 = vsyncpa [#allocation4], 1

</llo_original>
